<compile_context>
chip_gen: v7x
topology: tpu7x:2x2x1
jax: 0.10.0
libtpu: 0.0.40
codegen_flags: <defaults>
</compile_context>

<pallas_src>
import functools
import math

import jax
import jax.numpy as jnp
from jax.experimental import pallas as pl
from jax.experimental.pallas import tpu as pltpu


def _vmem_specs(n):
    return [pl.BlockSpec(memory_space=pltpu.MemorySpace.VMEM) for _ in range(n)]


# ----------------------------------------------------------------------------
# Single fused forward kernel
# ----------------------------------------------------------------------------
def fused_forward_kernel(*refs, num_enc_layers, num_dec_layers, num_heads):
    f32 = jnp.float32
    bf16 = jnp.bfloat16

    def mxu(a):                    # cast only at the MXU boundary; accumulate in f32
        return a.astype(bf16)

    it = iter(refs)
    x_ref = next(it)
    conv_w_ref = next(it)          # (3*Cin, F) bf16, taps stacked [t-1 | t | t+1]
    conv_b_ref = next(it)          # (1, F) f32

    def take_stack(n_layers):
        layers = [dict(wih=next(it), whh=next(it), b=next(it))]     # layer 0
        for _ in range(n_layers - 1):
            layers.append(dict(wcat=next(it), b=next(it)))          # layers > 0: fused [Wih;Whh]
        return layers

    enc = take_stack(num_enc_layers)
    wqkv_ref = next(it)            # (H, 3H) bf16
    bqkv_ref = next(it)            # (1, 3H) f32
    wo_ref = next(it)              # (H, H) bf16
    bo_ref = next(it)              # (1, H) f32
    wd_ref = next(it)              # (H, O) bf16
    bd_ref = next(it)              # (1, O) f32
    dec = take_stack(num_dec_layers)
    fc_w_ref = next(it)            # (H, O) bf16
    fc_b_ref = next(it)            # (1, O) f32
    out_ref = next(it)             # (B, O) f32

    # ---------------- Conv1d(k=3, pad=1) + ReLU: one padded concat + one flat matmul ----
    x = x_ref[...]                                            # (B, T, Cin) f32
    B, T, Cin = x.shape
    zero = jnp.zeros((B, 1, Cin), f32)
    xpad = jnp.concatenate([zero, x, zero], axis=1)           # (B, T+2, Cin)
    xcat = jnp.concatenate(
        [xpad[:, 0:T, :], xpad[:, 1:T + 1, :], xpad[:, 2:T + 2, :]], axis=-1)  # (B,T,3Cin)
    F = conv_w_ref.shape[1]
    conv = jnp.dot(mxu(xcat.reshape(B * T, 3 * Cin)), conv_w_ref[...],
                   preferred_element_type=f32) + conv_b_ref[...]
    conv = jnp.maximum(conv, 0.0).reshape(B, T, F)            # ReLU

    # ---------------- MaxPool1d(kernel=2, stride=2): reshape + one maximum ---------------
    P = T // 2                                                # floor, matches PyTorch
    if T % 2:
        conv = conv[:, :2 * P, :]
    c4 = conv.reshape(B, P, 2, F)
    seq = jnp.maximum(c4[:, :, 0, :], c4[:, :, 1, :])         # (B, P, F)

    # ---------------- LSTM cell: 2 full-width transcendentals + tanh(c) ------------------
    def lstm_cell(g, c_prev):
        H = c_prev.shape[-1]
        sig = jax.nn.sigmoid(g)                               # one EUP pass over (B, 4H)
        tg = jnp.tanh(g)                                      # one EUP pass over (B, 4H)
        i_g = sig[:, 0:H]                                     # PyTorch gate order: i, f, g, o
        f_g = sig[:, H:2 * H]
        g_g = tg[:, 2 * H:3 * H]
        o_g = sig[:, 3 * H:4 * H]
        c = f_g * c_prev + i_g * g_g
        h = o_g * jnp.tanh(c)
        return h, c

    # ---------------- Stacked LSTM, wavefront over (layer, time) -------------------------
    # Layer 0: input projection hoisted over all timesteps (one flat matmul).
    # Layers > 0: per-step fused [x_t | h_{t-1}] @ wcat  -> layer l+1 step t only depends
    # on layer l step t, so the scheduler can overlap layers (L+S-1 chain, not L*S).
    def lstm_stack(xs, layers, need_seq):
        Bb, S, Din = xs.shape
        H = layers[0]["whh"].shape[0]
        L = len(layers)
        l0 = layers[0]
        gx0 = (jnp.dot(mxu(xs.reshape(Bb * S, Din)), l0["wih"][...],
                       preferred_element_type=f32) + l0["b"][...]).reshape(Bb, S, 4 * H)
        whh0 = l0["whh"][...]
        wcats = [layers[li]["wcat"][...] for li in range(1, L)]
        bls = [layers[li]["b"][...] for li in range(1, L)]
        h = [jnp.zeros((Bb, H), f32) for _ in range(L)]
        c = [jnp.zeros((Bb, H), f32) for _ in range(L)]
        outs = []
        # S is tiny (4) -> static unroll; switch to a fori_loop carry if S grows >~16.
        for t in range(S):
            g = gx0[:, t, :] + jnp.dot(mxu(h[0]), whh0, preferred_element_type=f32)
            h[0], c[0] = lstm_cell(g, c[0])
            xt = h[0]
            for li in range(1, L):
                inp = jnp.concatenate([xt, h[li]], axis=-1)            # (B, 2H)
                g = jnp.dot(mxu(inp), wcats[li - 1],
                            preferred_element_type=f32) + bls[li - 1]
                h[li], c[li] = lstm_cell(g, c[li])
                xt = h[li]
            if need_seq:
                outs.append(xt[:, None, :])
        seq_out = jnp.concatenate(outs, axis=1) if need_seq else None
        return seq_out, xt

    # ---------------- Encoder LSTM stack --------------------------------------------------
    seq, _ = lstm_stack(seq, enc, need_seq=True)              # (B, P, H)

    # ---------------- MultiheadAttention (self) + dense1 ---------------------------------
    H = seq.shape[-1]
    S = seq.shape[1]
    dh = H // num_heads
    scale = 1.0 / math.sqrt(dh)
    qkv = jnp.dot(mxu(seq.reshape(B * S, H)), wqkv_ref[...],
                  preferred_element_type=f32) + bqkv_ref[...]          # (B*S, 3H)
    qkv_b = mxu(qkv.reshape(B, S, 3 * H))                              # single bf16 cast
    # Per-head score matmuls kept as a tiny static loop (no mid-axis transposes); softmax
    # runs ONCE over all heads stacked on a leading axis.
    s_list = []
    for hi in range(num_heads):
        qh = qkv_b[:, :, hi * dh:(hi + 1) * dh]
        kh = qkv_b[:, :, H + hi * dh:H + (hi + 1) * dh]
        s_list.append(jnp.einsum("bqd,bkd->bqk", qh, kh, preferred_element_type=f32))
    s_all = jnp.stack(s_list, axis=0) * scale                          # (nh, B, S, S)
    s_all = s_all - jnp.max(s_all, axis=-1, keepdims=True)
    p_all = jnp.exp(s_all)
    p_all = (p_all * pl.reciprocal(jnp.sum(p_all, axis=-1, keepdims=True),
                                   approx=True)).astype(bf16)          # single cast
    ctx_parts = []
    for hi in range(num_heads):
        vh = qkv_b[:, :, 2 * H + hi * dh:2 * H + (hi + 1) * dh]
        ctx_parts.append(jnp.einsum("bqk,bkd->bqd", p_all[hi], vh,
                                    preferred_element_type=f32))
    ctx = jnp.concatenate(ctx_parts, axis=-1)                          # (B, S, H)

    attn_out = jnp.dot(mxu(ctx.reshape(B * S, H)), wo_ref[...],
                       preferred_element_type=f32) + bo_ref[...]       # (B*S, H)
    dec_in = jnp.dot(mxu(attn_out), wd_ref[...],
                     preferred_element_type=f32) + bd_ref[...]         # (B*S, O)
    O = dec_in.shape[-1]
    dec_in = dec_in.reshape(B, S, O)

    # ---------------- Decoder LSTM stack (only last h of final layer needed) -------------
    _, h_last = lstm_stack(dec_in, dec, need_seq=False)

    # TODO(synk): nn.Dropout treated as identity (eval-mode); no stochastic masking applied.
    out = jnp.dot(mxu(h_last), fc_w_ref[...], preferred_element_type=f32) + fc_b_ref[...]
    out_ref[...] = out                                                 # single dense store


# ----------------------------------------------------------------------------
# Wrapper: one pallas_call for the whole forward pass
# ----------------------------------------------------------------------------
def model_forward(x, params, cfg):
    B = x.shape[0]
    O = cfg["out_size"]
    L = cfg["num_layers"]

    def stack_inputs(layers):
        ins = []
        for li, layer in enumerate(layers):
            if li == 0:
                ins += [layer["wih"], layer["whh"], layer["b"]]
            else:
                ins += [layer["wcat"], layer["b"]]
        return ins

    inputs = [x, params["conv_w"], params["conv_b"]]
    inputs += stack_inputs(params["enc_lstm"])
    ap = params["attn"]
    inputs += [ap["wqkv"], ap["bqkv"], ap["wo"], ap["bo"], ap["wd"], ap["bd"]]
    inputs += stack_inputs(params["dec_lstm"])
    inputs += [params["fc_w"], params["fc_b"]]

    kernel = functools.partial(fused_forward_kernel,
                               num_enc_layers=L, num_dec_layers=L,
                               num_heads=cfg["num_heads"])
    # Grid-less: weights + activations total well under 1 MiB, fits VMEM on v5e/v6e/v7x,
    # and v5e/v6e are single-TensorCore so a grid would only add ~600-cycle/step overhead.
    # If B grows, add a batch grid with dimension_semantics=("parallel",) to use both
    # TensorCores on v7x (constant index_maps on weights to keep them VMEM-resident) and
    # re-budget vmem_limit_bytes against v7x's 64 MiB physical VMEM.
    return pl.pallas_call(
        kernel,
        out_shape=jax.ShapeDtypeStruct((B, O), jnp.float32),
        in_specs=_vmem_specs(len(inputs)),
        out_specs=pl.BlockSpec(memory_space=pltpu.MemorySpace.VMEM),
        compiler_params=pltpu.CompilerParams(vmem_limit_bytes=32 * 1024 * 1024),
    )(*inputs)


# ----------------------------------------------------------------------------
# Parameter init (deterministic, PyTorch shapes, transposed for right-matmul)
# Matmul weights stored in bf16 (MXU operands), biases in f32.
# Layers > 0 of each LSTM stack store the fused [W_ih; W_hh] (2H, 4H) weight.
# ----------------------------------------------------------------------------
def init_params(key, cfg, input_channels=16, conv_filters=64):
    H, O, L = cfg["hidden_size"], cfg["out_size"], cfg["num_layers"]
    keys = iter(jax.random.split(key, 64))
    bf16 = jnp.bfloat16

    def w(shape, scale):
        return jax.random.normal(next(keys), shape, jnp.float32) * scale

    params = {}
    # Conv1d weight (F, Cin, 3) -> stacked (3*Cin, F), tap order [t-1 | t | t+1]
    conv_w_pt = w((conv_filters, input_channels, 3), 1.0 / math.sqrt(input_channels * 3))
    params["conv_w"] = jnp.concatenate(
        [jnp.transpose(conv_w_pt[:, :, kk]) for kk in range(3)], axis=0).astype(bf16)
    params["conv_b"] = w((1, conv_filters), 0.1)

    def lstm_stack_params(in_size):
        layers, din = [], in_size
        for li in range(L):
            wih = jnp.transpose(w((4 * H, din), 1.0 / math.sqrt(H)))   # (din, 4H)
            whh = jnp.transpose(w((4 * H, H), 1.0 / math.sqrt(H)))     # (H, 4H)
            bih = w((4 * H,), 0.05)
            bhh = w((4 * H,), 0.05)
            b = (bih + bhh).reshape(1, 4 * H)
            if li == 0:
                layers.append(dict(wih=wih.astype(bf16), whh=whh.astype(bf16), b=b))
            else:
                wcat = jnp.concatenate([wih, whh], axis=0)             # (2H, 4H)
                layers.append(dict(wcat=wcat.astype(bf16), b=b))
            din = H
        return layers

    params["enc_lstm"] = lstm_stack_params(conv_filters)
    params["dec_lstm"] = lstm_stack_params(O)

    in_proj_w = w((3 * H, H), 1.0 / math.sqrt(H))
    out_proj_w = w((H, H), 1.0 / math.sqrt(H))
    dense1_w = w((O, H), 1.0 / math.sqrt(H))
    params["attn"] = dict(
        wqkv=jnp.transpose(in_proj_w).astype(bf16), bqkv=w((1, 3 * H), 0.05),
        wo=jnp.transpose(out_proj_w).astype(bf16), bo=w((1, H), 0.05),
        wd=jnp.transpose(dense1_w).astype(bf16), bd=w((1, O), 0.05))

    fc_w = w((O, H), 1.0 / math.sqrt(H))
    params["fc_w"] = jnp.transpose(fc_w).astype(bf16)
    params["fc_b"] = w((1, O), 0.05)
    return params


if __name__ == "__main__":
    cfg = dict(hidden_size=32, num_layers=2, num_heads=4, out_size=16, dropout_rate=0.1)
    key = jax.random.PRNGKey(0)
    pkey, xkey = jax.random.split(key)
    params = init_params(pkey, cfg)

    B, T, Cin = 2, 8, 16
    x = jax.random.normal(xkey, (B, T, Cin), jnp.float32)

    forward = jax.jit(lambda xx, pp: model_forward(xx, pp, cfg))
    out = jax.block_until_ready(forward(x, params))

    assert out.shape == (B, cfg["out_size"]), out.shape
    assert bool(jnp.all(jnp.isfinite(out)))
    print("KERNEL_OK")
</pallas_src>

<mosaic_0001>
module attributes {stable_mosaic.version = 11 : i64} {
  func.func @fused_forward_kernel(%arg0: memref<2x8x16xf32, #tpu.memory_space<vmem>>, %arg1: memref<48x64xbf16, #tpu.memory_space<vmem>>, %arg2: memref<1x64xf32, #tpu.memory_space<vmem>>, %arg3: memref<64x128xbf16, #tpu.memory_space<vmem>>, %arg4: memref<32x128xbf16, #tpu.memory_space<vmem>>, %arg5: memref<1x128xf32, #tpu.memory_space<vmem>>, %arg6: memref<64x128xbf16, #tpu.memory_space<vmem>>, %arg7: memref<1x128xf32, #tpu.memory_space<vmem>>, %arg8: memref<32x96xbf16, #tpu.memory_space<vmem>>, %arg9: memref<1x96xf32, #tpu.memory_space<vmem>>, %arg10: memref<32x32xbf16, #tpu.memory_space<vmem>>, %arg11: memref<1x32xf32, #tpu.memory_space<vmem>>, %arg12: memref<32x16xbf16, #tpu.memory_space<vmem>>, %arg13: memref<1x16xf32, #tpu.memory_space<vmem>>, %arg14: memref<16x128xbf16, #tpu.memory_space<vmem>>, %arg15: memref<32x128xbf16, #tpu.memory_space<vmem>>, %arg16: memref<1x128xf32, #tpu.memory_space<vmem>>, %arg17: memref<64x128xbf16, #tpu.memory_space<vmem>>, %arg18: memref<1x128xf32, #tpu.memory_space<vmem>>, %arg19: memref<32x16xbf16, #tpu.memory_space<vmem>>, %arg20: memref<1x16xf32, #tpu.memory_space<vmem>>, %arg21: memref<2x16xf32, #tpu.memory_space<vmem>>) attributes {dimension_semantics = [], scalar_prefetch = 0 : i64, scratch_operands = 0 : i64, tpu.core_type = #tpu.core_type<tc>} {
    %c0 = arith.constant 0 : index
    %c0_0 = arith.constant 0 : index
    %c0_1 = arith.constant 0 : index
    %0 = vector.load %arg0[%c0, %c0_0, %c0_1] : memref<2x8x16xf32, #tpu.memory_space<vmem>>, vector<2x8x16xf32>
    %cst = arith.constant 0.000000e+00 : f32
    %1 = vector.broadcast %cst : f32 to vector<2x1x16xf32>
    %2 = tpu.concatenate %1, %0, %1 in 1 : vector<2x1x16xf32>, vector<2x8x16xf32>, vector<2x1x16xf32> -> vector<2x10x16xf32>
    %3 = vector.extract_strided_slice %2 {offsets = [0, 0, 0], sizes = [2, 8, 16], strides = [1, 1, 1]} : vector<2x10x16xf32> to vector<2x8x16xf32>
    %4 = vector.extract_strided_slice %2 {offsets = [0, 1, 0], sizes = [2, 8, 16], strides = [1, 1, 1]} : vector<2x10x16xf32> to vector<2x8x16xf32>
    %5 = vector.extract_strided_slice %2 {offsets = [0, 2, 0], sizes = [2, 8, 16], strides = [1, 1, 1]} : vector<2x10x16xf32> to vector<2x8x16xf32>
    %6 = tpu.concatenate %3, %4, %5 in 2 : vector<2x8x16xf32>, vector<2x8x16xf32>, vector<2x8x16xf32> -> vector<2x8x48xf32>
    %7 = vector.shape_cast %6 : vector<2x8x48xf32> to vector<16x48xf32>
    %8 = arith.truncf %7 : vector<16x48xf32> to vector<16x48xbf16>
    %c0_2 = arith.constant 0 : index
    %c0_3 = arith.constant 0 : index
    %9 = vector.load %arg1[%c0_2, %c0_3] : memref<48x64xbf16, #tpu.memory_space<vmem>>, vector<48x64xbf16>
    %cst_4 = arith.constant dense<0.000000e+00> : vector<16x64xf32>
    %10 = tpu.matmul %8, %9, %cst_4 {dimension_numbers = #tpu.dot_dimension_numbers<[1], [0], [0], [1], [0, 0, 1, 1], [], []>} : vector<16x48xbf16>, vector<48x64xbf16>, vector<16x64xf32> -> vector<16x64xf32>
    %c0_5 = arith.constant 0 : index
    %c0_6 = arith.constant 0 : index
    %11 = vector.load %arg2[%c0_5, %c0_6] : memref<1x64xf32, #tpu.memory_space<vmem>>, vector<1x64xf32>
    %12 = vector.broadcast %11 : vector<1x64xf32> to vector<16x64xf32>
    %13 = arith.addf %10, %12 : vector<16x64xf32>
    %cst_7 = arith.constant 0.000000e+00 : f32
    %14 = vector.broadcast %cst_7 : f32 to vector<16x64xf32>
    %15 = arith.maximumf %13, %14 : vector<16x64xf32>
    %16 = vector.shape_cast %15 : vector<16x64xf32> to vector<2x8x64xf32>
    %17 = vector.shape_cast %16 : vector<2x8x64xf32> to vector<2x4x2x64xf32>
    %18 = vector.extract_strided_slice %17 {offsets = [0, 0, 0, 0], sizes = [2, 4, 1, 64], strides = [1, 1, 1, 1]} : vector<2x4x2x64xf32> to vector<2x4x1x64xf32>
    %19 = vector.shape_cast %18 : vector<2x4x1x64xf32> to vector<2x4x64xf32>
    %20 = vector.extract_strided_slice %17 {offsets = [0, 0, 1, 0], sizes = [2, 4, 1, 64], strides = [1, 1, 1, 1]} : vector<2x4x2x64xf32> to vector<2x4x1x64xf32>
    %21 = vector.shape_cast %20 : vector<2x4x1x64xf32> to vector<2x4x64xf32>
    %22 = arith.maximumf %19, %21 : vector<2x4x64xf32>
    %23 = vector.shape_cast %22 : vector<2x4x64xf32> to vector<8x64xf32>
    %24 = arith.truncf %23 : vector<8x64xf32> to vector<8x64xbf16>
    %c0_8 = arith.constant 0 : index
    %c0_9 = arith.constant 0 : index
    %25 = vector.load %arg3[%c0_8, %c0_9] : memref<64x128xbf16, #tpu.memory_space<vmem>>, vector<64x128xbf16>
    %cst_10 = arith.constant dense<0.000000e+00> : vector<8x128xf32>
    %26 = tpu.matmul %24, %25, %cst_10 {dimension_numbers = #tpu.dot_dimension_numbers<[1], [0], [0], [1], [0, 0, 1, 1], [], []>} : vector<8x64xbf16>, vector<64x128xbf16>, vector<8x128xf32> -> vector<8x128xf32>
    %c0_11 = arith.constant 0 : index
    %c0_12 = arith.constant 0 : index
    %27 = vector.load %arg5[%c0_11, %c0_12] : memref<1x128xf32, #tpu.memory_space<vmem>>, vector<1x128xf32>
    %28 = vector.broadcast %27 : vector<1x128xf32> to vector<8x128xf32>
    %29 = arith.addf %26, %28 : vector<8x128xf32>
    %30 = vector.shape_cast %29 : vector<8x128xf32> to vector<2x4x128xf32>
    %c0_13 = arith.constant 0 : index
    %c0_14 = arith.constant 0 : index
    %31 = vector.load %arg4[%c0_13, %c0_14] : memref<32x128xbf16, #tpu.memory_space<vmem>>, vector<32x128xbf16>
    %c0_15 = arith.constant 0 : index
    %c0_16 = arith.constant 0 : index
    %32 = vector.load %arg6[%c0_15, %c0_16] : memref<64x128xbf16, #tpu.memory_space<vmem>>, vector<64x128xbf16>
    %c0_17 = arith.constant 0 : index
    %c0_18 = arith.constant 0 : index
    %33 = vector.load %arg7[%c0_17, %c0_18] : memref<1x128xf32, #tpu.memory_space<vmem>>, vector<1x128xf32>
    %cst_19 = arith.constant 0.000000e+00 : f32
    %34 = vector.broadcast %cst_19 : f32 to vector<2x32xf32>
    %cst_20 = arith.constant 0.000000e+00 : f32
    %35 = vector.broadcast %cst_20 : f32 to vector<2x32xf32>
    %cst_21 = arith.constant 0.000000e+00 : f32
    %36 = vector.broadcast %cst_21 : f32 to vector<2x32xf32>
    %cst_22 = arith.constant 0.000000e+00 : f32
    %37 = vector.broadcast %cst_22 : f32 to vector<2x32xf32>
    %38 = vector.extract_strided_slice %30 {offsets = [0, 0, 0], sizes = [2, 1, 128], strides = [1, 1, 1]} : vector<2x4x128xf32> to vector<2x1x128xf32>
    %39 = vector.shape_cast %38 : vector<2x1x128xf32> to vector<2x128xf32>
    %40 = arith.truncf %34 : vector<2x32xf32> to vector<2x32xbf16>
    %cst_23 = arith.constant dense<0.000000e+00> : vector<2x128xf32>
    %41 = tpu.matmul %40, %31, %cst_23 {dimension_numbers = #tpu.dot_dimension_numbers<[1], [0], [0], [1], [0, 0, 1, 1], [], []>} : vector<2x32xbf16>, vector<32x128xbf16>, vector<2x128xf32> -> vector<2x128xf32>
    %42 = arith.addf %39, %41 : vector<2x128xf32>
    %43 = arith.negf %42 : vector<2x128xf32>
    %44 = math.exp %43 : vector<2x128xf32>
    %cst_24 = arith.constant 1.000000e+00 : f32
    %45 = vector.broadcast %cst_24 : f32 to vector<2x128xf32>
    %46 = arith.addf %45, %44 : vector<2x128xf32>
    %47 = arith.divf %45, %46 : vector<2x128xf32>
    %48 = math.tanh %42 : vector<2x128xf32>
    %49 = vector.extract_strided_slice %47 {offsets = [0, 0], sizes = [2, 32], strides = [1, 1]} : vector<2x128xf32> to vector<2x32xf32>
    %50 = vector.extract_strided_slice %47 {offsets = [0, 32], sizes = [2, 32], strides = [1, 1]} : vector<2x128xf32> to vector<2x32xf32>
    %51 = vector.extract_strided_slice %48 {offsets = [0, 64], sizes = [2, 32], strides = [1, 1]} : vector<2x128xf32> to vector<2x32xf32>
    %52 = vector.extract_strided_slice %47 {offsets = [0, 96], sizes = [2, 32], strides = [1, 1]} : vector<2x128xf32> to vector<2x32xf32>
    %53 = arith.mulf %50, %36 : vector<2x32xf32>
    %54 = arith.mulf %49, %51 : vector<2x32xf32>
    %55 = arith.addf %53, %54 : vector<2x32xf32>
    %56 = math.tanh %55 : vector<2x32xf32>
    %57 = arith.mulf %52, %56 : vector<2x32xf32>
    %58 = tpu.concatenate %57, %35 in 1 : vector<2x32xf32>, vector<2x32xf32> -> vector<2x64xf32>
    %59 = arith.truncf %58 : vector<2x64xf32> to vector<2x64xbf16>
    %cst_25 = arith.constant dense<0.000000e+00> : vector<2x128xf32>
    %60 = tpu.matmul %59, %32, %cst_25 {dimension_numbers = #tpu.dot_dimension_numbers<[1], [0], [0], [1], [0, 0, 1, 1], [], []>} : vector<2x64xbf16>, vector<64x128xbf16>, vector<2x128xf32> -> vector<2x128xf32>
    %61 = vector.broadcast %33 : vector<1x128xf32> to vector<2x128xf32>
    %62 = arith.addf %60, %61 : vector<2x128xf32>
    %63 = arith.negf %62 : vector<2x128xf32>
    %64 = math.exp %63 : vector<2x128xf32>
    %cst_26 = arith.constant 1.000000e+00 : f32
    %65 = vector.broadcast %cst_26 : f32 to vector<2x128xf32>
    %66 = arith.addf %65, %64 : vector<2x128xf32>
    %67 = arith.divf %65, %66 : vector<2x128xf32>
    %68 = math.tanh %62 : vector<2x128xf32>
    %69 = vector.extract_strided_slice %67 {offsets = [0, 0], sizes = [2, 32], strides = [1, 1]} : vector<2x128xf32> to vector<2x32xf32>
    %70 = vector.extract_strided_slice %67 {offsets = [0, 32], sizes = [2, 32], strides = [1, 1]} : vector<2x128xf32> to vector<2x32xf32>
    %71 = vector.extract_strided_slice %68 {offsets = [0, 64], sizes = [2, 32], strides = [1, 1]} : vector<2x128xf32> to vector<2x32xf32>
    %72 = vector.extract_strided_slice %67 {offsets = [0, 96], sizes = [2, 32], strides = [1, 1]} : vector<2x128xf32> to vector<2x32xf32>
    %73 = arith.mulf %70, %37 : vector<2x32xf32>
    %74 = arith.mulf %69, %71 : vector<2x32xf32>
    %75 = arith.addf %73, %74 : vector<2x32xf32>
    %76 = math.tanh %75 : vector<2x32xf32>
    %77 = arith.mulf %72, %76 : vector<2x32xf32>
    %78 = vector.shape_cast %77 : vector<2x32xf32> to vector<2x1x32xf32>
    %79 = vector.extract_strided_slice %30 {offsets = [0, 1, 0], sizes = [2, 1, 128], strides = [1, 1, 1]} : vector<2x4x128xf32> to vector<2x1x128xf32>
    %80 = vector.shape_cast %79 : vector<2x1x128xf32> to vector<2x128xf32>
    %81 = arith.truncf %57 : vector<2x32xf32> to vector<2x32xbf16>
    %cst_27 = arith.constant dense<0.000000e+00> : vector<2x128xf32>
    %82 = tpu.matmul %81, %31, %cst_27 {dimension_numbers = #tpu.dot_dimension_numbers<[1], [0], [0], [1], [0, 0, 1, 1], [], []>} : vector<2x32xbf16>, vector<32x128xbf16>, vector<2x128xf32> -> vector<2x128xf32>
    %83 = arith.addf %80, %82 : vector<2x128xf32>
    %84 = arith.negf %83 : vector<2x128xf32>
    %85 = math.exp %84 : vector<2x128xf32>
    %cst_28 = arith.constant 1.000000e+00 : f32
    %86 = vector.broadcast %cst_28 : f32 to vector<2x128xf32>
    %87 = arith.addf %86, %85 : vector<2x128xf32>
    %88 = arith.divf %86, %87 : vector<2x128xf32>
    %89 = math.tanh %83 : vector<2x128xf32>
    %90 = vector.extract_strided_slice %88 {offsets = [0, 0], sizes = [2, 32], strides = [1, 1]} : vector<2x128xf32> to vector<2x32xf32>
    %91 = vector.extract_strided_slice %88 {offsets = [0, 32], sizes = [2, 32], strides = [1, 1]} : vector<2x128xf32> to vector<2x32xf32>
    %92 = vector.extract_strided_slice %89 {offsets = [0, 64], sizes = [2, 32], strides = [1, 1]} : vector<2x128xf32> to vector<2x32xf32>
    %93 = vector.extract_strided_slice %88 {offsets = [0, 96], sizes = [2, 32], strides = [1, 1]} : vector<2x128xf32> to vector<2x32xf32>
    %94 = arith.mulf %91, %55 : vector<2x32xf32>
    %95 = arith.mulf %90, %92 : vector<2x32xf32>
    %96 = arith.addf %94, %95 : vector<2x32xf32>
    %97 = math.tanh %96 : vector<2x32xf32>
    %98 = arith.mulf %93, %97 : vector<2x32xf32>
    %99 = tpu.concatenate %98, %77 in 1 : vector<2x32xf32>, vector<2x32xf32> -> vector<2x64xf32>
    %100 = arith.truncf %99 : vector<2x64xf32> to vector<2x64xbf16>
    %cst_29 = arith.constant dense<0.000000e+00> : vector<2x128xf32>
    %101 = tpu.matmul %100, %32, %cst_29 {dimension_numbers = #tpu.dot_dimension_numbers<[1], [0], [0], [1], [0, 0, 1, 1], [], []>} : vector<2x64xbf16>, vector<64x128xbf16>, vector<2x128xf32> -> vector<2x128xf32>
    %102 = vector.broadcast %33 : vector<1x128xf32> to vector<2x128xf32>
    %103 = arith.addf %101, %102 : vector<2x128xf32>
    %104 = arith.negf %103 : vector<2x128xf32>
    %105 = math.exp %104 : vector<2x128xf32>
    %cst_30 = arith.constant 1.000000e+00 : f32
    %106 = vector.broadcast %cst_30 : f32 to vector<2x128xf32>
    %107 = arith.addf %106, %105 : vector<2x128xf32>
    %108 = arith.divf %106, %107 : vector<2x128xf32>
    %109 = math.tanh %103 : vector<2x128xf32>
    %110 = vector.extract_strided_slice %108 {offsets = [0, 0], sizes = [2, 32], strides = [1, 1]} : vector<2x128xf32> to vector<2x32xf32>
    %111 = vector.extract_strided_slice %108 {offsets = [0, 32], sizes = [2, 32], strides = [1, 1]} : vector<2x128xf32> to vector<2x32xf32>
    %112 = vector.extract_strided_slice %109 {offsets = [0, 64], sizes = [2, 32], strides = [1, 1]} : vector<2x128xf32> to vector<2x32xf32>
    %113 = vector.extract_strided_slice %108 {offsets = [0, 96], sizes = [2, 32], strides = [1, 1]} : vector<2x128xf32> to vector<2x32xf32>
    %114 = arith.mulf %111, %75 : vector<2x32xf32>
    %115 = arith.mulf %110, %112 : vector<2x32xf32>
    %116 = arith.addf %114, %115 : vector<2x32xf32>
    %117 = math.tanh %116 : vector<2x32xf32>
    %118 = arith.mulf %113, %117 : vector<2x32xf32>
    %119 = vector.shape_cast %118 : vector<2x32xf32> to vector<2x1x32xf32>
    %120 = vector.extract_strided_slice %30 {offsets = [0, 2, 0], sizes = [2, 1, 128], strides = [1, 1, 1]} : vector<2x4x128xf32> to vector<2x1x128xf32>
    %121 = vector.shape_cast %120 : vector<2x1x128xf32> to vector<2x128xf32>
    %122 = arith.truncf %98 : vector<2x32xf32> to vector<2x32xbf16>
    %cst_31 = arith.constant dense<0.000000e+00> : vector<2x128xf32>
    %123 = tpu.matmul %122, %31, %cst_31 {dimension_numbers = #tpu.dot_dimension_numbers<[1], [0], [0], [1], [0, 0, 1, 1], [], []>} : vector<2x32xbf16>, vector<32x128xbf16>, vector<2x128xf32> -> vector<2x128xf32>
    %124 = arith.addf %121, %123 : vector<2x128xf32>
    %125 = arith.negf %124 : vector<2x128xf32>
    %126 = math.exp %125 : vector<2x128xf32>
    %cst_32 = arith.constant 1.000000e+00 : f32
    %127 = vector.broadcast %cst_32 : f32 to vector<2x128xf32>
    %128 = arith.addf %127, %126 : vector<2x128xf32>
    %129 = arith.divf %127, %128 : vector<2x128xf32>
    %130 = math.tanh %124 : vector<2x128xf32>
    %131 = vector.extract_strided_slice %129 {offsets = [0, 0], sizes = [2, 32], strides = [1, 1]} : vector<2x128xf32> to vector<2x32xf32>
    %132 = vector.extract_strided_slice %129 {offsets = [0, 32], sizes = [2, 32], strides = [1, 1]} : vector<2x128xf32> to vector<2x32xf32>
    %133 = vector.extract_strided_slice %130 {offsets = [0, 64], sizes = [2, 32], strides = [1, 1]} : vector<2x128xf32> to vector<2x32xf32>
    %134 = vector.extract_strided_slice %129 {offsets = [0, 96], sizes = [2, 32], strides = [1, 1]} : vector<2x128xf32> to vector<2x32xf32>
    %135 = arith.mulf %132, %96 : vector<2x32xf32>
    %136 = arith.mulf %131, %133 : vector<2x32xf32>
    %137 = arith.addf %135, %136 : vector<2x32xf32>
    %138 = math.tanh %137 : vector<2x32xf32>
    %139 = arith.mulf %134, %138 : vector<2x32xf32>
    %140 = tpu.concatenate %139, %118 in 1 : vector<2x32xf32>, vector<2x32xf32> -> vector<2x64xf32>
    %141 = arith.truncf %140 : vector<2x64xf32> to vector<2x64xbf16>
    %cst_33 = arith.constant dense<0.000000e+00> : vector<2x128xf32>
    %142 = tpu.matmul %141, %32, %cst_33 {dimension_numbers = #tpu.dot_dimension_numbers<[1], [0], [0], [1], [0, 0, 1, 1], [], []>} : vector<2x64xbf16>, vector<64x128xbf16>, vector<2x128xf32> -> vector<2x128xf32>
    %143 = vector.broadcast %33 : vector<1x128xf32> to vector<2x128xf32>
    %144 = arith.addf %142, %143 : vector<2x128xf32>
    %145 = arith.negf %144 : vector<2x128xf32>
    %146 = math.exp %145 : vector<2x128xf32>
    %cst_34 = arith.constant 1.000000e+00 : f32
    %147 = vector.broadcast %cst_34 : f32 to vector<2x128xf32>
    %148 = arith.addf %147, %146 : vector<2x128xf32>
    %149 = arith.divf %147, %148 : vector<2x128xf32>
    %150 = math.tanh %144 : vector<2x128xf32>
    %151 = vector.extract_strided_slice %149 {offsets = [0, 0], sizes = [2, 32], strides = [1, 1]} : vector<2x128xf32> to vector<2x32xf32>
    %152 = vector.extract_strided_slice %149 {offsets = [0, 32], sizes = [2, 32], strides = [1, 1]} : vector<2x128xf32> to vector<2x32xf32>
    %153 = vector.extract_strided_slice %150 {offsets = [0, 64], sizes = [2, 32], strides = [1, 1]} : vector<2x128xf32> to vector<2x32xf32>
    %154 = vector.extract_strided_slice %149 {offsets = [0, 96], sizes = [2, 32], strides = [1, 1]} : vector<2x128xf32> to vector<2x32xf32>
    %155 = arith.mulf %152, %116 : vector<2x32xf32>
    %156 = arith.mulf %151, %153 : vector<2x32xf32>
    %157 = arith.addf %155, %156 : vector<2x32xf32>
    %158 = math.tanh %157 : vector<2x32xf32>
    %159 = arith.mulf %154, %158 : vector<2x32xf32>
    %160 = vector.shape_cast %159 : vector<2x32xf32> to vector<2x1x32xf32>
    %161 = vector.extract_strided_slice %30 {offsets = [0, 3, 0], sizes = [2, 1, 128], strides = [1, 1, 1]} : vector<2x4x128xf32> to vector<2x1x128xf32>
    %162 = vector.shape_cast %161 : vector<2x1x128xf32> to vector<2x128xf32>
    %163 = arith.truncf %139 : vector<2x32xf32> to vector<2x32xbf16>
    %cst_35 = arith.constant dense<0.000000e+00> : vector<2x128xf32>
    %164 = tpu.matmul %163, %31, %cst_35 {dimension_numbers = #tpu.dot_dimension_numbers<[1], [0], [0], [1], [0, 0, 1, 1], [], []>} : vector<2x32xbf16>, vector<32x128xbf16>, vector<2x128xf32> -> vector<2x128xf32>
    %165 = arith.addf %162, %164 : vector<2x128xf32>
    %166 = arith.negf %165 : vector<2x128xf32>
    %167 = math.exp %166 : vector<2x128xf32>
    %cst_36 = arith.constant 1.000000e+00 : f32
    %168 = vector.broadcast %cst_36 : f32 to vector<2x128xf32>
    %169 = arith.addf %168, %167 : vector<2x128xf32>
    %170 = arith.divf %168, %169 : vector<2x128xf32>
    %171 = math.tanh %165 : vector<2x128xf32>
    %172 = vector.extract_strided_slice %170 {offsets = [0, 0], sizes = [2, 32], strides = [1, 1]} : vector<2x128xf32> to vector<2x32xf32>
    %173 = vector.extract_strided_slice %170 {offsets = [0, 32], sizes = [2, 32], strides = [1, 1]} : vector<2x128xf32> to vector<2x32xf32>
    %174 = vector.extract_strided_slice %171 {offsets = [0, 64], sizes = [2, 32], strides = [1, 1]} : vector<2x128xf32> to vector<2x32xf32>
    %175 = vector.extract_strided_slice %170 {offsets = [0, 96], sizes = [2, 32], strides = [1, 1]} : vector<2x128xf32> to vector<2x32xf32>
    %176 = arith.mulf %173, %137 : vector<2x32xf32>
    %177 = arith.mulf %172, %174 : vector<2x32xf32>
    %178 = arith.addf %176, %177 : vector<2x32xf32>
    %179 = math.tanh %178 : vector<2x32xf32>
    %180 = arith.mulf %175, %179 : vector<2x32xf32>
    %181 = tpu.concatenate %180, %159 in 1 : vector<2x32xf32>, vector<2x32xf32> -> vector<2x64xf32>
    %182 = arith.truncf %181 : vector<2x64xf32> to vector<2x64xbf16>
    %cst_37 = arith.constant dense<0.000000e+00> : vector<2x128xf32>
    %183 = tpu.matmul %182, %32, %cst_37 {dimension_numbers = #tpu.dot_dimension_numbers<[1], [0], [0], [1], [0, 0, 1, 1], [], []>} : vector<2x64xbf16>, vector<64x128xbf16>, vector<2x128xf32> -> vector<2x128xf32>
    %184 = vector.broadcast %33 : vector<1x128xf32> to vector<2x128xf32>
    %185 = arith.addf %183, %184 : vector<2x128xf32>
    %186 = arith.negf %185 : vector<2x128xf32>
    %187 = math.exp %186 : vector<2x128xf32>
    %cst_38 = arith.constant 1.000000e+00 : f32
    %188 = vector.broadcast %cst_38 : f32 to vector<2x128xf32>
    %189 = arith.addf %188, %187 : vector<2x128xf32>
    %190 = arith.divf %188, %189 : vector<2x128xf32>
    %191 = math.tanh %185 : vector<2x128xf32>
    %192 = vector.extract_strided_slice %190 {offsets = [0, 0], sizes = [2, 32], strides = [1, 1]} : vector<2x128xf32> to vector<2x32xf32>
    %193 = vector.extract_strided_slice %190 {offsets = [0, 32], sizes = [2, 32], strides = [1, 1]} : vector<2x128xf32> to vector<2x32xf32>
    %194 = vector.extract_strided_slice %191 {offsets = [0, 64], sizes = [2, 32], strides = [1, 1]} : vector<2x128xf32> to vector<2x32xf32>
    %195 = vector.extract_strided_slice %190 {offsets = [0, 96], sizes = [2, 32], strides = [1, 1]} : vector<2x128xf32> to vector<2x32xf32>
    %196 = arith.mulf %193, %157 : vector<2x32xf32>
    %197 = arith.mulf %192, %194 : vector<2x32xf32>
    %198 = arith.addf %196, %197 : vector<2x32xf32>
    %199 = math.tanh %198 : vector<2x32xf32>
    %200 = arith.mulf %195, %199 : vector<2x32xf32>
    %201 = vector.shape_cast %200 : vector<2x32xf32> to vector<2x1x32xf32>
    %202 = tpu.concatenate %78, %119, %160, %201 in 1 : vector<2x1x32xf32>, vector<2x1x32xf32>, vector<2x1x32xf32>, vector<2x1x32xf32> -> vector<2x4x32xf32>
    %203 = vector.shape_cast %202 : vector<2x4x32xf32> to vector<8x32xf32>
    %204 = arith.truncf %203 : vector<8x32xf32> to vector<8x32xbf16>
    %c0_39 = arith.constant 0 : index
    %c0_40 = arith.constant 0 : index
    %205 = vector.load %arg8[%c0_39, %c0_40] : memref<32x96xbf16, #tpu.memory_space<vmem>>, vector<32x96xbf16>
    %cst_41 = arith.constant dense<0.000000e+00> : vector<8x96xf32>
    %206 = tpu.matmul %204, %205, %cst_41 {dimension_numbers = #tpu.dot_dimension_numbers<[1], [0], [0], [1], [0, 0, 1, 1], [], []>} : vector<8x32xbf16>, vector<32x96xbf16>, vector<8x96xf32> -> vector<8x96xf32>
    %c0_42 = arith.constant 0 : index
    %c0_43 = arith.constant 0 : index
    %207 = vector.load %arg9[%c0_42, %c0_43] : memref<1x96xf32, #tpu.memory_space<vmem>>, vector<1x96xf32>
    %208 = vector.broadcast %207 : vector<1x96xf32> to vector<8x96xf32>
    %209 = arith.addf %206, %208 : vector<8x96xf32>
    %210 = vector.shape_cast %209 : vector<8x96xf32> to vector<2x4x96xf32>
    %211 = arith.truncf %210 : vector<2x4x96xf32> to vector<2x4x96xbf16>
    %212 = vector.extract_strided_slice %211 {offsets = [0, 0, 0], sizes = [2, 4, 8], strides = [1, 1, 1]} : vector<2x4x96xbf16> to vector<2x4x8xbf16>
    %213 = vector.extract_strided_slice %211 {offsets = [0, 0, 32], sizes = [2, 4, 8], strides = [1, 1, 1]} : vector<2x4x96xbf16> to vector<2x4x8xbf16>
    "tpu.trace_start"() <{level = 10 : i32, message = "bqd,bkd->bqk"}> : () -> ()
    %cst_44 = arith.constant dense<0.000000e+00> : vector<2x4x4xf32>
    %214 = tpu.matmul %212, %213, %cst_44 {dimension_numbers = #tpu.dot_dimension_numbers<[2], [2], [1], [1], [0, 0, 0, 1, 1, 1], [0], [0]>} : vector<2x4x8xbf16>, vector<2x4x8xbf16>, vector<2x4x4xf32> -> vector<2x4x4xf32>
    "tpu.trace_stop"() : () -> ()
    %215 = vector.extract_strided_slice %211 {offsets = [0, 0, 8], sizes = [2, 4, 8], strides = [1, 1, 1]} : vector<2x4x96xbf16> to vector<2x4x8xbf16>
    %216 = vector.extract_strided_slice %211 {offsets = [0, 0, 40], sizes = [2, 4, 8], strides = [1, 1, 1]} : vector<2x4x96xbf16> to vector<2x4x8xbf16>
    "tpu.trace_start"() <{level = 10 : i32, message = "bqd,bkd->bqk"}> : () -> ()
    %cst_45 = arith.constant dense<0.000000e+00> : vector<2x4x4xf32>
    %217 = tpu.matmul %215, %216, %cst_45 {dimension_numbers = #tpu.dot_dimension_numbers<[2], [2], [1], [1], [0, 0, 0, 1, 1, 1], [0], [0]>} : vector<2x4x8xbf16>, vector<2x4x8xbf16>, vector<2x4x4xf32> -> vector<2x4x4xf32>
    "tpu.trace_stop"() : () -> ()
    %218 = vector.extract_strided_slice %211 {offsets = [0, 0, 16], sizes = [2, 4, 8], strides = [1, 1, 1]} : vector<2x4x96xbf16> to vector<2x4x8xbf16>
    %219 = vector.extract_strided_slice %211 {offsets = [0, 0, 48], sizes = [2, 4, 8], strides = [1, 1, 1]} : vector<2x4x96xbf16> to vector<2x4x8xbf16>
    "tpu.trace_start"() <{level = 10 : i32, message = "bqd,bkd->bqk"}> : () -> ()
    %cst_46 = arith.constant dense<0.000000e+00> : vector<2x4x4xf32>
    %220 = tpu.matmul %218, %219, %cst_46 {dimension_numbers = #tpu.dot_dimension_numbers<[2], [2], [1], [1], [0, 0, 0, 1, 1, 1], [0], [0]>} : vector<2x4x8xbf16>, vector<2x4x8xbf16>, vector<2x4x4xf32> -> vector<2x4x4xf32>
    "tpu.trace_stop"() : () -> ()
    %221 = vector.extract_strided_slice %211 {offsets = [0, 0, 24], sizes = [2, 4, 8], strides = [1, 1, 1]} : vector<2x4x96xbf16> to vector<2x4x8xbf16>
    %222 = vector.extract_strided_slice %211 {offsets = [0, 0, 56], sizes = [2, 4, 8], strides = [1, 1, 1]} : vector<2x4x96xbf16> to vector<2x4x8xbf16>
    "tpu.trace_start"() <{level = 10 : i32, message = "bqd,bkd->bqk"}> : () -> ()
    %cst_47 = arith.constant dense<0.000000e+00> : vector<2x4x4xf32>
    %223 = tpu.matmul %221, %222, %cst_47 {dimension_numbers = #tpu.dot_dimension_numbers<[2], [2], [1], [1], [0, 0, 0, 1, 1, 1], [0], [0]>} : vector<2x4x8xbf16>, vector<2x4x8xbf16>, vector<2x4x4xf32> -> vector<2x4x4xf32>
    "tpu.trace_stop"() : () -> ()
    %224 = vector.shape_cast %214 : vector<2x4x4xf32> to vector<1x2x4x4xf32>
    %225 = vector.shape_cast %217 : vector<2x4x4xf32> to vector<1x2x4x4xf32>
    %226 = vector.shape_cast %220 : vector<2x4x4xf32> to vector<1x2x4x4xf32>
    %227 = vector.shape_cast %223 : vector<2x4x4xf32> to vector<1x2x4x4xf32>
    %228 = tpu.concatenate %224, %225, %226, %227 in 0 : vector<1x2x4x4xf32>, vector<1x2x4x4xf32>, vector<1x2x4x4xf32>, vector<1x2x4x4xf32> -> vector<4x2x4x4xf32>
    %cst_48 = arith.constant 0.353553385 : f32
    %229 = vector.broadcast %cst_48 : f32 to vector<4x2x4x4xf32>
    %230 = arith.mulf %228, %229 : vector<4x2x4x4xf32>
    %cst_49 = arith.constant dense<0xFF800000> : vector<4x2x4xf32>
    %231 = vector.multi_reduction <maximumf>, %230, %cst_49 [3] : vector<4x2x4x4xf32> to vector<4x2x4xf32>
    %232 = vector.shape_cast %231 : vector<4x2x4xf32> to vector<4x2x4x1xf32>
    %233 = vector.broadcast %232 : vector<4x2x4x1xf32> to vector<4x2x4x4xf32>
    %234 = arith.subf %230, %233 : vector<4x2x4x4xf32>
    %235 = math.exp %234 : vector<4x2x4x4xf32>
    %cst_50 = arith.constant dense<0.000000e+00> : vector<4x2x4xf32>
    %236 = vector.multi_reduction <add>, %235, %cst_50 [3] : vector<4x2x4x4xf32> to vector<4x2x4xf32>
    %237 = vector.shape_cast %236 : vector<4x2x4xf32> to vector<4x2x4x1xf32>
    %238 = tpu.reciprocal %237 {approx = true} : vector<4x2x4x1xf32> -> vector<4x2x4x1xf32>
    %239 = vector.broadcast %238 : vector<4x2x4x1xf32> to vector<4x2x4x4xf32>
    %240 = arith.mulf %235, %239 : vector<4x2x4x4xf32>
    %241 = arith.truncf %240 : vector<4x2x4x4xf32> to vector<4x2x4x4xbf16>
    %242 = vector.extract_strided_slice %211 {offsets = [0, 0, 64], sizes = [2, 4, 8], strides = [1, 1, 1]} : vector<2x4x96xbf16> to vector<2x4x8xbf16>
    %243 = vector.extract_strided_slice %241 {offsets = [0, 0, 0, 0], sizes = [1, 2, 4, 4], strides = [1, 1, 1, 1]} : vector<4x2x4x4xbf16> to vector<1x2x4x4xbf16>
    %244 = vector.shape_cast %243 : vector<1x2x4x4xbf16> to vector<2x4x4xbf16>
    "tpu.trace_start"() <{level = 10 : i32, message = "bqk,bkd->bqd"}> : () -> ()
    %cst_51 = arith.constant dense<0.000000e+00> : vector<2x4x8xf32>
    %245 = tpu.matmul %244, %242, %cst_51 {dimension_numbers = #tpu.dot_dimension_numbers<[2], [1], [1], [2], [0, 0, 0, 1, 1, 2], [0], [0]>} : vector<2x4x4xbf16>, vector<2x4x8xbf16>, vector<2x4x8xf32> -> vector<2x4x8xf32>
    "tpu.trace_stop"() : () -> ()
    %246 = vector.extract_strided_slice %211 {offsets = [0, 0, 72], sizes = [2, 4, 8], strides = [1, 1, 1]} : vector<2x4x96xbf16> to vector<2x4x8xbf16>
    %247 = vector.extract_strided_slice %241 {offsets = [1, 0, 0, 0], sizes = [1, 2, 4, 4], strides = [1, 1, 1, 1]} : vector<4x2x4x4xbf16> to vector<1x2x4x4xbf16>
    %248 = vector.shape_cast %247 : vector<1x2x4x4xbf16> to vector<2x4x4xbf16>
    "tpu.trace_start"() <{level = 10 : i32, message = "bqk,bkd->bqd"}> : () -> ()
    %cst_52 = arith.constant dense<0.000000e+00> : vector<2x4x8xf32>
    %249 = tpu.matmul %248, %246, %cst_52 {dimension_numbers = #tpu.dot_dimension_numbers<[2], [1], [1], [2], [0, 0, 0, 1, 1, 2], [0], [0]>} : vector<2x4x4xbf16>, vector<2x4x8xbf16>, vector<2x4x8xf32> -> vector<2x4x8xf32>
    "tpu.trace_stop"() : () -> ()
    %250 = vector.extract_strided_slice %211 {offsets = [0, 0, 80], sizes = [2, 4, 8], strides = [1, 1, 1]} : vector<2x4x96xbf16> to vector<2x4x8xbf16>
    %251 = vector.extract_strided_slice %241 {offsets = [2, 0, 0, 0], sizes = [1, 2, 4, 4], strides = [1, 1, 1, 1]} : vector<4x2x4x4xbf16> to vector<1x2x4x4xbf16>
    %252 = vector.shape_cast %251 : vector<1x2x4x4xbf16> to vector<2x4x4xbf16>
    "tpu.trace_start"() <{level = 10 : i32, message = "bqk,bkd->bqd"}> : () -> ()
    %cst_53 = arith.constant dense<0.000000e+00> : vector<2x4x8xf32>
    %253 = tpu.matmul %252, %250, %cst_53 {dimension_numbers = #tpu.dot_dimension_numbers<[2], [1], [1], [2], [0, 0, 0, 1, 1, 2], [0], [0]>} : vector<2x4x4xbf16>, vector<2x4x8xbf16>, vector<2x4x8xf32> -> vector<2x4x8xf32>
    "tpu.trace_stop"() : () -> ()
    %254 = vector.extract_strided_slice %211 {offsets = [0, 0, 88], sizes = [2, 4, 8], strides = [1, 1, 1]} : vector<2x4x96xbf16> to vector<2x4x8xbf16>
    %255 = vector.extract_strided_slice %241 {offsets = [3, 0, 0, 0], sizes = [1, 2, 4, 4], strides = [1, 1, 1, 1]} : vector<4x2x4x4xbf16> to vector<1x2x4x4xbf16>
    %256 = vector.shape_cast %255 : vector<1x2x4x4xbf16> to vector<2x4x4xbf16>
    "tpu.trace_start"() <{level = 10 : i32, message = "bqk,bkd->bqd"}> : () -> ()
    %cst_54 = arith.constant dense<0.000000e+00> : vector<2x4x8xf32>
    %257 = tpu.matmul %256, %254, %cst_54 {dimension_numbers = #tpu.dot_dimension_numbers<[2], [1], [1], [2], [0, 0, 0, 1, 1, 2], [0], [0]>} : vector<2x4x4xbf16>, vector<2x4x8xbf16>, vector<2x4x8xf32> -> vector<2x4x8xf32>
    "tpu.trace_stop"() : () -> ()
    %258 = tpu.concatenate %245, %249, %253, %257 in 2 : vector<2x4x8xf32>, vector<2x4x8xf32>, vector<2x4x8xf32>, vector<2x4x8xf32> -> vector<2x4x32xf32>
    %259 = vector.shape_cast %258 : vector<2x4x32xf32> to vector<8x32xf32>
    %260 = arith.truncf %259 : vector<8x32xf32> to vector<8x32xbf16>
    %c0_55 = arith.constant 0 : index
    %c0_56 = arith.constant 0 : index
    %261 = vector.load %arg10[%c0_55, %c0_56] : memref<32x32xbf16, #tpu.memory_space<vmem>>, vector<32x32xbf16>
    %cst_57 = arith.constant dense<0.000000e+00> : vector<8x32xf32>
    %262 = tpu.matmul %260, %261, %cst_57 {dimension_numbers = #tpu.dot_dimension_numbers<[1], [0], [0], [1], [0, 0, 1, 1], [], []>} : vector<8x32xbf16>, vector<32x32xbf16>, vector<8x32xf32> -> vector<8x32xf32>
    %c0_58 = arith.constant 0 : index
    %c0_59 = arith.constant 0 : index
    %263 = vector.load %arg11[%c0_58, %c0_59] : memref<1x32xf32, #tpu.memory_space<vmem>>, vector<1x32xf32>
    %264 = vector.broadcast %263 : vector<1x32xf32> to vector<8x32xf32>
    %265 = arith.addf %262, %264 : vector<8x32xf32>
    %266 = arith.truncf %265 : vector<8x32xf32> to vector<8x32xbf16>
    %c0_60 = arith.constant 0 : index
    %c0_61 = arith.constant 0 : index
    %267 = vector.load %arg12[%c0_60, %c0_61] : memref<32x16xbf16, #tpu.memory_space<vmem>>, vector<32x16xbf16>
    %cst_62 = arith.constant dense<0.000000e+00> : vector<8x16xf32>
    %268 = tpu.matmul %266, %267, %cst_62 {dimension_numbers = #tpu.dot_dimension_numbers<[1], [0], [0], [1], [0, 0, 1, 1], [], []>} : vector<8x32xbf16>, vector<32x16xbf16>, vector<8x16xf32> -> vector<8x16xf32>
    %c0_63 = arith.constant 0 : index
    %c0_64 = arith.constant 0 : index
    %269 = vector.load %arg13[%c0_63, %c0_64] : memref<1x16xf32, #tpu.memory_space<vmem>>, vector<1x16xf32>
    %270 = vector.broadcast %269 : vector<1x16xf32> to vector<8x16xf32>
    %271 = arith.addf %268, %270 : vector<8x16xf32>
    %272 = vector.shape_cast %271 : vector<8x16xf32> to vector<2x4x16xf32>
    %273 = vector.shape_cast %272 : vector<2x4x16xf32> to vector<8x16xf32>
    %274 = arith.truncf %273 : vector<8x16xf32> to vector<8x16xbf16>
    %c0_65 = arith.constant 0 : index
    %c0_66 = arith.constant 0 : index
    %275 = vector.load %arg14[%c0_65, %c0_66] : memref<16x128xbf16, #tpu.memory_space<vmem>>, vector<16x128xbf16>
    %cst_67 = arith.constant dense<0.000000e+00> : vector<8x128xf32>
    %276 = tpu.matmul %274, %275, %cst_67 {dimension_numbers = #tpu.dot_dimension_numbers<[1], [0], [0], [1], [0, 0, 1, 1], [], []>} : vector<8x16xbf16>, vector<16x128xbf16>, vector<8x128xf32> -> vector<8x128xf32>
    %c0_68 = arith.constant 0 : index
    %c0_69 = arith.constant 0 : index
    %277 = vector.load %arg16[%c0_68, %c0_69] : memref<1x128xf32, #tpu.memory_space<vmem>>, vector<1x128xf32>
    %278 = vector.broadcast %277 : vector<1x128xf32> to vector<8x128xf32>
    %279 = arith.addf %276, %278 : vector<8x128xf32>
    %280 = vector.shape_cast %279 : vector<8x128xf32> to vector<2x4x128xf32>
    %c0_70 = arith.constant 0 : index
    %c0_71 = arith.constant 0 : index
    %281 = vector.load %arg15[%c0_70, %c0_71] : memref<32x128xbf16, #tpu.memory_space<vmem>>, vector<32x128xbf16>
    %c0_72 = arith.constant 0 : index
    %c0_73 = arith.constant 0 : index
    %282 = vector.load %arg17[%c0_72, %c0_73] : memref<64x128xbf16, #tpu.memory_space<vmem>>, vector<64x128xbf16>
    %c0_74 = arith.constant 0 : index
    %c0_75 = arith.constant 0 : index
    %283 = vector.load %arg18[%c0_74, %c0_75] : memref<1x128xf32, #tpu.memory_space<vmem>>, vector<1x128xf32>
    %cst_76 = arith.constant 0.000000e+00 : f32
    %284 = vector.broadcast %cst_76 : f32 to vector<2x32xf32>
    %cst_77 = arith.constant 0.000000e+00 : f32
    %285 = vector.broadcast %cst_77 : f32 to vector<2x32xf32>
    %cst_78 = arith.constant 0.000000e+00 : f32
    %286 = vector.broadcast %cst_78 : f32 to vector<2x32xf32>
    %cst_79 = arith.constant 0.000000e+00 : f32
    %287 = vector.broadcast %cst_79 : f32 to vector<2x32xf32>
    %288 = vector.extract_strided_slice %280 {offsets = [0, 0, 0], sizes = [2, 1, 128], strides = [1, 1, 1]} : vector<2x4x128xf32> to vector<2x1x128xf32>
    %289 = vector.shape_cast %288 : vector<2x1x128xf32> to vector<2x128xf32>
    %290 = arith.truncf %284 : vector<2x32xf32> to vector<2x32xbf16>
    %cst_80 = arith.constant dense<0.000000e+00> : vector<2x128xf32>
    %291 = tpu.matmul %290, %281, %cst_80 {dimension_numbers = #tpu.dot_dimension_numbers<[1], [0], [0], [1], [0, 0, 1, 1], [], []>} : vector<2x32xbf16>, vector<32x128xbf16>, vector<2x128xf32> -> vector<2x128xf32>
    %292 = arith.addf %289, %291 : vector<2x128xf32>
    %293 = arith.negf %292 : vector<2x128xf32>
    %294 = math.exp %293 : vector<2x128xf32>
    %cst_81 = arith.constant 1.000000e+00 : f32
    %295 = vector.broadcast %cst_81 : f32 to vector<2x128xf32>
    %296 = arith.addf %295, %294 : vector<2x128xf32>
    %297 = arith.divf %295, %296 : vector<2x128xf32>
    %298 = math.tanh %292 : vector<2x128xf32>
    %299 = vector.extract_strided_slice %297 {offsets = [0, 0], sizes = [2, 32], strides = [1, 1]} : vector<2x128xf32> to vector<2x32xf32>
    %300 = vector.extract_strided_slice %297 {offsets = [0, 32], sizes = [2, 32], strides = [1, 1]} : vector<2x128xf32> to vector<2x32xf32>
    %301 = vector.extract_strided_slice %298 {offsets = [0, 64], sizes = [2, 32], strides = [1, 1]} : vector<2x128xf32> to vector<2x32xf32>
    %302 = vector.extract_strided_slice %297 {offsets = [0, 96], sizes = [2, 32], strides = [1, 1]} : vector<2x128xf32> to vector<2x32xf32>
    %303 = arith.mulf %300, %286 : vector<2x32xf32>
    %304 = arith.mulf %299, %301 : vector<2x32xf32>
    %305 = arith.addf %303, %304 : vector<2x32xf32>
    %306 = math.tanh %305 : vector<2x32xf32>
    %307 = arith.mulf %302, %306 : vector<2x32xf32>
    %308 = tpu.concatenate %307, %285 in 1 : vector<2x32xf32>, vector<2x32xf32> -> vector<2x64xf32>
    %309 = arith.truncf %308 : vector<2x64xf32> to vector<2x64xbf16>
    %cst_82 = arith.constant dense<0.000000e+00> : vector<2x128xf32>
    %310 = tpu.matmul %309, %282, %cst_82 {dimension_numbers = #tpu.dot_dimension_numbers<[1], [0], [0], [1], [0, 0, 1, 1], [], []>} : vector<2x64xbf16>, vector<64x128xbf16>, vector<2x128xf32> -> vector<2x128xf32>
    %311 = vector.broadcast %283 : vector<1x128xf32> to vector<2x128xf32>
    %312 = arith.addf %310, %311 : vector<2x128xf32>
    %313 = arith.negf %312 : vector<2x128xf32>
    %314 = math.exp %313 : vector<2x128xf32>
    %cst_83 = arith.constant 1.000000e+00 : f32
    %315 = vector.broadcast %cst_83 : f32 to vector<2x128xf32>
    %316 = arith.addf %315, %314 : vector<2x128xf32>
    %317 = arith.divf %315, %316 : vector<2x128xf32>
    %318 = math.tanh %312 : vector<2x128xf32>
    %319 = vector.extract_strided_slice %317 {offsets = [0, 0], sizes = [2, 32], strides = [1, 1]} : vector<2x128xf32> to vector<2x32xf32>
    %320 = vector.extract_strided_slice %317 {offsets = [0, 32], sizes = [2, 32], strides = [1, 1]} : vector<2x128xf32> to vector<2x32xf32>
    %321 = vector.extract_strided_slice %318 {offsets = [0, 64], sizes = [2, 32], strides = [1, 1]} : vector<2x128xf32> to vector<2x32xf32>
    %322 = vector.extract_strided_slice %317 {offsets = [0, 96], sizes = [2, 32], strides = [1, 1]} : vector<2x128xf32> to vector<2x32xf32>
    %323 = arith.mulf %320, %287 : vector<2x32xf32>
    %324 = arith.mulf %319, %321 : vector<2x32xf32>
    %325 = arith.addf %323, %324 : vector<2x32xf32>
    %326 = math.tanh %325 : vector<2x32xf32>
    %327 = arith.mulf %322, %326 : vector<2x32xf32>
    %328 = vector.extract_strided_slice %280 {offsets = [0, 1, 0], sizes = [2, 1, 128], strides = [1, 1, 1]} : vector<2x4x128xf32> to vector<2x1x128xf32>
    %329 = vector.shape_cast %328 : vector<2x1x128xf32> to vector<2x128xf32>
    %330 = arith.truncf %307 : vector<2x32xf32> to vector<2x32xbf16>
    %cst_84 = arith.constant dense<0.000000e+00> : vector<2x128xf32>
    %331 = tpu.matmul %330, %281, %cst_84 {dimension_numbers = #tpu.dot_dimension_numbers<[1], [0], [0], [1], [0, 0, 1, 1], [], []>} : vector<2x32xbf16>, vector<32x128xbf16>, vector<2x128xf32> -> vector<2x128xf32>
    %332 = arith.addf %329, %331 : vector<2x128xf32>
    %333 = arith.negf %332 : vector<2x128xf32>
    %334 = math.exp %333 : vector<2x128xf32>
    %cst_85 = arith.constant 1.000000e+00 : f32
    %335 = vector.broadcast %cst_85 : f32 to vector<2x128xf32>
    %336 = arith.addf %335, %334 : vector<2x128xf32>
    %337 = arith.divf %335, %336 : vector<2x128xf32>
    %338 = math.tanh %332 : vector<2x128xf32>
    %339 = vector.extract_strided_slice %337 {offsets = [0, 0], sizes = [2, 32], strides = [1, 1]} : vector<2x128xf32> to vector<2x32xf32>
    %340 = vector.extract_strided_slice %337 {offsets = [0, 32], sizes = [2, 32], strides = [1, 1]} : vector<2x128xf32> to vector<2x32xf32>
    %341 = vector.extract_strided_slice %338 {offsets = [0, 64], sizes = [2, 32], strides = [1, 1]} : vector<2x128xf32> to vector<2x32xf32>
    %342 = vector.extract_strided_slice %337 {offsets = [0, 96], sizes = [2, 32], strides = [1, 1]} : vector<2x128xf32> to vector<2x32xf32>
    %343 = arith.mulf %340, %305 : vector<2x32xf32>
    %344 = arith.mulf %339, %341 : vector<2x32xf32>
    %345 = arith.addf %343, %344 : vector<2x32xf32>
    %346 = math.tanh %345 : vector<2x32xf32>
    %347 = arith.mulf %342, %346 : vector<2x32xf32>
    %348 = tpu.concatenate %347, %327 in 1 : vector<2x32xf32>, vector<2x32xf32> -> vector<2x64xf32>
    %349 = arith.truncf %348 : vector<2x64xf32> to vector<2x64xbf16>
    %cst_86 = arith.constant dense<0.000000e+00> : vector<2x128xf32>
    %350 = tpu.matmul %349, %282, %cst_86 {dimension_numbers = #tpu.dot_dimension_numbers<[1], [0], [0], [1], [0, 0, 1, 1], [], []>} : vector<2x64xbf16>, vector<64x128xbf16>, vector<2x128xf32> -> vector<2x128xf32>
    %351 = vector.broadcast %283 : vector<1x128xf32> to vector<2x128xf32>
    %352 = arith.addf %350, %351 : vector<2x128xf32>
    %353 = arith.negf %352 : vector<2x128xf32>
    %354 = math.exp %353 : vector<2x128xf32>
    %cst_87 = arith.constant 1.000000e+00 : f32
    %355 = vector.broadcast %cst_87 : f32 to vector<2x128xf32>
    %356 = arith.addf %355, %354 : vector<2x128xf32>
    %357 = arith.divf %355, %356 : vector<2x128xf32>
    %358 = math.tanh %352 : vector<2x128xf32>
    %359 = vector.extract_strided_slice %357 {offsets = [0, 0], sizes = [2, 32], strides = [1, 1]} : vector<2x128xf32> to vector<2x32xf32>
    %360 = vector.extract_strided_slice %357 {offsets = [0, 32], sizes = [2, 32], strides = [1, 1]} : vector<2x128xf32> to vector<2x32xf32>
    %361 = vector.extract_strided_slice %358 {offsets = [0, 64], sizes = [2, 32], strides = [1, 1]} : vector<2x128xf32> to vector<2x32xf32>
    %362 = vector.extract_strided_slice %357 {offsets = [0, 96], sizes = [2, 32], strides = [1, 1]} : vector<2x128xf32> to vector<2x32xf32>
    %363 = arith.mulf %360, %325 : vector<2x32xf32>
    %364 = arith.mulf %359, %361 : vector<2x32xf32>
    %365 = arith.addf %363, %364 : vector<2x32xf32>
    %366 = math.tanh %365 : vector<2x32xf32>
    %367 = arith.mulf %362, %366 : vector<2x32xf32>
    %368 = vector.extract_strided_slice %280 {offsets = [0, 2, 0], sizes = [2, 1, 128], strides = [1, 1, 1]} : vector<2x4x128xf32> to vector<2x1x128xf32>
    %369 = vector.shape_cast %368 : vector<2x1x128xf32> to vector<2x128xf32>
    %370 = arith.truncf %347 : vector<2x32xf32> to vector<2x32xbf16>
    %cst_88 = arith.constant dense<0.000000e+00> : vector<2x128xf32>
    %371 = tpu.matmul %370, %281, %cst_88 {dimension_numbers = #tpu.dot_dimension_numbers<[1], [0], [0], [1], [0, 0, 1, 1], [], []>} : vector<2x32xbf16>, vector<32x128xbf16>, vector<2x128xf32> -> vector<2x128xf32>
    %372 = arith.addf %369, %371 : vector<2x128xf32>
    %373 = arith.negf %372 : vector<2x128xf32>
    %374 = math.exp %373 : vector<2x128xf32>
    %cst_89 = arith.constant 1.000000e+00 : f32
    %375 = vector.broadcast %cst_89 : f32 to vector<2x128xf32>
    %376 = arith.addf %375, %374 : vector<2x128xf32>
    %377 = arith.divf %375, %376 : vector<2x128xf32>
    %378 = math.tanh %372 : vector<2x128xf32>
    %379 = vector.extract_strided_slice %377 {offsets = [0, 0], sizes = [2, 32], strides = [1, 1]} : vector<2x128xf32> to vector<2x32xf32>
    %380 = vector.extract_strided_slice %377 {offsets = [0, 32], sizes = [2, 32], strides = [1, 1]} : vector<2x128xf32> to vector<2x32xf32>
    %381 = vector.extract_strided_slice %378 {offsets = [0, 64], sizes = [2, 32], strides = [1, 1]} : vector<2x128xf32> to vector<2x32xf32>
    %382 = vector.extract_strided_slice %377 {offsets = [0, 96], sizes = [2, 32], strides = [1, 1]} : vector<2x128xf32> to vector<2x32xf32>
    %383 = arith.mulf %380, %345 : vector<2x32xf32>
    %384 = arith.mulf %379, %381 : vector<2x32xf32>
    %385 = arith.addf %383, %384 : vector<2x32xf32>
    %386 = math.tanh %385 : vector<2x32xf32>
    %387 = arith.mulf %382, %386 : vector<2x32xf32>
    %388 = tpu.concatenate %387, %367 in 1 : vector<2x32xf32>, vector<2x32xf32> -> vector<2x64xf32>
    %389 = arith.truncf %388 : vector<2x64xf32> to vector<2x64xbf16>
    %cst_90 = arith.constant dense<0.000000e+00> : vector<2x128xf32>
    %390 = tpu.matmul %389, %282, %cst_90 {dimension_numbers = #tpu.dot_dimension_numbers<[1], [0], [0], [1], [0, 0, 1, 1], [], []>} : vector<2x64xbf16>, vector<64x128xbf16>, vector<2x128xf32> -> vector<2x128xf32>
    %391 = vector.broadcast %283 : vector<1x128xf32> to vector<2x128xf32>
    %392 = arith.addf %390, %391 : vector<2x128xf32>
    %393 = arith.negf %392 : vector<2x128xf32>
    %394 = math.exp %393 : vector<2x128xf32>
    %cst_91 = arith.constant 1.000000e+00 : f32
    %395 = vector.broadcast %cst_91 : f32 to vector<2x128xf32>
    %396 = arith.addf %395, %394 : vector<2x128xf32>
    %397 = arith.divf %395, %396 : vector<2x128xf32>
    %398 = math.tanh %392 : vector<2x128xf32>
    %399 = vector.extract_strided_slice %397 {offsets = [0, 0], sizes = [2, 32], strides = [1, 1]} : vector<2x128xf32> to vector<2x32xf32>
    %400 = vector.extract_strided_slice %397 {offsets = [0, 32], sizes = [2, 32], strides = [1, 1]} : vector<2x128xf32> to vector<2x32xf32>
    %401 = vector.extract_strided_slice %398 {offsets = [0, 64], sizes = [2, 32], strides = [1, 1]} : vector<2x128xf32> to vector<2x32xf32>
    %402 = vector.extract_strided_slice %397 {offsets = [0, 96], sizes = [2, 32], strides = [1, 1]} : vector<2x128xf32> to vector<2x32xf32>
    %403 = arith.mulf %400, %365 : vector<2x32xf32>
    %404 = arith.mulf %399, %401 : vector<2x32xf32>
    %405 = arith.addf %403, %404 : vector<2x32xf32>
    %406 = math.tanh %405 : vector<2x32xf32>
    %407 = arith.mulf %402, %406 : vector<2x32xf32>
    %408 = vector.extract_strided_slice %280 {offsets = [0, 3, 0], sizes = [2, 1, 128], strides = [1, 1, 1]} : vector<2x4x128xf32> to vector<2x1x128xf32>
    %409 = vector.shape_cast %408 : vector<2x1x128xf32> to vector<2x128xf32>
    %410 = arith.truncf %387 : vector<2x32xf32> to vector<2x32xbf16>
    %cst_92 = arith.constant dense<0.000000e+00> : vector<2x128xf32>
    %411 = tpu.matmul %410, %281, %cst_92 {dimension_numbers = #tpu.dot_dimension_numbers<[1], [0], [0], [1], [0, 0, 1, 1], [], []>} : vector<2x32xbf16>, vector<32x128xbf16>, vector<2x128xf32> -> vector<2x128xf32>
    %412 = arith.addf %409, %411 : vector<2x128xf32>
    %413 = arith.negf %412 : vector<2x128xf32>
    %414 = math.exp %413 : vector<2x128xf32>
    %cst_93 = arith.constant 1.000000e+00 : f32
    %415 = vector.broadcast %cst_93 : f32 to vector<2x128xf32>
    %416 = arith.addf %415, %414 : vector<2x128xf32>
    %417 = arith.divf %415, %416 : vector<2x128xf32>
    %418 = math.tanh %412 : vector<2x128xf32>
    %419 = vector.extract_strided_slice %417 {offsets = [0, 0], sizes = [2, 32], strides = [1, 1]} : vector<2x128xf32> to vector<2x32xf32>
    %420 = vector.extract_strided_slice %417 {offsets = [0, 32], sizes = [2, 32], strides = [1, 1]} : vector<2x128xf32> to vector<2x32xf32>
    %421 = vector.extract_strided_slice %418 {offsets = [0, 64], sizes = [2, 32], strides = [1, 1]} : vector<2x128xf32> to vector<2x32xf32>
    %422 = vector.extract_strided_slice %417 {offsets = [0, 96], sizes = [2, 32], strides = [1, 1]} : vector<2x128xf32> to vector<2x32xf32>
    %423 = arith.mulf %420, %385 : vector<2x32xf32>
    %424 = arith.mulf %419, %421 : vector<2x32xf32>
    %425 = arith.addf %423, %424 : vector<2x32xf32>
    %426 = math.tanh %425 : vector<2x32xf32>
    %427 = arith.mulf %422, %426 : vector<2x32xf32>
    %428 = tpu.concatenate %427, %407 in 1 : vector<2x32xf32>, vector<2x32xf32> -> vector<2x64xf32>
    %429 = arith.truncf %428 : vector<2x64xf32> to vector<2x64xbf16>
    %cst_94 = arith.constant dense<0.000000e+00> : vector<2x128xf32>
    %430 = tpu.matmul %429, %282, %cst_94 {dimension_numbers = #tpu.dot_dimension_numbers<[1], [0], [0], [1], [0, 0, 1, 1], [], []>} : vector<2x64xbf16>, vector<64x128xbf16>, vector<2x128xf32> -> vector<2x128xf32>
    %431 = vector.broadcast %283 : vector<1x128xf32> to vector<2x128xf32>
    %432 = arith.addf %430, %431 : vector<2x128xf32>
    %433 = arith.negf %432 : vector<2x128xf32>
    %434 = math.exp %433 : vector<2x128xf32>
    %cst_95 = arith.constant 1.000000e+00 : f32
    %435 = vector.broadcast %cst_95 : f32 to vector<2x128xf32>
    %436 = arith.addf %435, %434 : vector<2x128xf32>
    %437 = arith.divf %435, %436 : vector<2x128xf32>
    %438 = math.tanh %432 : vector<2x128xf32>
    %439 = vector.extract_strided_slice %437 {offsets = [0, 0], sizes = [2, 32], strides = [1, 1]} : vector<2x128xf32> to vector<2x32xf32>
    %440 = vector.extract_strided_slice %437 {offsets = [0, 32], sizes = [2, 32], strides = [1, 1]} : vector<2x128xf32> to vector<2x32xf32>
    %441 = vector.extract_strided_slice %438 {offsets = [0, 64], sizes = [2, 32], strides = [1, 1]} : vector<2x128xf32> to vector<2x32xf32>
    %442 = vector.extract_strided_slice %437 {offsets = [0, 96], sizes = [2, 32], strides = [1, 1]} : vector<2x128xf32> to vector<2x32xf32>
    %443 = arith.mulf %440, %405 : vector<2x32xf32>
    %444 = arith.mulf %439, %441 : vector<2x32xf32>
    %445 = arith.addf %443, %444 : vector<2x32xf32>
    %446 = math.tanh %445 : vector<2x32xf32>
    %447 = arith.mulf %442, %446 : vector<2x32xf32>
    %448 = arith.truncf %447 : vector<2x32xf32> to vector<2x32xbf16>
    %c0_96 = arith.constant 0 : index
    %c0_97 = arith.constant 0 : index
    %449 = vector.load %arg19[%c0_96, %c0_97] : memref<32x16xbf16, #tpu.memory_space<vmem>>, vector<32x16xbf16>
    %cst_98 = arith.constant dense<0.000000e+00> : vector<2x16xf32>
    %450 = tpu.matmul %448, %449, %cst_98 {dimension_numbers = #tpu.dot_dimension_numbers<[1], [0], [0], [1], [0, 0, 1, 1], [], []>} : vector<2x32xbf16>, vector<32x16xbf16>, vector<2x16xf32> -> vector<2x16xf32>
    %c0_99 = arith.constant 0 : index
    %c0_100 = arith.constant 0 : index
    %451 = vector.load %arg20[%c0_99, %c0_100] : memref<1x16xf32, #tpu.memory_space<vmem>>, vector<1x16xf32>
    %452 = vector.broadcast %451 : vector<1x16xf32> to vector<2x16xf32>
    %453 = arith.addf %450, %452 : vector<2x16xf32>
    %c0_101 = arith.constant 0 : index
    %c0_102 = arith.constant 0 : index
    %454 = vector.load %arg21[%c0_101, %c0_102] : memref<2x16xf32, #tpu.memory_space<vmem>>, vector<2x16xf32>
    tpu.vector_store %arg21[%c0_101, %c0_102], %453 {strides = array<i32>} : memref<2x16xf32, #tpu.memory_space<vmem>>, vector<2x16xf32>,
    return
  }
}

</mosaic_0001>

<llo_original>
// kernel: _lambda_.1
$region0: #{_lambda_.1}
  #allocation0 [shape = 'u32[]', space=smem, size = 0x4, offset = 0x4, fixed_abs, tag = 'smem constant byte address 0x4 - core index']
  #allocation1 [shape = 'u32[144,128]{1,0:T(1,128)}', space=vmem, size = 0x12000, scoped, tag = 'internal scratch']
  %s0 = inlined_call_operand.hbm [shape: f32[2,8,16], index: 0, kind: input, shape index: {}]
  %s1 = inlined_call_operand.hbm [shape: bf16[48,64], index: 1, kind: input, shape index: {}]
  %s2 = inlined_call_operand.hbm [shape: f32[1,64], index: 2, kind: input, shape index: {}]
  %s3 = inlined_call_operand.vmem [shape: bf16[64,128], index: 3, kind: input, shape index: {}]
  %s4 = inlined_call_operand.hbm [shape: bf16[32,128], index: 4, kind: input, shape index: {}]
  %s5 = inlined_call_operand.hbm [shape: f32[1,128], index: 5, kind: input, shape index: {}]
  %s6 = inlined_call_operand.vmem [shape: bf16[64,128], index: 6, kind: input, shape index: {}]
  %s7 = inlined_call_operand.vmem [shape: f32[1,128], index: 7, kind: input, shape index: {}]
  %s8 = inlined_call_operand.hbm [shape: bf16[32,96], index: 8, kind: input, shape index: {}]
  %s9 = inlined_call_operand.hbm [shape: f32[1,96], index: 9, kind: input, shape index: {}]
  %s10 = inlined_call_operand.hbm [shape: bf16[32,32], index: 10, kind: input, shape index: {}]
  %s11 = inlined_call_operand.hbm [shape: f32[1,32], index: 11, kind: input, shape index: {}]
  %s12 = inlined_call_operand.vmem [shape: bf16[32,16], index: 12, kind: input, shape index: {}]
  %s13 = inlined_call_operand.hbm [shape: f32[1,16], index: 13, kind: input, shape index: {}]
  %s14 = inlined_call_operand.hbm [shape: bf16[16,128], index: 14, kind: input, shape index: {}]
  %s15 = inlined_call_operand.hbm [shape: bf16[32,128], index: 15, kind: input, shape index: {}]
  %s16 = inlined_call_operand.hbm [shape: f32[1,128], index: 16, kind: input, shape index: {}]
  %s17 = inlined_call_operand.vmem [shape: bf16[64,128], index: 17, kind: input, shape index: {}]
  %s18 = inlined_call_operand.hbm [shape: f32[1,128], index: 18, kind: input, shape index: {}]
  %s19 = inlined_call_operand.vmem [shape: bf16[32,16], index: 19, kind: input, shape index: {}]
  %s20 = inlined_call_operand.vmem [shape: f32[1,16], index: 20, kind: input, shape index: {}]
  %s21 = inlined_call_operand.hbm [shape: f32[2,16], index: 21, kind: output, shape index: {}]
  %s22 = sld [smem:[#allocation0]]
  $region150: #{_lambda_.1} parent=0
    _
  %s24 = ssub.s32 1, %s22
  %s25 = scalar_select 0, %s24, %s22
  $region1: #{_lambda_.1} parent=0
    #allocation2 [shape = 'u8[8192]{0}', space=vmem, size = 0x2000, scoped, tag = 'input window, operand 0, single buffered']
    #allocation3 [shape = 's32[1]{0}', space=sflag, size = 0x4, scoped, tag = 'scoped memory for _lambda_.1']
    #allocation4 [shape = 's32[1]{0}', space=sflag, size = 0x4, scoped, tag = 'scoped memory for _lambda_.1']
    #allocation5 [shape = 'u8[12288]{0}', space=vmem, size = 0x3000, scoped, tag = 'input window, operand 1, single buffered']
    #allocation6 [shape = 's32[1]{0}', space=sflag, size = 0x4, scoped, tag = 'scoped memory for _lambda_.1']
    #allocation7 [shape = 'u8[512]{0}', space=vmem, size = 0x400, scoped, tag = 'input window, operand 2, single buffered']
    #allocation8 [shape = 'u8[8192]{0}', space=vmem, size = 0x2000, scoped, tag = 'input window, operand 4, single buffered']
    #allocation9 [shape = 's32[1]{0}', space=sflag, size = 0x4, scoped, tag = 'scoped memory for _lambda_.1']
    #allocation10 [shape = 'u8[512]{0}', space=vmem, size = 0x400, scoped, tag = 'input window, operand 5, single buffered']
    #allocation11 [shape = 'u8[8192]{0}', space=vmem, size = 0x2000, scoped, tag = 'input window, operand 8, single buffered']
    #allocation12 [shape = 's32[1]{0}', space=sflag, size = 0x4, scoped, tag = 'scoped memory for _lambda_.1']
    #allocation13 [shape = 'u8[512]{0}', space=vmem, size = 0x400, scoped, tag = 'input window, operand 9, single buffered']
    #allocation14 [shape = 'u8[8192]{0}', space=vmem, size = 0x2000, scoped, tag = 'input window, operand 10, single buffered']
    #allocation15 [shape = 's32[1]{0}', space=sflag, size = 0x4, scoped, tag = 'scoped memory for _lambda_.1']
    #allocation16 [shape = 'u8[512]{0}', space=vmem, size = 0x400, scoped, tag = 'input window, operand 11, single buffered']
    #allocation17 [shape = 'u8[512]{0}', space=vmem, size = 0x400, scoped, tag = 'input window, operand 13, single buffered']
    #allocation18 [shape = 's32[1]{0}', space=sflag, size = 0x4, scoped, tag = 'scoped memory for _lambda_.1']
    #allocation19 [shape = 'u8[4096]{0}', space=vmem, size = 0x1000, scoped, tag = 'input window, operand 14, single buffered']
    #allocation20 [shape = 'u8[8192]{0}', space=vmem, size = 0x2000, scoped, tag = 'input window, operand 15, single buffered']
    #allocation21 [shape = 's32[1]{0}', space=sflag, size = 0x4, scoped, tag = 'scoped memory for _lambda_.1']
    #allocation22 [shape = 'u8[512]{0}', space=vmem, size = 0x400, scoped, tag = 'input window, operand 16, single buffered']
    #allocation23 [shape = 'u8[512]{0}', space=vmem, size = 0x400, scoped, tag = 'input window, operand 18, single buffered']
    #allocation24 [shape = 's32[1]{0}', space=sflag, size = 0x4, scoped, tag = 'scoped memory for _lambda_.1']
    #allocation25 [shape = 'u8[1024]{0}', space=vmem, size = 0x400, scoped, tag = 'output window, operand 0, single buffered']
    %26 = vsyncpa [#allocation3], 0
    %27 = vsyncpa [#allocation6], 0
    %28 = vsyncpa [#allocation9], 0
    %29 = vsyncpa [#allocation12], 0
    %30 = vsyncpa [#allocation15], 0
    %31 = vsyncpa [#allocation18], 0
    %32 = vsyncpa [#allocation21], 0
    %33 = vsyncpa [#allocation24], 0
    %34 = vsyncpa [#allocation4], 0
    // Predicated region
    $region2: #{_lambda_.1} parent=1 // pred_check
      _
    $region3: #{_lambda_.1} parent=1 // pred_check_branch
      %36 = sbr.rel (0) target = $region5
    $region4: #{_lambda_.1} parent=1 // pred_region
      %s38 = ssub.s32 256, 256
      %39 = vsyncadd [#allocation3], %s38
      %s40 = sshll.u32 [#allocation2], 4
      %s41 = int_to_ptr.vmem [resolvable:$true] %s40
      %46 = dma.hbm_to_vmem [thread:$0]  %s0, 256, %s41, [#allocation3], 128, 128, 8
    $region5: #{_lambda_.1} parent=1 // pred_fallthru
      _
    // Predicated region
    $region6: #{_lambda_.1} parent=1 // pred_check
      _
    $region7: #{_lambda_.1} parent=1 // pred_check_branch
      %48 = sbr.rel (0) target = $region9
    $region8: #{_lambda_.1} parent=1 // pred_region
      %s50 = ssub.s32 384, 384
      %51 = vsyncadd [#allocation6], %s50
      %s52 = sshll.u32 [#allocation5], 4
      %s53 = int_to_ptr.vmem [resolvable:$true] %s52
      %58 = dma.hbm_to_vmem [thread:$0]  %s1, 384, %s53, [#allocation6], 64, 64, 4
    $region9: #{_lambda_.1} parent=1 // pred_fallthru
      _
    // Predicated region
    $region10: #{_lambda_.1} parent=1 // pred_check
      _
    $region11: #{_lambda_.1} parent=1 // pred_check_branch
      %60 = sbr.rel (0) target = $region13
    $region12: #{_lambda_.1} parent=1 // pred_region
      %s62 = ssub.s32 16, 16
      %63 = vsyncadd [#allocation6], %s62
      %s65 = sshll.u32 [#allocation7], 4
      %s66 = int_to_ptr.vmem [resolvable:$true] %s65
      %68 = dma.hbm_to_vmem [thread:$0]  %s2, 16, %s66, [#allocation6]
    $region13: #{_lambda_.1} parent=1 // pred_fallthru
      _
    // Predicated region
    $region14: #{_lambda_.1} parent=1 // pred_check
      _
    $region15: #{_lambda_.1} parent=1 // pred_check_branch
      %70 = sbr.rel (0) target = $region17
    $region16: #{_lambda_.1} parent=1 // pred_region
      _
    $region17: #{_lambda_.1} parent=1 // pred_fallthru
      _
    // Predicated region
    $region18: #{_lambda_.1} parent=1 // pred_check
      _
    $region19: #{_lambda_.1} parent=1 // pred_check_branch
      %72 = sbr.rel (0) target = $region21
    $region20: #{_lambda_.1} parent=1 // pred_region
      %s74 = ssub.s32 256, 256
      %75 = vsyncadd [#allocation9], %s74
      %s76 = sshll.u32 [#allocation8], 4
      %s77 = int_to_ptr.vmem [resolvable:$true] %s76
      %82 = dma.hbm_to_vmem [thread:$0]  %s4, 256, %s77, [#allocation9], 64, 64, 4
    $region21: #{_lambda_.1} parent=1 // pred_fallthru
      _
    // Predicated region
    $region22: #{_lambda_.1} parent=1 // pred_check
      _
    $region23: #{_lambda_.1} parent=1 // pred_check_branch
      %84 = sbr.rel (0) target = $region25
    $region24: #{_lambda_.1} parent=1 // pred_region
      %s86 = ssub.s32 16, 16
      %87 = vsyncadd [#allocation9], %s86
      %s89 = sshll.u32 [#allocation10], 4
      %s90 = int_to_ptr.vmem [resolvable:$true] %s89
      %92 = dma.hbm_to_vmem [thread:$0]  %s5, 16, %s90, [#allocation9]
    $region25: #{_lambda_.1} parent=1 // pred_fallthru
      _
    // Predicated region
    $region26: #{_lambda_.1} parent=1 // pred_check
      _
    $region27: #{_lambda_.1} parent=1 // pred_check_branch
      %94 = sbr.rel (0) target = $region29
    $region28: #{_lambda_.1} parent=1 // pred_region
      _
    $region29: #{_lambda_.1} parent=1 // pred_fallthru
      _
    // Predicated region
    $region30: #{_lambda_.1} parent=1 // pred_check
      _
    $region31: #{_lambda_.1} parent=1 // pred_check_branch
      %96 = sbr.rel (0) target = $region33
    $region32: #{_lambda_.1} parent=1 // pred_region
      _
    $region33: #{_lambda_.1} parent=1 // pred_fallthru
      _
    // Predicated region
    $region34: #{_lambda_.1} parent=1 // pred_check
      _
    $region35: #{_lambda_.1} parent=1 // pred_check_branch
      %98 = sbr.rel (0) target = $region37
    $region36: #{_lambda_.1} parent=1 // pred_region
      %s100 = ssub.s32 256, 256
      %101 = vsyncadd [#allocation12], %s100
      %s102 = sshll.u32 [#allocation11], 4
      %s103 = int_to_ptr.vmem [resolvable:$true] %s102
      %108 = dma.hbm_to_vmem [thread:$0]  %s8, 256, %s103, [#allocation12], 64, 64, 4
    $region37: #{_lambda_.1} parent=1 // pred_fallthru
      _
    // Predicated region
    $region38: #{_lambda_.1} parent=1 // pred_check
      _
    $region39: #{_lambda_.1} parent=1 // pred_check_branch
      %110 = sbr.rel (0) target = $region41
    $region40: #{_lambda_.1} parent=1 // pred_region
      %s112 = ssub.s32 16, 16
      %113 = vsyncadd [#allocation12], %s112
      %s115 = sshll.u32 [#allocation13], 4
      %s116 = int_to_ptr.vmem [resolvable:$true] %s115
      %118 = dma.hbm_to_vmem [thread:$0]  %s9, 16, %s116, [#allocation12]
    $region41: #{_lambda_.1} parent=1 // pred_fallthru
      _
    // Predicated region
    $region42: #{_lambda_.1} parent=1 // pred_check
      _
    $region43: #{_lambda_.1} parent=1 // pred_check_branch
      %120 = sbr.rel (0) target = $region45
    $region44: #{_lambda_.1} parent=1 // pred_region
      %s122 = ssub.s32 256, 256
      %123 = vsyncadd [#allocation15], %s122
      %s124 = sshll.u32 [#allocation14], 4
      %s125 = int_to_ptr.vmem [resolvable:$true] %s124
      %130 = dma.hbm_to_vmem [thread:$0]  %s10, 256, %s125, [#allocation15], 64, 64, 4
    $region45: #{_lambda_.1} parent=1 // pred_fallthru
      _
    // Predicated region
    $region46: #{_lambda_.1} parent=1 // pred_check
      _
    $region47: #{_lambda_.1} parent=1 // pred_check_branch
      %132 = sbr.rel (0) target = $region49
    $region48: #{_lambda_.1} parent=1 // pred_region
      %s134 = ssub.s32 16, 16
      %135 = vsyncadd [#allocation15], %s134
      %s137 = sshll.u32 [#allocation16], 4
      %s138 = int_to_ptr.vmem [resolvable:$true] %s137
      %140 = dma.hbm_to_vmem [thread:$0]  %s11, 16, %s138, [#allocation15]
    $region49: #{_lambda_.1} parent=1 // pred_fallthru
      _
    // Predicated region
    $region50: #{_lambda_.1} parent=1 // pred_check
      _
    $region51: #{_lambda_.1} parent=1 // pred_check_branch
      %142 = sbr.rel (0) target = $region53
    $region52: #{_lambda_.1} parent=1 // pred_region
      _
    $region53: #{_lambda_.1} parent=1 // pred_fallthru
      _
    // Predicated region
    $region54: #{_lambda_.1} parent=1 // pred_check
      _
    $region55: #{_lambda_.1} parent=1 // pred_check_branch
      %144 = sbr.rel (0) target = $region57
    $region56: #{_lambda_.1} parent=1 // pred_region
      %s146 = ssub.s32 16, 16
      %147 = vsyncadd [#allocation18], %s146
      %s149 = sshll.u32 [#allocation17], 4
      %s150 = int_to_ptr.vmem [resolvable:$true] %s149
      %152 = dma.hbm_to_vmem [thread:$0]  %s13, 16, %s150, [#allocation18]
    $region57: #{_lambda_.1} parent=1 // pred_fallthru
      _
    // Predicated region
    $region58: #{_lambda_.1} parent=1 // pred_check
      _
    $region59: #{_lambda_.1} parent=1 // pred_check_branch
      %154 = sbr.rel (0) target = $region61
    $region60: #{_lambda_.1} parent=1 // pred_region
      %s156 = ssub.s32 128, 128
      %157 = vsyncadd [#allocation18], %s156
      %s158 = sshll.u32 [#allocation19], 4
      %s159 = int_to_ptr.vmem [resolvable:$true] %s158
      %164 = dma.hbm_to_vmem [thread:$0]  %s14, 128, %s159, [#allocation18], 64, 64, 4
    $region61: #{_lambda_.1} parent=1 // pred_fallthru
      _
    // Predicated region
    $region62: #{_lambda_.1} parent=1 // pred_check
      _
    $region63: #{_lambda_.1} parent=1 // pred_check_branch
      %166 = sbr.rel (0) target = $region65
    $region64: #{_lambda_.1} parent=1 // pred_region
      %s168 = ssub.s32 256, 256
      %169 = vsyncadd [#allocation21], %s168
      %s170 = sshll.u32 [#allocation20], 4
      %s171 = int_to_ptr.vmem [resolvable:$true] %s170
      %176 = dma.hbm_to_vmem [thread:$0]  %s15, 256, %s171, [#allocation21], 64, 64, 4
    $region65: #{_lambda_.1} parent=1 // pred_fallthru
      _
    // Predicated region
    $region66: #{_lambda_.1} parent=1 // pred_check
      _
    $region67: #{_lambda_.1} parent=1 // pred_check_branch
      %178 = sbr.rel (0) target = $region69
    $region68: #{_lambda_.1} parent=1 // pred_region
      %s180 = ssub.s32 16, 16
      %181 = vsyncadd [#allocation21], %s180
      %s183 = sshll.u32 [#allocation22], 4
      %s184 = int_to_ptr.vmem [resolvable:$true] %s183
      %186 = dma.hbm_to_vmem [thread:$0]  %s16, 16, %s184, [#allocation21]
    $region69: #{_lambda_.1} parent=1 // pred_fallthru
      _
    // Predicated region
    $region70: #{_lambda_.1} parent=1 // pred_check
      _
    $region71: #{_lambda_.1} parent=1 // pred_check_branch
      %188 = sbr.rel (0) target = $region73
    $region72: #{_lambda_.1} parent=1 // pred_region
      _
    $region73: #{_lambda_.1} parent=1 // pred_fallthru
      _
    // Predicated region
    $region74: #{_lambda_.1} parent=1 // pred_check
      _
    $region75: #{_lambda_.1} parent=1 // pred_check_branch
      %190 = sbr.rel (0) target = $region77
    $region76: #{_lambda_.1} parent=1 // pred_region
      %s192 = ssub.s32 16, 16
      %193 = vsyncadd [#allocation24], %s192
      %s195 = sshll.u32 [#allocation23], 4
      %s196 = int_to_ptr.vmem [resolvable:$true] %s195
      %198 = dma.hbm_to_vmem [thread:$0]  %s18, 16, %s196, [#allocation24]
    $region77: #{_lambda_.1} parent=1 // pred_fallthru
      _
    // Predicated region
    $region78: #{_lambda_.1} parent=1 // pred_check
      _
    $region79: #{_lambda_.1} parent=1 // pred_check_branch
      %200 = sbr.rel (0) target = $region81
    $region80: #{_lambda_.1} parent=1 // pred_region
      _
    $region81: #{_lambda_.1} parent=1 // pred_fallthru
      _
    // Predicated region
    $region82: #{_lambda_.1} parent=1 // pred_check
      _
    $region83: #{_lambda_.1} parent=1 // pred_check_branch
      %202 = sbr.rel (0) target = $region85
    $region84: #{_lambda_.1} parent=1 // pred_region
      _
    $region85: #{_lambda_.1} parent=1 // pred_fallthru
      _
    // Predicated region
    $region86: #{_lambda_.1} parent=1 // pred_check
      _
    $region87: #{_lambda_.1} parent=1 // pred_check_branch
      %204 = sbr.rel (0) target = $region89
    $region88: #{_lambda_.1} parent=1 // pred_region
      %205 = dma.done [#allocation3], 256
    $region89: #{_lambda_.1} parent=1 // pred_fallthru
      _
    // Predicated region
    $region90: #{_lambda_.1} parent=1 // pred_check
      _
    $region91: #{_lambda_.1} parent=1 // pred_check_branch
      %207 = sbr.rel (0) target = $region93
    $region92: #{_lambda_.1} parent=1 // pred_region
      %208 = dma.done [#allocation6], 384
    $region93: #{_lambda_.1} parent=1 // pred_fallthru
      _
    // Predicated region
    $region94: #{_lambda_.1} parent=1 // pred_check
      _
    $region95: #{_lambda_.1} parent=1 // pred_check_branch
      %210 = sbr.rel (0) target = $region97
    $region96: #{_lambda_.1} parent=1 // pred_region
      %211 = dma.done [#allocation6], 16
    $region97: #{_lambda_.1} parent=1 // pred_fallthru
      _
    // Predicated region
    $region98: #{_lambda_.1} parent=1 // pred_check
      _
    $region99: #{_lambda_.1} parent=1 // pred_check_branch
      %213 = sbr.rel (0) target = $region101
    $region100: #{_lambda_.1} parent=1 // pred_region
      %214 = dma.done [#allocation9], 256
    $region101: #{_lambda_.1} parent=1 // pred_fallthru
      _
    // Predicated region
    $region102: #{_lambda_.1} parent=1 // pred_check
      _
    $region103: #{_lambda_.1} parent=1 // pred_check_branch
      %216 = sbr.rel (0) target = $region105
    $region104: #{_lambda_.1} parent=1 // pred_region
      %217 = dma.done [#allocation9], 16
    $region105: #{_lambda_.1} parent=1 // pred_fallthru
      _
    // Predicated region
    $region106: #{_lambda_.1} parent=1 // pred_check
      _
    $region107: #{_lambda_.1} parent=1 // pred_check_branch
      %219 = sbr.rel (0) target = $region109
    $region108: #{_lambda_.1} parent=1 // pred_region
      %220 = dma.done [#allocation12], 256
    $region109: #{_lambda_.1} parent=1 // pred_fallthru
      _
    // Predicated region
    $region110: #{_lambda_.1} parent=1 // pred_check
      _
    $region111: #{_lambda_.1} parent=1 // pred_check_branch
      %222 = sbr.rel (0) target = $region113
    $region112: #{_lambda_.1} parent=1 // pred_region
      %223 = dma.done [#allocation12], 16
    $region113: #{_lambda_.1} parent=1 // pred_fallthru
      _
    // Predicated region
    $region114: #{_lambda_.1} parent=1 // pred_check
      _
    $region115: #{_lambda_.1} parent=1 // pred_check_branch
      %225 = sbr.rel (0) target = $region117
    $region116: #{_lambda_.1} parent=1 // pred_region
      %226 = dma.done [#allocation15], 256
    $region117: #{_lambda_.1} parent=1 // pred_fallthru
      _
    // Predicated region
    $region118: #{_lambda_.1} parent=1 // pred_check
      _
    $region119: #{_lambda_.1} parent=1 // pred_check_branch
      %228 = sbr.rel (0) target = $region121
    $region120: #{_lambda_.1} parent=1 // pred_region
      %229 = dma.done [#allocation15], 16
    $region121: #{_lambda_.1} parent=1 // pred_fallthru
      _
    // Predicated region
    $region122: #{_lambda_.1} parent=1 // pred_check
      _
    $region123: #{_lambda_.1} parent=1 // pred_check_branch
      %231 = sbr.rel (0) target = $region125
    $region124: #{_lambda_.1} parent=1 // pred_region
      %232 = dma.done [#allocation18], 16
    $region125: #{_lambda_.1} parent=1 // pred_fallthru
      _
    // Predicated region
    $region126: #{_lambda_.1} parent=1 // pred_check
      _
    $region127: #{_lambda_.1} parent=1 // pred_check_branch
      %234 = sbr.rel (0) target = $region129
    $region128: #{_lambda_.1} parent=1 // pred_region
      %235 = dma.done [#allocation18], 128
    $region129: #{_lambda_.1} parent=1 // pred_fallthru
      _
    // Predicated region
    $region130: #{_lambda_.1} parent=1 // pred_check
      _
    $region131: #{_lambda_.1} parent=1 // pred_check_branch
      %237 = sbr.rel (0) target = $region133
    $region132: #{_lambda_.1} parent=1 // pred_region
      %238 = dma.done [#allocation21], 256
    $region133: #{_lambda_.1} parent=1 // pred_fallthru
      _
    // Predicated region
    $region134: #{_lambda_.1} parent=1 // pred_check
      _
    $region135: #{_lambda_.1} parent=1 // pred_check_branch
      %240 = sbr.rel (0) target = $region137
    $region136: #{_lambda_.1} parent=1 // pred_region
      %241 = dma.done [#allocation21], 16
    $region137: #{_lambda_.1} parent=1 // pred_fallthru
      _
    // Predicated region
    $region138: #{_lambda_.1} parent=1 // pred_check
      _
    $region139: #{_lambda_.1} parent=1 // pred_check_branch
      %243 = sbr.rel (0) target = $region141
    $region140: #{_lambda_.1} parent=1 // pred_region
      %244 = dma.done [#allocation24], 16
    $region141: #{_lambda_.1} parent=1 // pred_fallthru
      _
    %v246 = vld [vmem:[#allocation2] sm:$0xff]
    %v247 = vld [vmem:[#allocation2 + $0x8] sm:$0xff]
    %v250 = vrot.slane %v246, 7
    %v251 = vrot.slane %v247, 7
    %vm254 = vcmask 1040384
    %v255 = vsel %vm254, 0.0, %v250
    %v256 = vsel %vm254, 0.0, %v251
    %v257 = vsel %vm254, %v250, 0.0
    %v258 = vsel %vm254, %v251, 0.0
    %vm263 = vcmask 1046528
    %v264 = vrot.slane %v255, 1
    %v265 = vrot.slane %v257, 1
    %v266 = vsel %vm263, %v264, %v265
    %v267 = vrot.slane %v256, 1
    %v268 = vrot.slane %v258, 1
    %v269 = vsel %vm263, %v267, %v268
    %270 = vrot.lane.b32.xlu0 %v266, 16
    %v271 = vpop.permute.xlu0 %270
    %272 = vrot.lane.b32.xlu0 %v269, 16
    %v273 = vpop.permute.xlu0 %272
    %vm276 = vcmask 1045504
    %v277 = vrot.slane %v255, 2
    %v278 = vrot.slane %v257, 2
    %v279 = vsel %vm276, %v277, %v278
    %v280 = vrot.slane %v256, 2
    %v281 = vrot.slane %v258, 2
    %v282 = vsel %vm276, %v280, %v281
    %283 = vrot.lane.b32.xlu0 %v279, 32
    %v284 = vpop.permute.xlu0 %283
    %285 = vrot.lane.b32.xlu0 %v282, 32
    %v286 = vpop.permute.xlu0 %285
    %vm289 = vcmask 130048
    %v290 = vsel %vm289, %v255, %v271
    %v291 = vsel %vm289, %v256, %v273
    %vm292 = vcmask 261120
    %v293 = vsel %vm292, %v290, %v284
    %v294 = vsel %vm292, %v291, %v286
    %v295 = vpack.c.bf16 %v294, %v293
    %v296 = vld [vmem:[#allocation5] sm:$0xf]
    %v297 = vld [vmem:[#allocation5 + $0x4] sm:$0xf]
    %v298 = vld [vmem:[#allocation5 + $0x8] sm:$0xf]
    %v299 = vld [vmem:[#allocation5 + $0xc] sm:$0xf]
    %v300 = vld [vmem:[#allocation5 + $0x10] sm:$0xf]
    %v301 = vld [vmem:[#allocation5 + $0x14] sm:$0xf]
    %v302 = vld [vmem:[#allocation7] sm:$0x1]
    %v304 = vlaneseq
    %v305 = vshrl.u32 %v304, 7
    %v306 = vsub.s32 0, %v305
    %v307 = vrot.slane %v302, %v306
    %v315 = vunpack.c.l.b16 %v296
    %v316 = vunpack.c.l.b16 %v297
    %v317 = vunpack.c.l.b16 %v298
    %v318 = vunpack.c.l.b16 %v299
    %v319 = vunpack.c.l.b16 %v300
    %v320 = vunpack.c.l.b16 %v301
    %v321 = vpack.c.b16 %v316, %v315
    %v322 = vpack.c.b16 %v318, %v317
    %v323 = vpack.c.b16 %v320, %v319
    %vm327 = vcmask 392192
    %v329 = vsel %vm327, %v295, 0
    %331 = vmatprep.subr.bf16.mxu0 0
    %332 = vmatpush1.bf16.msra.mxu0 %v321
    %333 = vmatprep.subr.bf16.mxu0 0
    %334 = vmatpush1.bf16.msra.mxu0 %v322
    %335 = vmatprep.subr.bf16.mxu0 0
    %336 = vmatpush1.bf16.msra.mxu0 %v323
    %337 = vmatprep.subr.bf16.mxu0 0
    %338 = vmatpush1.bf16.msra.mxu0 0
    %339 = vmatprep.subr.bf16.mxu0 0
    %340 = vmatpush1.bf16.msra.mxu0 0
    %341 = vmatprep.subr.bf16.mxu0 0
    %342 = vmatpush1.bf16.msra.mxu0 0
    %343 = vmatprep.subr.bf16.mxu0 0
    %344 = vmatpush1.bf16.msra.mxu0 0
    %345 = vmatprep.subr.bf16.mxu0 0
    %346 = vmatpush1.bf16.msra.mxu0 0
    %347 = vmatprep.subr.bf16.mxu0 0
    %348 = vmatpush1.bf16.msra.mxu0 0
    %349 = vmatprep.subr.bf16.mxu0 0
    %350 = vmatpush1.bf16.msra.mxu0 0
    %351 = vmatprep.subr.bf16.mxu0 0
    %352 = vmatpush1.bf16.msra.mxu0 0
    %353 = vmatprep.subr.bf16.mxu0 0
    %354 = vmatpush1.bf16.msra.mxu0 0
    %355 = vmatprep.subr.bf16.mxu0 0
    %356 = vmatpush1.bf16.msra.mxu0 0
    %357 = vmatprep.subr.bf16.mxu0 0
    %358 = vmatpush1.bf16.msra.mxu0 0
    %359 = vmatprep.subr.bf16.mxu0 0
    %360 = vmatpush1.bf16.msra.mxu0 0
    %361 = vmatprep.subr.bf16.mxu0 0
    %362 = vmatpush1.bf16.msra.mxu0 0
    %363 = vmatprep.mubr.bf16.mxu0 0
    %364 = vmatmul.mubr.bf16.gmra.mrb[0].mxu0 %v329
    %v365 = vpop.f32.mrb[0].mxu0
    %v366 = vadd.f32 %v307, %v365
    %v367 = vpop.f32.mrb[0].mxu0
    %v368 = vpop.f32.mrb[0].mxu0
    %v369 = vadd.f32 %v307, %v368
    %v370 = vpop.f32.mrb[0].mxu0
    %371 = vdwg.mxu0
    %v372 = vmax.f32 %v366, 0.0
    %v373 = vmax.f32 %v369, 0.0
    %v376 = vcombine.high %v372, %v372
    %v378 = vunpack.c.l.s4 1983009808
    %v379 = vunpack.c.0.s8 %v378
    %v380 = vlaneseq
    %v381 = vshrl.u32 %v380, 7
    %v382 = vsub.s32 %v379, %v381
    %v383 = vrot.slane %v372, %v382
    %v385 = vunpack.c.l.s4 1983009808
    %v386 = vunpack.c.0.s8 %v385
    %v387 = vlaneseq
    %v388 = vshrl.u32 %v387, 7
    %v389 = vsub.s32 %v386, %v388
    %v390 = vrot.slane %v376, %v389
    %v391 = vcombine.high %v383, %v383
    %v392 = vcombine.high %v390, %v390
    %v393 = vcombine.high %v373, %v373
    %v395 = vunpack.c.l.s4 1983009808
    %v396 = vunpack.c.0.s8 %v395
    %v397 = vlaneseq
    %v398 = vshrl.u32 %v397, 7
    %v399 = vsub.s32 %v396, %v398
    %v400 = vrot.slane %v373, %v399
    %v402 = vunpack.c.l.s4 1983009808
    %v403 = vunpack.c.0.s8 %v402
    %v404 = vlaneseq
    %v405 = vshrl.u32 %v404, 7
    %v406 = vsub.s32 %v403, %v405
    %v407 = vrot.slane %v393, %v406
    %v408 = vcombine.high %v400, %v400
    %v409 = vcombine.high %v407, %v407
    %v418 = vrot.slane %v383, 7
    %v419 = vrot.slane %v418, 2
    %v420 = vrot.slane %v391, 7
    %v421 = vrot.slane %v420, 2
    %v422 = vrot.slane %v390, 7
    %v423 = vrot.slane %v422, 2
    %v424 = vrot.slane %v392, 7
    %v425 = vrot.slane %v424, 2
    %v426 = vrot.slane %v400, 7
    %v427 = vrot.slane %v426, 2
    %v428 = vrot.slane %v408, 7
    %v429 = vrot.slane %v428, 2
    %v430 = vrot.slane %v407, 7
    %v431 = vrot.slane %v430, 2
    %v432 = vrot.slane %v409, 7
    %v433 = vrot.slane %v432, 2
    %v442 = vmax.f32 %v383, %v419
    %v443 = vmax.f32 %v391, %v421
    %v444 = vmax.f32 %v390, %v423
    %v445 = vmax.f32 %v392, %v425
    %v446 = vmax.f32 %v400, %v427
    %v447 = vmax.f32 %v408, %v429
    %v448 = vmax.f32 %v407, %v431
    %v449 = vmax.f32 %v409, %v433
    %v450 = vpack.c.bf16 %v442, %v442
    %v451 = vpack.c.bf16 %v443, %v443
    %v452 = vpack.c.bf16 %v444, %v444
    %v453 = vpack.c.bf16 %v445, %v445
    %v454 = vpack.c.bf16 %v446, %v446
    %v455 = vpack.c.bf16 %v447, %v447
    %v456 = vpack.c.bf16 %v448, %v448
    %v457 = vpack.c.bf16 %v449, %v449
    %v458 = vld [vmem:[%s3] sm:$0xf]
    %v459 = vld [vmem:[%s3 + $0x4] sm:$0xf]
    %v460 = vld [vmem:[%s3 + $0x8] sm:$0xf]
    %v461 = vld [vmem:[%s3 + $0xc] sm:$0xf]
    %v462 = vld [vmem:[%s3 + $0x10] sm:$0xf]
    %v463 = vld [vmem:[%s3 + $0x14] sm:$0xf]
    %v464 = vld [vmem:[%s3 + $0x18] sm:$0xf]
    %v465 = vld [vmem:[%s3 + $0x1c] sm:$0xf]
    %v466 = vld [vmem:[#allocation10] sm:$0x1]
    %v468 = vlaneseq
    %v469 = vshrl.u32 %v468, 7
    %v470 = vsub.s32 0, %v469
    %v471 = vrot.slane %v466, %v470
    %v481 = vunpack.c.l.b16 %v450
    %v482 = vunpack.c.l.b16 %v451
    %v483 = vunpack.c.l.b16 %v452
    %v484 = vunpack.c.l.b16 %v453
    %v485 = vunpack.c.l.b16 %v454
    %v486 = vunpack.c.l.b16 %v455
    %v487 = vunpack.c.l.b16 %v456
    %v488 = vunpack.c.l.b16 %v457
    %v489 = vrot.slane %v482, 7
    %vm490 = vcmask 1041409
    %v491 = vsel %vm490, %v489, %v481
    %v492 = vrot.slane %v483, 6
    %vm493 = vcmask 1042434
    %v494 = vsel %vm493, %v492, %v491
    %v495 = vrot.slane %v484, 5
    %vm496 = vcmask 1043459
    %v497 = vsel %vm496, %v495, %v494
    %v498 = vrot.slane %v485, 4
    %vm499 = vcmask 1044484
    %v500 = vsel %vm499, %v498, %v497
    %v501 = vrot.slane %v486, 3
    %vm502 = vcmask 1045509
    %v503 = vsel %vm502, %v501, %v500
    %v504 = vrot.slane %v487, 2
    %vm505 = vcmask 1046534
    %v506 = vsel %vm505, %v504, %v503
    %v507 = vrot.slane %v488, 1
    %vm508 = vcmask 1047559
    %v509 = vsel %vm508, %v507, %v506
    %v510 = vpack.c.b16 %v509, %v509
    %v519 = vunpack.c.l.b16 %v458
    %v520 = vunpack.c.l.b16 %v459
    %v521 = vunpack.c.l.b16 %v460
    %v522 = vunpack.c.l.b16 %v461
    %v523 = vunpack.c.l.b16 %v462
    %v524 = vunpack.c.l.b16 %v463
    %v525 = vunpack.c.l.b16 %v464
    %v526 = vunpack.c.l.b16 %v465
    %v527 = vpack.c.b16 %v520, %v519
    %v528 = vpack.c.b16 %v522, %v521
    %v529 = vpack.c.b16 %v524, %v523
    %v530 = vpack.c.b16 %v526, %v525
    %vm535 = vcmask 523264
    %v537 = vsel %vm535, %v510, 0
    %539 = vmatprep.subr.bf16.mxu0 0
    %540 = vmatpush1.bf16.msra.mxu0 %v527
    %541 = vmatprep.subr.bf16.mxu0 0
    %542 = vmatpush1.bf16.msra.mxu0 %v528
    %543 = vmatprep.subr.bf16.mxu0 0
    %544 = vmatpush1.bf16.msra.mxu0 %v529
    %545 = vmatprep.subr.bf16.mxu0 0
    %546 = vmatpush1.bf16.msra.mxu0 %v530
    %547 = vmatprep.subr.bf16.mxu0 0
    %548 = vmatpush1.bf16.msra.mxu0 0
    %549 = vmatprep.subr.bf16.mxu0 0
    %550 = vmatpush1.bf16.msra.mxu0 0
    %551 = vmatprep.subr.bf16.mxu0 0
    %552 = vmatpush1.bf16.msra.mxu0 0
    %553 = vmatprep.subr.bf16.mxu0 0
    %554 = vmatpush1.bf16.msra.mxu0 0
    %555 = vmatprep.subr.bf16.mxu0 0
    %556 = vmatpush1.bf16.msra.mxu0 0
    %557 = vmatprep.subr.bf16.mxu0 0
    %558 = vmatpush1.bf16.msra.mxu0 0
    %559 = vmatprep.subr.bf16.mxu0 0
    %560 = vmatpush1.bf16.msra.mxu0 0
    %561 = vmatprep.subr.bf16.mxu0 0
    %562 = vmatpush1.bf16.msra.mxu0 0
    %563 = vmatprep.subr.bf16.mxu0 0
    %564 = vmatpush1.bf16.msra.mxu0 0
    %565 = vmatprep.subr.bf16.mxu0 0
    %566 = vmatpush1.bf16.msra.mxu0 0
    %567 = vmatprep.subr.bf16.mxu0 0
    %568 = vmatpush1.bf16.msra.mxu0 0
    %569 = vmatprep.subr.bf16.mxu0 0
    %570 = vmatpush1.bf16.msra.mxu0 0
    %571 = vmatprep.mubr.bf16.mxu0 0
    %572 = vmatmul.mubr.bf16.gmra.mrb[0].mxu0 %v537
    %v573 = vpop.f32.mrb[0].mxu0
    %v574 = vadd.f32 %v471, %v573
    %v575 = vpop.f32.mrb[0].mxu0
    %v576 = vpop.f32.mrb[0].mxu0
    %v577 = vpop.f32.mrb[0].mxu0
    %578 = vdwg.mxu0
    %v580 = vcombine.high %v574, %v574
    %v582 = vld [vmem:[#allocation8] sm:$0xf]
    %v583 = vld [vmem:[#allocation8 + $0x4] sm:$0xf]
    %v584 = vld [vmem:[#allocation8 + $0x8] sm:$0xf]
    %v585 = vld [vmem:[#allocation8 + $0xc] sm:$0xf]
    %v586 = vld [vmem:[%s6] sm:$0xf]
    %v587 = vld [vmem:[%s6 + $0x4] sm:$0xf]
    %v588 = vld [vmem:[%s6 + $0x8] sm:$0xf]
    %v589 = vld [vmem:[%s6 + $0xc] sm:$0xf]
    %v590 = vld [vmem:[%s6 + $0x10] sm:$0xf]
    %v591 = vld [vmem:[%s6 + $0x14] sm:$0xf]
    %v592 = vld [vmem:[%s6 + $0x18] sm:$0xf]
    %v593 = vld [vmem:[%s6 + $0x1c] sm:$0xf]
    %v594 = vld [vmem:[%s7] sm:$0x1]
    %v599 = vunpack.c.l.b16 %v582
    %v600 = vunpack.c.l.b16 %v583
    %v601 = vunpack.c.l.b16 %v584
    %v602 = vunpack.c.l.b16 %v585
    %v603 = vpack.c.b16 %v600, %v599
    %v604 = vpack.c.b16 %v602, %v601
    %v608 = vsel %vm292, 0, 0
    %610 = vmatprep.subr.bf16.mxu0 0
    %611 = vmatpush1.bf16.msra.mxu0 %v603
    %612 = vmatprep.subr.bf16.mxu0 0
    %613 = vmatpush1.bf16.msra.mxu0 %v604
    %614 = vmatprep.subr.bf16.mxu0 0
    %615 = vmatpush1.bf16.msra.mxu0 0
    %616 = vmatprep.subr.bf16.mxu0 0
    %617 = vmatpush1.bf16.msra.mxu0 0
    %618 = vmatprep.subr.bf16.mxu0 0
    %619 = vmatpush1.bf16.msra.mxu0 0
    %620 = vmatprep.subr.bf16.mxu0 0
    %621 = vmatpush1.bf16.msra.mxu0 0
    %622 = vmatprep.subr.bf16.mxu0 0
    %623 = vmatpush1.bf16.msra.mxu0 0
    %624 = vmatprep.subr.bf16.mxu0 0
    %625 = vmatpush1.bf16.msra.mxu0 0
    %626 = vmatprep.subr.bf16.mxu0 0
    %627 = vmatpush1.bf16.msra.mxu0 0
    %628 = vmatprep.subr.bf16.mxu0 0
    %629 = vmatpush1.bf16.msra.mxu0 0
    %630 = vmatprep.subr.bf16.mxu0 0
    %631 = vmatpush1.bf16.msra.mxu0 0
    %632 = vmatprep.subr.bf16.mxu0 0
    %633 = vmatpush1.bf16.msra.mxu0 0
    %634 = vmatprep.subr.bf16.mxu0 0
    %635 = vmatpush1.bf16.msra.mxu0 0
    %636 = vmatprep.subr.bf16.mxu0 0
    %637 = vmatpush1.bf16.msra.mxu0 0
    %638 = vmatprep.subr.bf16.mxu0 0
    %639 = vmatpush1.bf16.msra.mxu0 0
    %640 = vmatprep.subr.bf16.mxu0 0
    %641 = vmatpush1.bf16.msra.mxu0 0
    %642 = vmatprep.mubr.bf16.mxu0 0
    %643 = vmatmul.mubr.bf16.gmra.mrb[0].mxu0 %v608
    %v644 = vpop.f32.mrb[0].mxu0
    %v645 = vadd.f32 0.0, %v644
    %v646 = vpop.f32.mrb[0].mxu0
    %v647 = vpop.f32.mrb[0].mxu0
    %v648 = vpop.f32.mrb[0].mxu0
    %649 = vdwg.mxu0
    %v651 = vrot.slane %v645, 1
    %v654 = vadd.f32 %v574, %v645
    %v655 = vadd.f32 %v580, %v651
    %v656 = vxor.u32 %v654, 2147483648
    %v657 = vxor.u32 %v655, 2147483648
    %v658 = vmul.f32 %v656, 1.442695
    %v659 = vpow.pop %v658
    %v660 = vmul.f32 %v657, 1.442695
    %v661 = vpow.pop %v660
    %v662 = vadd.f32 %v659, 1.0
    %v663 = vadd.f32 %v661, 1.0
    %v664 = vrcp.pop %v662
    %v665 = vmul.f32 1.0, %v664
    %v666 = vrcp.pop %v663
    %v667 = vmul.f32 1.0, %v666
    %v668 = vtanh.pop %v654
    %v669 = vtanh.pop %v655
    %v670 = vmul.f32 %v665, 0.0
    %v671 = vmul.f32 %v667, 0.0
    %674 = vrot.lane.b32.xlu0 %v668, 64
    %v675 = vpop.permute.xlu0 %674
    %676 = vrot.lane.b32.xlu0 %v669, 64
    %v677 = vpop.permute.xlu0 %676
    %v680 = vmul.f32 %v665, %v675
    %v681 = vmul.f32 %v667, %v677
    %684 = vrot.lane.b32.xlu0 %v680, 32
    %v685 = vpop.permute.xlu0 %684
    %686 = vrot.lane.b32.xlu0 %v681, 32
    %v687 = vpop.permute.xlu0 %686
    %v690 = vadd.f32 %v670, %v685
    %v691 = vadd.f32 %v671, %v687
    %v692 = vtanh.pop %v690
    %v693 = vtanh.pop %v691
    %696 = vrot.lane.b32.xlu0 %v692, 64
    %v697 = vpop.permute.xlu0 %696
    %698 = vrot.lane.b32.xlu0 %v693, 64
    %v699 = vpop.permute.xlu0 %698
    %v702 = vmul.f32 %v665, %v697
    %v703 = vmul.f32 %v667, %v699
    %v706 = vlaneseq
    %v707 = vshrl.u32 %v706, 7
    %v708 = vsub.s32 0, %v707
    %v709 = vrot.slane %v702, %v708
    %v710 = vlaneseq
    %v711 = vshrl.u32 %v710, 7
    %v712 = vsub.s32 0, %v711
    %v713 = vrot.slane %v703, %v712
    %v714 = vsel %vm490, %v713, %v709
    %715 = vrot.lane.b32.xlu0 %v714, 32
    %v716 = vpop.permute.xlu0 %715
    %v718 = vsel %vm292, %v716, 0.0
    %v719 = vpack.c.bf16 %v718, %v718
    %v721 = vlaneseq
    %v722 = vshrl.u32 %v721, 7
    %v723 = vsub.s32 0, %v722
    %v724 = vrot.slane %v594, %v723
    %v734 = vunpack.c.l.b16 %v586
    %v735 = vunpack.c.l.b16 %v587
    %v736 = vunpack.c.l.b16 %v588
    %v737 = vunpack.c.l.b16 %v589
    %v738 = vunpack.c.l.b16 %v590
    %v739 = vunpack.c.l.b16 %v591
    %v740 = vunpack.c.l.b16 %v592
    %v741 = vunpack.c.l.b16 %v593
    %v742 = vpack.c.b16 %v735, %v734
    %v743 = vpack.c.b16 %v737, %v736
    %v744 = vpack.c.b16 %v739, %v738
    %v745 = vpack.c.b16 %v741, %v740
    %v751 = vsel %vm535, %v719, 0
    %753 = vmatprep.subr.bf16.mxu0 0
    %754 = vmatpush1.bf16.msra.mxu0 %v742
    %755 = vmatprep.subr.bf16.mxu0 0
    %756 = vmatpush1.bf16.msra.mxu0 %v743
    %757 = vmatprep.subr.bf16.mxu0 0
    %758 = vmatpush1.bf16.msra.mxu0 %v744
    %759 = vmatprep.subr.bf16.mxu0 0
    %760 = vmatpush1.bf16.msra.mxu0 %v745
    %761 = vmatprep.subr.bf16.mxu0 0
    %762 = vmatpush1.bf16.msra.mxu0 0
    %763 = vmatprep.subr.bf16.mxu0 0
    %764 = vmatpush1.bf16.msra.mxu0 0
    %765 = vmatprep.subr.bf16.mxu0 0
    %766 = vmatpush1.bf16.msra.mxu0 0
    %767 = vmatprep.subr.bf16.mxu0 0
    %768 = vmatpush1.bf16.msra.mxu0 0
    %769 = vmatprep.subr.bf16.mxu0 0
    %770 = vmatpush1.bf16.msra.mxu0 0
    %771 = vmatprep.subr.bf16.mxu0 0
    %772 = vmatpush1.bf16.msra.mxu0 0
    %773 = vmatprep.subr.bf16.mxu0 0
    %774 = vmatpush1.bf16.msra.mxu0 0
    %775 = vmatprep.subr.bf16.mxu0 0
    %776 = vmatpush1.bf16.msra.mxu0 0
    %777 = vmatprep.subr.bf16.mxu0 0
    %778 = vmatpush1.bf16.msra.mxu0 0
    %779 = vmatprep.subr.bf16.mxu0 0
    %780 = vmatpush1.bf16.msra.mxu0 0
    %781 = vmatprep.subr.bf16.mxu0 0
    %782 = vmatpush1.bf16.msra.mxu0 0
    %783 = vmatprep.subr.bf16.mxu0 0
    %784 = vmatpush1.bf16.msra.mxu0 0
    %785 = vmatprep.mubr.bf16.mxu0 0
    %786 = vmatmul.mubr.bf16.gmra.mrb[0].mxu0 %v751
    %v787 = vpop.f32.mrb[0].mxu0
    %v788 = vadd.f32 %v724, %v787
    %v789 = vpop.f32.mrb[0].mxu0
    %v790 = vpop.f32.mrb[0].mxu0
    %v791 = vpop.f32.mrb[0].mxu0
    %792 = vdwg.mxu0
    %v793 = vxor.u32 %v788, 2147483648
    %v794 = vmul.f32 %v793, 1.442695
    %v795 = vpow.pop %v794
    %v796 = vadd.f32 %v795, 1.0
    %v797 = vrcp.pop %v796
    %v798 = vmul.f32 1.0, %v797
    %v799 = vtanh.pop %v788
    %v800 = vmul.f32 %v798, 0.0
    %802 = vrot.lane.b32.xlu0 %v799, 64
    %v803 = vpop.permute.xlu0 %802
    %v805 = vmul.f32 %v798, %v803
    %807 = vrot.lane.b32.xlu0 %v805, 32
    %v808 = vpop.permute.xlu0 %807
    %v810 = vadd.f32 %v800, %v808
    %v811 = vtanh.pop %v810
    %813 = vrot.lane.b32.xlu0 %v811, 64
    %v814 = vpop.permute.xlu0 %813
    %v816 = vmul.f32 %v798, %v814
    %v819 = vunpack.c.l.s4 1966171168
    %v820 = vunpack.c.0.s8 %v819
    %v821 = vlaneseq
    %v822 = vshrl.u32 %v821, 7
    %v823 = vsub.s32 %v820, %v822
    %v824 = vrot.slane %v816, %v823
    %v825 = vcombine.high %v824, %v824
    %v827 = vunpack.c.l.s4 1966171168
    %v828 = vunpack.c.0.s8 %v827
    %v829 = vlaneseq
    %v830 = vshrl.u32 %v829, 7
    %v831 = vsub.s32 %v828, %v830
    %v832 = vrot.slane %v824, %v831
    %v834 = vunpack.c.l.s4 1966171168
    %v835 = vunpack.c.0.s8 %v834
    %v836 = vlaneseq
    %v837 = vshrl.u32 %v836, 7
    %v838 = vsub.s32 %v835, %v837
    %v839 = vrot.slane %v825, %v838
    %v842 = vpack.c.bf16 %v702, %v702
    %v843 = vpack.c.bf16 %v703, %v703
    %v846 = vunpack.c.l.b16 %v842
    %v847 = vunpack.c.l.b16 %v843
    %v848 = vrot.slane %v847, 7
    %v849 = vsel %vm490, %v848, %v846
    %v850 = vpack.c.b16 %v849, %v849
    %851 = vrot.lane.b32.xlu0 %v850, 32
    %v852 = vpop.permute.xlu0 %851
    %v854 = vsel %vm292, %v852, 0
    %856 = vmatprep.subr.bf16.mxu0 0
    %857 = vmatpush1.bf16.msra.mxu0 %v603
    %858 = vmatprep.subr.bf16.mxu0 0
    %859 = vmatpush1.bf16.msra.mxu0 %v604
    %860 = vmatprep.subr.bf16.mxu0 0
    %861 = vmatpush1.bf16.msra.mxu0 0
    %862 = vmatprep.subr.bf16.mxu0 0
    %863 = vmatpush1.bf16.msra.mxu0 0
    %864 = vmatprep.subr.bf16.mxu0 0
    %865 = vmatpush1.bf16.msra.mxu0 0
    %866 = vmatprep.subr.bf16.mxu0 0
    %867 = vmatpush1.bf16.msra.mxu0 0
    %868 = vmatprep.subr.bf16.mxu0 0
    %869 = vmatpush1.bf16.msra.mxu0 0
    %870 = vmatprep.subr.bf16.mxu0 0
    %871 = vmatpush1.bf16.msra.mxu0 0
    %872 = vmatprep.subr.bf16.mxu0 0
    %873 = vmatpush1.bf16.msra.mxu0 0
    %874 = vmatprep.subr.bf16.mxu0 0
    %875 = vmatpush1.bf16.msra.mxu0 0
    %876 = vmatprep.subr.bf16.mxu0 0
    %877 = vmatpush1.bf16.msra.mxu0 0
    %878 = vmatprep.subr.bf16.mxu0 0
    %879 = vmatpush1.bf16.msra.mxu0 0
    %880 = vmatprep.subr.bf16.mxu0 0
    %881 = vmatpush1.bf16.msra.mxu0 0
    %882 = vmatprep.subr.bf16.mxu0 0
    %883 = vmatpush1.bf16.msra.mxu0 0
    %884 = vmatprep.subr.bf16.mxu0 0
    %885 = vmatpush1.bf16.msra.mxu0 0
    %886 = vmatprep.subr.bf16.mxu0 0
    %887 = vmatpush1.bf16.msra.mxu0 0
    %888 = vmatprep.mubr.bf16.mxu0 0
    %889 = vmatmul.mubr.bf16.gmra.mrb[0].mxu0 %v854
    %v890 = vpop.f32.mrb[0].mxu0
    %v891 = vadd.f32 0.0, %v890
    %v892 = vpop.f32.mrb[0].mxu0
    %v893 = vpop.f32.mrb[0].mxu0
    %v894 = vpop.f32.mrb[0].mxu0
    %895 = vdwg.mxu0
    %v897 = vrot.slane %v891, 7
    %v900 = vadd.f32 %v574, %v897
    %v901 = vadd.f32 %v580, %v891
    %v902 = vxor.u32 %v900, 2147483648
    %v903 = vxor.u32 %v901, 2147483648
    %v904 = vmul.f32 %v902, 1.442695
    %v905 = vpow.pop %v904
    %v906 = vmul.f32 %v903, 1.442695
    %v907 = vpow.pop %v906
    %v908 = vadd.f32 %v905, 1.0
    %v909 = vadd.f32 %v907, 1.0
    %v910 = vrcp.pop %v908
    %v911 = vmul.f32 1.0, %v910
    %v912 = vrcp.pop %v909
    %v913 = vmul.f32 1.0, %v912
    %v914 = vtanh.pop %v900
    %v915 = vtanh.pop %v901
    %v918 = vrot.slane %v690, 7
    %v919 = vrot.slane %v691, 7
    %v922 = vmul.f32 %v911, %v918
    %v923 = vmul.f32 %v913, %v919
    %926 = vrot.lane.b32.xlu0 %v914, 64
    %v927 = vpop.permute.xlu0 %926
    %928 = vrot.lane.b32.xlu0 %v915, 64
    %v929 = vpop.permute.xlu0 %928
    %v932 = vmul.f32 %v911, %v927
    %v933 = vmul.f32 %v913, %v929
    %936 = vrot.lane.b32.xlu0 %v932, 32
    %v937 = vpop.permute.xlu0 %936
    %938 = vrot.lane.b32.xlu0 %v933, 32
    %v939 = vpop.permute.xlu0 %938
    %v942 = vadd.f32 %v922, %v937
    %v943 = vadd.f32 %v923, %v939
    %v944 = vtanh.pop %v942
    %v945 = vtanh.pop %v943
    %948 = vrot.lane.b32.xlu0 %v944, 64
    %v949 = vpop.permute.xlu0 %948
    %950 = vrot.lane.b32.xlu0 %v945, 64
    %v951 = vpop.permute.xlu0 %950
    %v954 = vmul.f32 %v911, %v949
    %v955 = vmul.f32 %v913, %v951
    %v958 = vlaneseq
    %v959 = vshrl.u32 %v958, 7
    %v960 = vsub.s32 1, %v959
    %v961 = vrot.slane %v954, %v960
    %v962 = vlaneseq
    %v963 = vshrl.u32 %v962, 7
    %v964 = vsub.s32 1, %v963
    %v965 = vrot.slane %v955, %v964
    %v966 = vsel %vm493, %v965, %v961
    %967 = vrot.lane.b32.xlu0 %v966, 32
    %v968 = vpop.permute.xlu0 %967
    %v970 = vrot.slane %v816, 7
    %971 = vrot.lane.b32.xlu0 %v970, 64
    %v972 = vpop.permute.xlu0 %971
    %v974 = vsel %vm292, %v968, %v972
    %v975 = vpack.c.bf16 %v974, %v974
    %v977 = vshrl.u32 %v975, 16
    %v979 = vshll.u32 %v975, 16
    %v981 = vrot.slane %v979, 1
    %v982 = vor.u32 %v977, %v981
    %v984 = vsel %vm535, %v982, 0
    %986 = vmatprep.subr.bf16.mxu0 0
    %987 = vmatpush1.bf16.msra.mxu0 %v742
    %988 = vmatprep.subr.bf16.mxu0 0
    %989 = vmatpush1.bf16.msra.mxu0 %v743
    %990 = vmatprep.subr.bf16.mxu0 0
    %991 = vmatpush1.bf16.msra.mxu0 %v744
    %992 = vmatprep.subr.bf16.mxu0 0
    %993 = vmatpush1.bf16.msra.mxu0 %v745
    %994 = vmatprep.subr.bf16.mxu0 0
    %995 = vmatpush1.bf16.msra.mxu0 0
    %996 = vmatprep.subr.bf16.mxu0 0
    %997 = vmatpush1.bf16.msra.mxu0 0
    %998 = vmatprep.subr.bf16.mxu0 0
    %999 = vmatpush1.bf16.msra.mxu0 0
    %1000 = vmatprep.subr.bf16.mxu0 0
    %1001 = vmatpush1.bf16.msra.mxu0 0
    %1002 = vmatprep.subr.bf16.mxu0 0
    %1003 = vmatpush1.bf16.msra.mxu0 0
    %1004 = vmatprep.subr.bf16.mxu0 0
    %1005 = vmatpush1.bf16.msra.mxu0 0
    %1006 = vmatprep.subr.bf16.mxu0 0
    %1007 = vmatpush1.bf16.msra.mxu0 0
    %1008 = vmatprep.subr.bf16.mxu0 0
    %1009 = vmatpush1.bf16.msra.mxu0 0
    %1010 = vmatprep.subr.bf16.mxu0 0
    %1011 = vmatpush1.bf16.msra.mxu0 0
    %1012 = vmatprep.subr.bf16.mxu0 0
    %1013 = vmatpush1.bf16.msra.mxu0 0
    %1014 = vmatprep.subr.bf16.mxu0 0
    %1015 = vmatpush1.bf16.msra.mxu0 0
    %1016 = vmatprep.subr.bf16.mxu0 0
    %1017 = vmatpush1.bf16.msra.mxu0 0
    %1018 = vmatprep.mubr.bf16.mxu0 0
    %1019 = vmatmul.mubr.bf16.gmra.mrb[0].mxu0 %v984
    %v1020 = vpop.f32.mrb[0].mxu0
    %v1021 = vadd.f32 %v724, %v1020
    %v1022 = vpop.f32.mrb[0].mxu0
    %v1023 = vpop.f32.mrb[0].mxu0
    %v1024 = vpop.f32.mrb[0].mxu0
    %1025 = vdwg.mxu0
    %v1026 = vxor.u32 %v1021, 2147483648
    %v1027 = vmul.f32 %v1026, 1.442695
    %v1028 = vpow.pop %v1027
    %v1029 = vadd.f32 %v1028, 1.0
    %v1030 = vrcp.pop %v1029
    %v1031 = vmul.f32 1.0, %v1030
    %v1032 = vtanh.pop %v1021
    %v1033 = vmul.f32 %v1031, %v810
    %1035 = vrot.lane.b32.xlu0 %v1032, 64
    %v1036 = vpop.permute.xlu0 %1035
    %v1038 = vmul.f32 %v1031, %v1036
    %1040 = vrot.lane.b32.xlu0 %v1038, 32
    %v1041 = vpop.permute.xlu0 %1040
    %v1043 = vadd.f32 %v1033, %v1041
    %v1044 = vtanh.pop %v1043
    %1046 = vrot.lane.b32.xlu0 %v1044, 64
    %v1047 = vpop.permute.xlu0 %1046
    %v1049 = vmul.f32 %v1031, %v1047
    %v1052 = vunpack.c.l.s4 1966171168
    %v1053 = vunpack.c.0.s8 %v1052
    %v1054 = vlaneseq
    %v1055 = vshrl.u32 %v1054, 7
    %v1056 = vsub.s32 %v1053, %v1055
    %v1057 = vrot.slane %v1049, %v1056
    %v1058 = vcombine.high %v1057, %v1057
    %v1060 = vunpack.c.l.s4 1966171168
    %v1061 = vunpack.c.0.s8 %v1060
    %v1062 = vlaneseq
    %v1063 = vshrl.u32 %v1062, 7
    %v1064 = vsub.s32 %v1061, %v1063
    %v1065 = vrot.slane %v1057, %v1064
    %v1067 = vunpack.c.l.s4 1966171168
    %v1068 = vunpack.c.0.s8 %v1067
    %v1069 = vlaneseq
    %v1070 = vshrl.u32 %v1069, 7
    %v1071 = vsub.s32 %v1068, %v1070
    %v1072 = vrot.slane %v1058, %v1071
    %v1073 = vpack.c.bf16 %v954, %v954
    %v1074 = vpack.c.bf16 %v955, %v955
    %v1077 = vunpack.c.l.b16 %v1073
    %v1078 = vunpack.c.l.b16 %v1074
    %v1079 = vrot.slane %v1077, 1
    %v1080 = vsel %vm490, %v1078, %v1079
    %v1081 = vpack.c.b16 %v1080, %v1080
    %1082 = vrot.lane.b32.xlu0 %v1081, 32
    %v1083 = vpop.permute.xlu0 %1082
    %v1085 = vsel %vm292, %v1083, 0
    %1087 = vmatprep.subr.bf16.mxu0 0
    %1088 = vmatpush1.bf16.msra.mxu0 %v603
    %1089 = vmatprep.subr.bf16.mxu0 0
    %1090 = vmatpush1.bf16.msra.mxu0 %v604
    %1091 = vmatprep.subr.bf16.mxu0 0
    %1092 = vmatpush1.bf16.msra.mxu0 0
    %1093 = vmatprep.subr.bf16.mxu0 0
    %1094 = vmatpush1.bf16.msra.mxu0 0
    %1095 = vmatprep.subr.bf16.mxu0 0
    %1096 = vmatpush1.bf16.msra.mxu0 0
    %1097 = vmatprep.subr.bf16.mxu0 0
    %1098 = vmatpush1.bf16.msra.mxu0 0
    %1099 = vmatprep.subr.bf16.mxu0 0
    %1100 = vmatpush1.bf16.msra.mxu0 0
    %1101 = vmatprep.subr.bf16.mxu0 0
    %1102 = vmatpush1.bf16.msra.mxu0 0
    %1103 = vmatprep.subr.bf16.mxu0 0
    %1104 = vmatpush1.bf16.msra.mxu0 0
    %1105 = vmatprep.subr.bf16.mxu0 0
    %1106 = vmatpush1.bf16.msra.mxu0 0
    %1107 = vmatprep.subr.bf16.mxu0 0
    %1108 = vmatpush1.bf16.msra.mxu0 0
    %1109 = vmatprep.subr.bf16.mxu0 0
    %1110 = vmatpush1.bf16.msra.mxu0 0
    %1111 = vmatprep.subr.bf16.mxu0 0
    %1112 = vmatpush1.bf16.msra.mxu0 0
    %1113 = vmatprep.subr.bf16.mxu0 0
    %1114 = vmatpush1.bf16.msra.mxu0 0
    %1115 = vmatprep.subr.bf16.mxu0 0
    %1116 = vmatpush1.bf16.msra.mxu0 0
    %1117 = vmatprep.subr.bf16.mxu0 0
    %1118 = vmatpush1.bf16.msra.mxu0 0
    %1119 = vmatprep.mubr.bf16.mxu0 0
    %1120 = vmatmul.mubr.bf16.gmra.mrb[0].mxu0 %v1085
    %v1121 = vpop.f32.mrb[0].mxu0
    %v1122 = vadd.f32 0.0, %v1121
    %v1123 = vpop.f32.mrb[0].mxu0
    %v1124 = vpop.f32.mrb[0].mxu0
    %v1125 = vpop.f32.mrb[0].mxu0
    %1126 = vdwg.mxu0
    %v1128 = vrot.slane %v1122, 6
    %v1129 = vrot.slane %v1122, 7
    %v1132 = vadd.f32 %v574, %v1128
    %v1133 = vadd.f32 %v580, %v1129
    %v1134 = vxor.u32 %v1132, 2147483648
    %v1135 = vxor.u32 %v1133, 2147483648
    %v1136 = vmul.f32 %v1134, 1.442695
    %v1137 = vpow.pop %v1136
    %v1138 = vmul.f32 %v1135, 1.442695
    %v1139 = vpow.pop %v1138
    %v1140 = vadd.f32 %v1137, 1.0
    %v1141 = vadd.f32 %v1139, 1.0
    %v1142 = vrcp.pop %v1140
    %v1143 = vmul.f32 1.0, %v1142
    %v1144 = vrcp.pop %v1141
    %v1145 = vmul.f32 1.0, %v1144
    %v1146 = vtanh.pop %v1132
    %v1147 = vtanh.pop %v1133
    %v1150 = vrot.slane %v942, 7
    %v1151 = vrot.slane %v943, 7
    %v1154 = vmul.f32 %v1143, %v1150
    %v1155 = vmul.f32 %v1145, %v1151
    %1158 = vrot.lane.b32.xlu0 %v1146, 64
    %v1159 = vpop.permute.xlu0 %1158
    %1160 = vrot.lane.b32.xlu0 %v1147, 64
    %v1161 = vpop.permute.xlu0 %1160
    %v1164 = vmul.f32 %v1143, %v1159
    %v1165 = vmul.f32 %v1145, %v1161
    %1168 = vrot.lane.b32.xlu0 %v1164, 32
    %v1169 = vpop.permute.xlu0 %1168
    %1170 = vrot.lane.b32.xlu0 %v1165, 32
    %v1171 = vpop.permute.xlu0 %1170
    %v1174 = vadd.f32 %v1154, %v1169
    %v1175 = vadd.f32 %v1155, %v1171
    %v1176 = vtanh.pop %v1174
    %v1177 = vtanh.pop %v1175
    %1180 = vrot.lane.b32.xlu0 %v1176, 64
    %v1181 = vpop.permute.xlu0 %1180
    %1182 = vrot.lane.b32.xlu0 %v1177, 64
    %v1183 = vpop.permute.xlu0 %1182
    %v1186 = vmul.f32 %v1143, %v1181
    %v1187 = vmul.f32 %v1145, %v1183
    %v1190 = vlaneseq
    %v1191 = vshrl.u32 %v1190, 7
    %v1192 = vsub.s32 2, %v1191
    %v1193 = vrot.slane %v1186, %v1192
    %v1194 = vlaneseq
    %v1195 = vshrl.u32 %v1194, 7
    %v1196 = vsub.s32 2, %v1195
    %v1197 = vrot.slane %v1187, %v1196
    %v1198 = vsel %vm496, %v1197, %v1193
    %1199 = vrot.lane.b32.xlu0 %v1198, 32
    %v1200 = vpop.permute.xlu0 %1199
    %v1202 = vrot.slane %v1049, 6
    %1203 = vrot.lane.b32.xlu0 %v1202, 64
    %v1204 = vpop.permute.xlu0 %1203
    %v1206 = vsel %vm292, %v1200, %v1204
    %v1207 = vpack.c.bf16 %v1206, %v1206
    %v1209 = vrot.slane %v1207, 1
    %v1211 = vsel %vm535, %v1209, 0
    %1213 = vmatprep.subr.bf16.mxu0 0
    %1214 = vmatpush1.bf16.msra.mxu0 %v742
    %1215 = vmatprep.subr.bf16.mxu0 0
    %1216 = vmatpush1.bf16.msra.mxu0 %v743
    %1217 = vmatprep.subr.bf16.mxu0 0
    %1218 = vmatpush1.bf16.msra.mxu0 %v744
    %1219 = vmatprep.subr.bf16.mxu0 0
    %1220 = vmatpush1.bf16.msra.mxu0 %v745
    %1221 = vmatprep.subr.bf16.mxu0 0
    %1222 = vmatpush1.bf16.msra.mxu0 0
    %1223 = vmatprep.subr.bf16.mxu0 0
    %1224 = vmatpush1.bf16.msra.mxu0 0
    %1225 = vmatprep.subr.bf16.mxu0 0
    %1226 = vmatpush1.bf16.msra.mxu0 0
    %1227 = vmatprep.subr.bf16.mxu0 0
    %1228 = vmatpush1.bf16.msra.mxu0 0
    %1229 = vmatprep.subr.bf16.mxu0 0
    %1230 = vmatpush1.bf16.msra.mxu0 0
    %1231 = vmatprep.subr.bf16.mxu0 0
    %1232 = vmatpush1.bf16.msra.mxu0 0
    %1233 = vmatprep.subr.bf16.mxu0 0
    %1234 = vmatpush1.bf16.msra.mxu0 0
    %1235 = vmatprep.subr.bf16.mxu0 0
    %1236 = vmatpush1.bf16.msra.mxu0 0
    %1237 = vmatprep.subr.bf16.mxu0 0
    %1238 = vmatpush1.bf16.msra.mxu0 0
    %1239 = vmatprep.subr.bf16.mxu0 0
    %1240 = vmatpush1.bf16.msra.mxu0 0
    %1241 = vmatprep.subr.bf16.mxu0 0
    %1242 = vmatpush1.bf16.msra.mxu0 0
    %1243 = vmatprep.subr.bf16.mxu0 0
    %1244 = vmatpush1.bf16.msra.mxu0 0
    %1245 = vmatprep.mubr.bf16.mxu0 0
    %1246 = vmatmul.mubr.bf16.gmra.mrb[0].mxu0 %v1211
    %v1247 = vpop.f32.mrb[0].mxu0
    %v1248 = vadd.f32 %v724, %v1247
    %v1249 = vpop.f32.mrb[0].mxu0
    %v1250 = vpop.f32.mrb[0].mxu0
    %v1251 = vpop.f32.mrb[0].mxu0
    %1252 = vdwg.mxu0
    %v1253 = vxor.u32 %v1248, 2147483648
    %v1254 = vmul.f32 %v1253, 1.442695
    %v1255 = vpow.pop %v1254
    %v1256 = vadd.f32 %v1255, 1.0
    %v1257 = vrcp.pop %v1256
    %v1258 = vmul.f32 1.0, %v1257
    %v1259 = vtanh.pop %v1248
    %v1260 = vmul.f32 %v1258, %v1043
    %1262 = vrot.lane.b32.xlu0 %v1259, 64
    %v1263 = vpop.permute.xlu0 %1262
    %v1265 = vmul.f32 %v1258, %v1263
    %1267 = vrot.lane.b32.xlu0 %v1265, 32
    %v1268 = vpop.permute.xlu0 %1267
    %v1270 = vadd.f32 %v1260, %v1268
    %v1271 = vtanh.pop %v1270
    %1273 = vrot.lane.b32.xlu0 %v1271, 64
    %v1274 = vpop.permute.xlu0 %1273
    %v1276 = vmul.f32 %v1258, %v1274
    %v1279 = vunpack.c.l.s4 1966171168
    %v1280 = vunpack.c.0.s8 %v1279
    %v1281 = vlaneseq
    %v1282 = vshrl.u32 %v1281, 7
    %v1283 = vsub.s32 %v1280, %v1282
    %v1284 = vrot.slane %v1276, %v1283
    %v1285 = vcombine.high %v1284, %v1284
    %v1287 = vunpack.c.l.s4 1966171168
    %v1288 = vunpack.c.0.s8 %v1287
    %v1289 = vlaneseq
    %v1290 = vshrl.u32 %v1289, 7
    %v1291 = vsub.s32 %v1288, %v1290
    %v1292 = vrot.slane %v1284, %v1291
    %v1294 = vunpack.c.l.s4 1966171168
    %v1295 = vunpack.c.0.s8 %v1294
    %v1296 = vlaneseq
    %v1297 = vshrl.u32 %v1296, 7
    %v1298 = vsub.s32 %v1295, %v1297
    %v1299 = vrot.slane %v1285, %v1298
    %v1300 = vpack.c.bf16 %v1186, %v1186
    %v1301 = vpack.c.bf16 %v1187, %v1187
    %v1304 = vunpack.c.l.b16 %v1300
    %v1305 = vunpack.c.l.b16 %v1301
    %v1306 = vrot.slane %v1304, 2
    %v1307 = vrot.slane %v1305, 1
    %v1308 = vsel %vm490, %v1307, %v1306
    %v1309 = vpack.c.b16 %v1308, %v1308
    %1310 = vrot.lane.b32.xlu0 %v1309, 32
    %v1311 = vpop.permute.xlu0 %1310
    %v1313 = vsel %vm292, %v1311, 0
    %1315 = vmatprep.subr.bf16.mxu0 0
    %1316 = vmatpush1.bf16.msra.mxu0 %v603
    %1317 = vmatprep.subr.bf16.mxu0 0
    %1318 = vmatpush1.bf16.msra.mxu0 %v604
    %1319 = vmatprep.subr.bf16.mxu0 0
    %1320 = vmatpush1.bf16.msra.mxu0 0
    %1321 = vmatprep.subr.bf16.mxu0 0
    %1322 = vmatpush1.bf16.msra.mxu0 0
    %1323 = vmatprep.subr.bf16.mxu0 0
    %1324 = vmatpush1.bf16.msra.mxu0 0
    %1325 = vmatprep.subr.bf16.mxu0 0
    %1326 = vmatpush1.bf16.msra.mxu0 0
    %1327 = vmatprep.subr.bf16.mxu0 0
    %1328 = vmatpush1.bf16.msra.mxu0 0
    %1329 = vmatprep.subr.bf16.mxu0 0
    %1330 = vmatpush1.bf16.msra.mxu0 0
    %1331 = vmatprep.subr.bf16.mxu0 0
    %1332 = vmatpush1.bf16.msra.mxu0 0
    %1333 = vmatprep.subr.bf16.mxu0 0
    %1334 = vmatpush1.bf16.msra.mxu0 0
    %1335 = vmatprep.subr.bf16.mxu0 0
    %1336 = vmatpush1.bf16.msra.mxu0 0
    %1337 = vmatprep.subr.bf16.mxu0 0
    %1338 = vmatpush1.bf16.msra.mxu0 0
    %1339 = vmatprep.subr.bf16.mxu0 0
    %1340 = vmatpush1.bf16.msra.mxu0 0
    %1341 = vmatprep.subr.bf16.mxu0 0
    %1342 = vmatpush1.bf16.msra.mxu0 0
    %1343 = vmatprep.subr.bf16.mxu0 0
    %1344 = vmatpush1.bf16.msra.mxu0 0
    %1345 = vmatprep.subr.bf16.mxu0 0
    %1346 = vmatpush1.bf16.msra.mxu0 0
    %1347 = vmatprep.mubr.bf16.mxu0 0
    %1348 = vmatmul.mubr.bf16.gmra.mrb[0].mxu0 %v1313
    %v1349 = vpop.f32.mrb[0].mxu0
    %v1350 = vadd.f32 0.0, %v1349
    %v1351 = vpop.f32.mrb[0].mxu0
    %v1352 = vpop.f32.mrb[0].mxu0
    %v1353 = vpop.f32.mrb[0].mxu0
    %1354 = vdwg.mxu0
    %v1356 = vrot.slane %v1350, 5
    %v1357 = vrot.slane %v1350, 6
    %v1360 = vadd.f32 %v574, %v1356
    %v1361 = vadd.f32 %v580, %v1357
    %v1362 = vxor.u32 %v1360, 2147483648
    %v1363 = vxor.u32 %v1361, 2147483648
    %v1364 = vmul.f32 %v1362, 1.442695
    %v1365 = vpow.pop %v1364
    %v1366 = vmul.f32 %v1363, 1.442695
    %v1367 = vpow.pop %v1366
    %v1368 = vadd.f32 %v1365, 1.0
    %v1369 = vadd.f32 %v1367, 1.0
    %v1370 = vrcp.pop %v1368
    %v1371 = vmul.f32 1.0, %v1370
    %v1372 = vrcp.pop %v1369
    %v1373 = vmul.f32 1.0, %v1372
    %v1374 = vtanh.pop %v1360
    %v1375 = vtanh.pop %v1361
    %v1378 = vrot.slane %v1174, 7
    %v1379 = vrot.slane %v1175, 7
    %v1382 = vmul.f32 %v1371, %v1378
    %v1383 = vmul.f32 %v1373, %v1379
    %1386 = vrot.lane.b32.xlu0 %v1374, 64
    %v1387 = vpop.permute.xlu0 %1386
    %1388 = vrot.lane.b32.xlu0 %v1375, 64
    %v1389 = vpop.permute.xlu0 %1388
    %v1392 = vmul.f32 %v1371, %v1387
    %v1393 = vmul.f32 %v1373, %v1389
    %1396 = vrot.lane.b32.xlu0 %v1392, 32
    %v1397 = vpop.permute.xlu0 %1396
    %1398 = vrot.lane.b32.xlu0 %v1393, 32
    %v1399 = vpop.permute.xlu0 %1398
    %v1402 = vadd.f32 %v1382, %v1397
    %v1403 = vadd.f32 %v1383, %v1399
    %v1404 = vtanh.pop %v1402
    %v1405 = vtanh.pop %v1403
    %1408 = vrot.lane.b32.xlu0 %v1404, 64
    %v1409 = vpop.permute.xlu0 %1408
    %1410 = vrot.lane.b32.xlu0 %v1405, 64
    %v1411 = vpop.permute.xlu0 %1410
    %v1414 = vmul.f32 %v1371, %v1409
    %v1415 = vmul.f32 %v1373, %v1411
    %v1418 = vlaneseq
    %v1419 = vshrl.u32 %v1418, 7
    %v1420 = vsub.s32 3, %v1419
    %v1421 = vrot.slane %v1414, %v1420
    %v1422 = vlaneseq
    %v1423 = vshrl.u32 %v1422, 7
    %v1424 = vsub.s32 3, %v1423
    %v1425 = vrot.slane %v1415, %v1424
    %v1426 = vsel %vm499, %v1425, %v1421
    %1427 = vrot.lane.b32.xlu0 %v1426, 32
    %v1428 = vpop.permute.xlu0 %1427
    %v1430 = vrot.slane %v1276, 5
    %1431 = vrot.lane.b32.xlu0 %v1430, 64
    %v1432 = vpop.permute.xlu0 %1431
    %v1434 = vsel %vm292, %v1428, %v1432
    %v1435 = vpack.c.bf16 %v1434, %v1434
    %v1437 = vshrl.u32 %v1435, 16
    %v1439 = vrot.slane %v1437, 1
    %v1440 = vshll.u32 %v1435, 16
    %v1442 = vrot.slane %v1440, 2
    %v1443 = vor.u32 %v1439, %v1442
    %v1445 = vsel %vm535, %v1443, 0
    %1447 = vmatprep.subr.bf16.mxu0 0
    %1448 = vmatpush1.bf16.msra.mxu0 %v742
    %1449 = vmatprep.subr.bf16.mxu0 0
    %1450 = vmatpush1.bf16.msra.mxu0 %v743
    %1451 = vmatprep.subr.bf16.mxu0 0
    %1452 = vmatpush1.bf16.msra.mxu0 %v744
    %1453 = vmatprep.subr.bf16.mxu0 0
    %1454 = vmatpush1.bf16.msra.mxu0 %v745
    %1455 = vmatprep.subr.bf16.mxu0 0
    %1456 = vmatpush1.bf16.msra.mxu0 0
    %1457 = vmatprep.subr.bf16.mxu0 0
    %1458 = vmatpush1.bf16.msra.mxu0 0
    %1459 = vmatprep.subr.bf16.mxu0 0
    %1460 = vmatpush1.bf16.msra.mxu0 0
    %1461 = vmatprep.subr.bf16.mxu0 0
    %1462 = vmatpush1.bf16.msra.mxu0 0
    %1463 = vmatprep.subr.bf16.mxu0 0
    %1464 = vmatpush1.bf16.msra.mxu0 0
    %1465 = vmatprep.subr.bf16.mxu0 0
    %1466 = vmatpush1.bf16.msra.mxu0 0
    %1467 = vmatprep.subr.bf16.mxu0 0
    %1468 = vmatpush1.bf16.msra.mxu0 0
    %1469 = vmatprep.subr.bf16.mxu0 0
    %1470 = vmatpush1.bf16.msra.mxu0 0
    %1471 = vmatprep.subr.bf16.mxu0 0
    %1472 = vmatpush1.bf16.msra.mxu0 0
    %1473 = vmatprep.subr.bf16.mxu0 0
    %1474 = vmatpush1.bf16.msra.mxu0 0
    %1475 = vmatprep.subr.bf16.mxu0 0
    %1476 = vmatpush1.bf16.msra.mxu0 0
    %1477 = vmatprep.subr.bf16.mxu0 0
    %1478 = vmatpush1.bf16.msra.mxu0 0
    %1479 = vmatprep.mubr.bf16.mxu0 0
    %1480 = vmatmul.mubr.bf16.gmra.mrb[0].mxu0 %v1445
    %v1481 = vpop.f32.mrb[0].mxu0
    %v1482 = vadd.f32 %v724, %v1481
    %v1483 = vpop.f32.mrb[0].mxu0
    %v1484 = vpop.f32.mrb[0].mxu0
    %v1485 = vpop.f32.mrb[0].mxu0
    %1486 = vdwg.mxu0
    %v1487 = vxor.u32 %v1482, 2147483648
    %v1488 = vmul.f32 %v1487, 1.442695
    %v1489 = vpow.pop %v1488
    %v1490 = vadd.f32 %v1489, 1.0
    %v1491 = vrcp.pop %v1490
    %v1492 = vmul.f32 1.0, %v1491
    %v1493 = vtanh.pop %v1482
    %v1494 = vmul.f32 %v1492, %v1270
    %1496 = vrot.lane.b32.xlu0 %v1493, 64
    %v1497 = vpop.permute.xlu0 %1496
    %v1499 = vmul.f32 %v1492, %v1497
    %1501 = vrot.lane.b32.xlu0 %v1499, 32
    %v1502 = vpop.permute.xlu0 %1501
    %v1504 = vadd.f32 %v1494, %v1502
    %v1505 = vtanh.pop %v1504
    %1507 = vrot.lane.b32.xlu0 %v1505, 64
    %v1508 = vpop.permute.xlu0 %1507
    %v1510 = vmul.f32 %v1492, %v1508
    %v1513 = vunpack.c.l.s4 1966171168
    %v1514 = vunpack.c.0.s8 %v1513
    %v1515 = vlaneseq
    %v1516 = vshrl.u32 %v1515, 7
    %v1517 = vsub.s32 %v1514, %v1516
    %v1518 = vrot.slane %v1510, %v1517
    %v1519 = vcombine.high %v1518, %v1518
    %v1521 = vunpack.c.l.s4 1966171168
    %v1522 = vunpack.c.0.s8 %v1521
    %v1523 = vlaneseq
    %v1524 = vshrl.u32 %v1523, 7
    %v1525 = vsub.s32 %v1522, %v1524
    %v1526 = vrot.slane %v1518, %v1525
    %v1528 = vunpack.c.l.s4 1966171168
    %v1529 = vunpack.c.0.s8 %v1528
    %v1530 = vlaneseq
    %v1531 = vshrl.u32 %v1530, 7
    %v1532 = vsub.s32 %v1529, %v1531
    %v1533 = vrot.slane %v1519, %v1532
    %v1534 = vlaneseq
    %v1535 = vshrl.u32 %v1534, 7
    %v1536 = vsub.s32 0, %v1535
    %v1537 = vrot.slane %v1065, %v1536
    %v1538 = vlaneseq
    %v1539 = vshrl.u32 %v1538, 7
    %v1540 = vsub.s32 0, %v1539
    %v1541 = vrot.slane %v1072, %v1540
    %v1544 = vlaneseq
    %v1545 = vshrl.u32 %v1544, 7
    %v1546 = vsub.s32 0, %v1545
    %v1547 = vrot.slane %v1292, %v1546
    %v1548 = vlaneseq
    %v1549 = vshrl.u32 %v1548, 7
    %v1550 = vsub.s32 0, %v1549
    %v1551 = vrot.slane %v1299, %v1550
    %v1554 = vlaneseq
    %v1555 = vshrl.u32 %v1554, 7
    %v1556 = vsub.s32 0, %v1555
    %v1557 = vrot.slane %v1526, %v1556
    %v1558 = vlaneseq
    %v1559 = vshrl.u32 %v1558, 7
    %v1560 = vsub.s32 0, %v1559
    %v1561 = vrot.slane %v1533, %v1560
    %v1564 = vsel %vm254, %v832, %v1537
    %v1565 = vsel %vm254, %v839, %v1541
    %vm1566 = vcmask 1041408
    %v1567 = vsel %vm1566, %v1564, %v1547
    %v1568 = vsel %vm1566, %v1565, %v1551
    %vm1569 = vcmask 1042432
    %v1570 = vsel %vm1569, %v1567, %v1557
    %v1571 = vsel %vm1569, %v1568, %v1561
    %v1574 = vcombine.low %v1570, %v1571
    %v1576 = vpack.c.bf16 %v1574, %v1574
    %v1577 = vld [vmem:[#allocation11] sm:$0xf]
    %v1578 = vld [vmem:[#allocation11 + $0x4] sm:$0xf]
    %v1579 = vld [vmem:[#allocation11 + $0x8] sm:$0xf]
    %v1580 = vld [vmem:[#allocation11 + $0xc] sm:$0xf]
    %v1581 = vld [vmem:[#allocation13] sm:$0x1]
    %v1583 = vlaneseq
    %v1584 = vshrl.u32 %v1583, 7
    %v1585 = vsub.s32 0, %v1584
    %v1586 = vrot.slane %v1581, %v1585
    %1589 = vrot.lane.b32.xlu0 %v1576, 32
    %v1590 = vpop.permute.xlu0 %1589
    %v1595 = vunpack.c.l.b16 %v1577
    %v1596 = vunpack.c.l.b16 %v1578
    %v1597 = vunpack.c.l.b16 %v1579
    %v1598 = vunpack.c.l.b16 %v1580
    %v1599 = vpack.c.b16 %v1596, %v1595
    %v1600 = vpack.c.b16 %v1598, %v1597
    %v1604 = vsel %vm292, %v1590, 0
    %1606 = vmatprep.subr.bf16.mxu0 0
    %1607 = vmatpush1.bf16.msra.mxu0 %v1599
    %1608 = vmatprep.subr.bf16.mxu0 0
    %1609 = vmatpush1.bf16.msra.mxu0 %v1600
    %1610 = vmatprep.subr.bf16.mxu0 0
    %1611 = vmatpush1.bf16.msra.mxu0 0
    %1612 = vmatprep.subr.bf16.mxu0 0
    %1613 = vmatpush1.bf16.msra.mxu0 0
    %1614 = vmatprep.subr.bf16.mxu0 0
    %1615 = vmatpush1.bf16.msra.mxu0 0
    %1616 = vmatprep.subr.bf16.mxu0 0
    %1617 = vmatpush1.bf16.msra.mxu0 0
    %1618 = vmatprep.subr.bf16.mxu0 0
    %1619 = vmatpush1.bf16.msra.mxu0 0
    %1620 = vmatprep.subr.bf16.mxu0 0
    %1621 = vmatpush1.bf16.msra.mxu0 0
    %1622 = vmatprep.subr.bf16.mxu0 0
    %1623 = vmatpush1.bf16.msra.mxu0 0
    %1624 = vmatprep.subr.bf16.mxu0 0
    %1625 = vmatpush1.bf16.msra.mxu0 0
    %1626 = vmatprep.subr.bf16.mxu0 0
    %1627 = vmatpush1.bf16.msra.mxu0 0
    %1628 = vmatprep.subr.bf16.mxu0 0
    %1629 = vmatpush1.bf16.msra.mxu0 0
    %1630 = vmatprep.subr.bf16.mxu0 0
    %1631 = vmatpush1.bf16.msra.mxu0 0
    %1632 = vmatprep.subr.bf16.mxu0 0
    %1633 = vmatpush1.bf16.msra.mxu0 0
    %1634 = vmatprep.subr.bf16.mxu0 0
    %1635 = vmatpush1.bf16.msra.mxu0 0
    %1636 = vmatprep.subr.bf16.mxu0 0
    %1637 = vmatpush1.bf16.msra.mxu0 0
    %1638 = vmatprep.mubr.bf16.mxu0 0
    %1639 = vmatmul.mubr.bf16.gmra.mrb[0].mxu0 %v1604
    %v1640 = vpop.f32.mrb[0].mxu0
    %v1641 = vadd.f32 %v1586, %v1640
    %v1642 = vpop.f32.mrb[0].mxu0
    %v1643 = vpop.f32.mrb[0].mxu0
    %v1644 = vpop.f32.mrb[0].mxu0
    %1645 = vdwg.mxu0
    %v1647 = vcombine.high %v1641, %v1641
    %v1649 = vpack.c.bf16 %v1641, %v1641
    %v1650 = vpack.c.bf16 %v1647, %v1647
    %1652 = vrot.lane.b32.xlu0 %v1649, 96
    %v1653 = vpop.permute.xlu0 %1652
    %vm1654 = vcmask 64512
    %v1656 = vsel %vm1654, %v1649, 0
    %v1659 = vsel %vm1654, %v1653, 0
    %1661 = vmatprep.subr.bf16.mxu0 0
    %1662 = vmatpush1.bf16.xpose.msra.mxu0 %v1659
    %1663 = vmatprep.subr.bf16.mxu0 0
    %1664 = vmatpush1.bf16.xpose.msra.mxu0 0
    %1665 = vmatprep.subr.bf16.mxu0 0
    %1666 = vmatpush1.bf16.xpose.msra.mxu0 0
    %1667 = vmatprep.subr.bf16.mxu0 0
    %1668 = vmatpush1.bf16.xpose.msra.mxu0 0
    %1669 = vmatprep.subr.bf16.mxu0 0
    %1670 = vmatpush1.bf16.xpose.msra.mxu0 0
    %1671 = vmatprep.subr.bf16.mxu0 0
    %1672 = vmatpush1.bf16.xpose.msra.mxu0 0
    %1673 = vmatprep.subr.bf16.mxu0 0
    %1674 = vmatpush1.bf16.xpose.msra.mxu0 0
    %1675 = vmatprep.subr.bf16.mxu0 0
    %1676 = vmatpush1.bf16.xpose.msra.mxu0 0
    %1677 = vmatprep.subr.bf16.mxu0 0
    %1678 = vmatpush1.bf16.xpose.msra.mxu0 0
    %1679 = vmatprep.subr.bf16.mxu0 0
    %1680 = vmatpush1.bf16.xpose.msra.mxu0 0
    %1681 = vmatprep.subr.bf16.mxu0 0
    %1682 = vmatpush1.bf16.xpose.msra.mxu0 0
    %1683 = vmatprep.subr.bf16.mxu0 0
    %1684 = vmatpush1.bf16.xpose.msra.mxu0 0
    %1685 = vmatprep.subr.bf16.mxu0 0
    %1686 = vmatpush1.bf16.xpose.msra.mxu0 0
    %1687 = vmatprep.subr.bf16.mxu0 0
    %1688 = vmatpush1.bf16.xpose.msra.mxu0 0
    %1689 = vmatprep.subr.bf16.mxu0 0
    %1690 = vmatpush1.bf16.xpose.msra.mxu0 0
    %1691 = vmatprep.subr.bf16.mxu0 0
    %1692 = vmatpush1.bf16.xpose.msra.mxu0 0
    %1693 = vmatprep.mubr.bf16.mxu0 0
    %1694 = vmatmul.mubr.bf16.gmra.mrb[0].mxu0 %v1656
    %v1695 = vpop.f32.mrb[0].mxu0
    %v1696 = vadd.f32 0.0, %v1695
    %v1697 = vpop.f32.mrb[0].mxu0
    %v1698 = vpop.f32.mrb[0].mxu0
    %v1699 = vpop.f32.mrb[0].mxu0
    %1700 = vdwg.mxu0
    %1702 = vrot.lane.b32.xlu0 %v1650, 96
    %v1703 = vpop.permute.xlu0 %1702
    %v1705 = vsel %vm1654, %v1650, 0
    %v1708 = vsel %vm1654, %v1703, 0
    %1710 = vmatprep.subr.bf16.mxu0 0
    %1711 = vmatpush1.bf16.xpose.msra.mxu0 %v1708
    %1712 = vmatprep.subr.bf16.mxu0 0
    %1713 = vmatpush1.bf16.xpose.msra.mxu0 0
    %1714 = vmatprep.subr.bf16.mxu0 0
    %1715 = vmatpush1.bf16.xpose.msra.mxu0 0
    %1716 = vmatprep.subr.bf16.mxu0 0
    %1717 = vmatpush1.bf16.xpose.msra.mxu0 0
    %1718 = vmatprep.subr.bf16.mxu0 0
    %1719 = vmatpush1.bf16.xpose.msra.mxu0 0
    %1720 = vmatprep.subr.bf16.mxu0 0
    %1721 = vmatpush1.bf16.xpose.msra.mxu0 0
    %1722 = vmatprep.subr.bf16.mxu0 0
    %1723 = vmatpush1.bf16.xpose.msra.mxu0 0
    %1724 = vmatprep.subr.bf16.mxu0 0
    %1725 = vmatpush1.bf16.xpose.msra.mxu0 0
    %1726 = vmatprep.subr.bf16.mxu0 0
    %1727 = vmatpush1.bf16.xpose.msra.mxu0 0
    %1728 = vmatprep.subr.bf16.mxu0 0
    %1729 = vmatpush1.bf16.xpose.msra.mxu0 0
    %1730 = vmatprep.subr.bf16.mxu0 0
    %1731 = vmatpush1.bf16.xpose.msra.mxu0 0
    %1732 = vmatprep.subr.bf16.mxu0 0
    %1733 = vmatpush1.bf16.xpose.msra.mxu0 0
    %1734 = vmatprep.subr.bf16.mxu0 0
    %1735 = vmatpush1.bf16.xpose.msra.mxu0 0
    %1736 = vmatprep.subr.bf16.mxu0 0
    %1737 = vmatpush1.bf16.xpose.msra.mxu0 0
    %1738 = vmatprep.subr.bf16.mxu0 0
    %1739 = vmatpush1.bf16.xpose.msra.mxu0 0
    %1740 = vmatprep.subr.bf16.mxu0 0
    %1741 = vmatpush1.bf16.xpose.msra.mxu0 0
    %1742 = vmatprep.mubr.bf16.mxu0 0
    %1743 = vmatmul.mubr.bf16.gmra.mrb[0].mxu0 %v1705
    %v1744 = vpop.f32.mrb[0].mxu0
    %v1745 = vadd.f32 0.0, %v1744
    %v1746 = vpop.f32.mrb[0].mxu0
    %v1747 = vpop.f32.mrb[0].mxu0
    %v1748 = vpop.f32.mrb[0].mxu0
    %1749 = vdwg.mxu0
    %1750 = vrot.lane.b32.xlu0 %v1649, 120
    %v1751 = vpop.permute.xlu0 %1750
    %1752 = vrot.lane.b32.xlu0 %v1649, 88
    %v1753 = vpop.permute.xlu0 %1752
    %v1755 = vsel %vm1654, %v1751, 0
    %v1758 = vsel %vm1654, %v1753, 0
    %1760 = vmatprep.subr.bf16.mxu0 0
    %1761 = vmatpush1.bf16.xpose.msra.mxu0 %v1758
    %1762 = vmatprep.subr.bf16.mxu0 0
    %1763 = vmatpush1.bf16.xpose.msra.mxu0 0
    %1764 = vmatprep.subr.bf16.mxu0 0
    %1765 = vmatpush1.bf16.xpose.msra.mxu0 0
    %1766 = vmatprep.subr.bf16.mxu0 0
    %1767 = vmatpush1.bf16.xpose.msra.mxu0 0
    %1768 = vmatprep.subr.bf16.mxu0 0
    %1769 = vmatpush1.bf16.xpose.msra.mxu0 0
    %1770 = vmatprep.subr.bf16.mxu0 0
    %1771 = vmatpush1.bf16.xpose.msra.mxu0 0
    %1772 = vmatprep.subr.bf16.mxu0 0
    %1773 = vmatpush1.bf16.xpose.msra.mxu0 0
    %1774 = vmatprep.subr.bf16.mxu0 0
    %1775 = vmatpush1.bf16.xpose.msra.mxu0 0
    %1776 = vmatprep.subr.bf16.mxu0 0
    %1777 = vmatpush1.bf16.xpose.msra.mxu0 0
    %1778 = vmatprep.subr.bf16.mxu0 0
    %1779 = vmatpush1.bf16.xpose.msra.mxu0 0
    %1780 = vmatprep.subr.bf16.mxu0 0
    %1781 = vmatpush1.bf16.xpose.msra.mxu0 0
    %1782 = vmatprep.subr.bf16.mxu0 0
    %1783 = vmatpush1.bf16.xpose.msra.mxu0 0
    %1784 = vmatprep.subr.bf16.mxu0 0
    %1785 = vmatpush1.bf16.xpose.msra.mxu0 0
    %1786 = vmatprep.subr.bf16.mxu0 0
    %1787 = vmatpush1.bf16.xpose.msra.mxu0 0
    %1788 = vmatprep.subr.bf16.mxu0 0
    %1789 = vmatpush1.bf16.xpose.msra.mxu0 0
    %1790 = vmatprep.subr.bf16.mxu0 0
    %1791 = vmatpush1.bf16.xpose.msra.mxu0 0
    %1792 = vmatprep.mubr.bf16.mxu0 0
    %1793 = vmatmul.mubr.bf16.gmra.mrb[0].mxu0 %v1755
    %v1794 = vpop.f32.mrb[0].mxu0
    %v1795 = vadd.f32 0.0, %v1794
    %v1796 = vpop.f32.mrb[0].mxu0
    %v1797 = vpop.f32.mrb[0].mxu0
    %v1798 = vpop.f32.mrb[0].mxu0
    %1799 = vdwg.mxu0
    %1800 = vrot.lane.b32.xlu0 %v1650, 120
    %v1801 = vpop.permute.xlu0 %1800
    %1802 = vrot.lane.b32.xlu0 %v1650, 88
    %v1803 = vpop.permute.xlu0 %1802
    %v1805 = vsel %vm1654, %v1801, 0
    %v1808 = vsel %vm1654, %v1803, 0
    %1810 = vmatprep.subr.bf16.mxu0 0
    %1811 = vmatpush1.bf16.xpose.msra.mxu0 %v1808
    %1812 = vmatprep.subr.bf16.mxu0 0
    %1813 = vmatpush1.bf16.xpose.msra.mxu0 0
    %1814 = vmatprep.subr.bf16.mxu0 0
    %1815 = vmatpush1.bf16.xpose.msra.mxu0 0
    %1816 = vmatprep.subr.bf16.mxu0 0
    %1817 = vmatpush1.bf16.xpose.msra.mxu0 0
    %1818 = vmatprep.subr.bf16.mxu0 0
    %1819 = vmatpush1.bf16.xpose.msra.mxu0 0
    %1820 = vmatprep.subr.bf16.mxu0 0
    %1821 = vmatpush1.bf16.xpose.msra.mxu0 0
    %1822 = vmatprep.subr.bf16.mxu0 0
    %1823 = vmatpush1.bf16.xpose.msra.mxu0 0
    %1824 = vmatprep.subr.bf16.mxu0 0
    %1825 = vmatpush1.bf16.xpose.msra.mxu0 0
    %1826 = vmatprep.subr.bf16.mxu0 0
    %1827 = vmatpush1.bf16.xpose.msra.mxu0 0
    %1828 = vmatprep.subr.bf16.mxu0 0
    %1829 = vmatpush1.bf16.xpose.msra.mxu0 0
    %1830 = vmatprep.subr.bf16.mxu0 0
    %1831 = vmatpush1.bf16.xpose.msra.mxu0 0
    %1832 = vmatprep.subr.bf16.mxu0 0
    %1833 = vmatpush1.bf16.xpose.msra.mxu0 0
    %1834 = vmatprep.subr.bf16.mxu0 0
    %1835 = vmatpush1.bf16.xpose.msra.mxu0 0
    %1836 = vmatprep.subr.bf16.mxu0 0
    %1837 = vmatpush1.bf16.xpose.msra.mxu0 0
    %1838 = vmatprep.subr.bf16.mxu0 0
    %1839 = vmatpush1.bf16.xpose.msra.mxu0 0
    %1840 = vmatprep.subr.bf16.mxu0 0
    %1841 = vmatpush1.bf16.xpose.msra.mxu0 0
    %1842 = vmatprep.mubr.bf16.mxu0 0
    %1843 = vmatmul.mubr.bf16.gmra.mrb[0].mxu0 %v1805
    %v1844 = vpop.f32.mrb[0].mxu0
    %v1845 = vadd.f32 0.0, %v1844
    %v1846 = vpop.f32.mrb[0].mxu0
    %v1847 = vpop.f32.mrb[0].mxu0
    %v1848 = vpop.f32.mrb[0].mxu0
    %1849 = vdwg.mxu0
    %1850 = vrot.lane.b32.xlu0 %v1649, 112
    %v1851 = vpop.permute.xlu0 %1850
    %1852 = vrot.lane.b32.xlu0 %v1649, 80
    %v1853 = vpop.permute.xlu0 %1852
    %v1855 = vsel %vm1654, %v1851, 0
    %v1858 = vsel %vm1654, %v1853, 0
    %1860 = vmatprep.subr.bf16.mxu0 0
    %1861 = vmatpush1.bf16.xpose.msra.mxu0 %v1858
    %1862 = vmatprep.subr.bf16.mxu0 0
    %1863 = vmatpush1.bf16.xpose.msra.mxu0 0
    %1864 = vmatprep.subr.bf16.mxu0 0
    %1865 = vmatpush1.bf16.xpose.msra.mxu0 0
    %1866 = vmatprep.subr.bf16.mxu0 0
    %1867 = vmatpush1.bf16.xpose.msra.mxu0 0
    %1868 = vmatprep.subr.bf16.mxu0 0
    %1869 = vmatpush1.bf16.xpose.msra.mxu0 0
    %1870 = vmatprep.subr.bf16.mxu0 0
    %1871 = vmatpush1.bf16.xpose.msra.mxu0 0
    %1872 = vmatprep.subr.bf16.mxu0 0
    %1873 = vmatpush1.bf16.xpose.msra.mxu0 0
    %1874 = vmatprep.subr.bf16.mxu0 0
    %1875 = vmatpush1.bf16.xpose.msra.mxu0 0
    %1876 = vmatprep.subr.bf16.mxu0 0
    %1877 = vmatpush1.bf16.xpose.msra.mxu0 0
    %1878 = vmatprep.subr.bf16.mxu0 0
    %1879 = vmatpush1.bf16.xpose.msra.mxu0 0
    %1880 = vmatprep.subr.bf16.mxu0 0
    %1881 = vmatpush1.bf16.xpose.msra.mxu0 0
    %1882 = vmatprep.subr.bf16.mxu0 0
    %1883 = vmatpush1.bf16.xpose.msra.mxu0 0
    %1884 = vmatprep.subr.bf16.mxu0 0
    %1885 = vmatpush1.bf16.xpose.msra.mxu0 0
    %1886 = vmatprep.subr.bf16.mxu0 0
    %1887 = vmatpush1.bf16.xpose.msra.mxu0 0
    %1888 = vmatprep.subr.bf16.mxu0 0
    %1889 = vmatpush1.bf16.xpose.msra.mxu0 0
    %1890 = vmatprep.subr.bf16.mxu0 0
    %1891 = vmatpush1.bf16.xpose.msra.mxu0 0
    %1892 = vmatprep.mubr.bf16.mxu0 0
    %1893 = vmatmul.mubr.bf16.gmra.mrb[0].mxu0 %v1855
    %v1894 = vpop.f32.mrb[0].mxu0
    %v1895 = vadd.f32 0.0, %v1894
    %v1896 = vpop.f32.mrb[0].mxu0
    %v1897 = vpop.f32.mrb[0].mxu0
    %v1898 = vpop.f32.mrb[0].mxu0
    %1899 = vdwg.mxu0
    %1900 = vrot.lane.b32.xlu0 %v1650, 112
    %v1901 = vpop.permute.xlu0 %1900
    %1902 = vrot.lane.b32.xlu0 %v1650, 80
    %v1903 = vpop.permute.xlu0 %1902
    %v1905 = vsel %vm1654, %v1901, 0
    %v1908 = vsel %vm1654, %v1903, 0
    %1910 = vmatprep.subr.bf16.mxu0 0
    %1911 = vmatpush1.bf16.xpose.msra.mxu0 %v1908
    %1912 = vmatprep.subr.bf16.mxu0 0
    %1913 = vmatpush1.bf16.xpose.msra.mxu0 0
    %1914 = vmatprep.subr.bf16.mxu0 0
    %1915 = vmatpush1.bf16.xpose.msra.mxu0 0
    %1916 = vmatprep.subr.bf16.mxu0 0
    %1917 = vmatpush1.bf16.xpose.msra.mxu0 0
    %1918 = vmatprep.subr.bf16.mxu0 0
    %1919 = vmatpush1.bf16.xpose.msra.mxu0 0
    %1920 = vmatprep.subr.bf16.mxu0 0
    %1921 = vmatpush1.bf16.xpose.msra.mxu0 0
    %1922 = vmatprep.subr.bf16.mxu0 0
    %1923 = vmatpush1.bf16.xpose.msra.mxu0 0
    %1924 = vmatprep.subr.bf16.mxu0 0
    %1925 = vmatpush1.bf16.xpose.msra.mxu0 0
    %1926 = vmatprep.subr.bf16.mxu0 0
    %1927 = vmatpush1.bf16.xpose.msra.mxu0 0
    %1928 = vmatprep.subr.bf16.mxu0 0
    %1929 = vmatpush1.bf16.xpose.msra.mxu0 0
    %1930 = vmatprep.subr.bf16.mxu0 0
    %1931 = vmatpush1.bf16.xpose.msra.mxu0 0
    %1932 = vmatprep.subr.bf16.mxu0 0
    %1933 = vmatpush1.bf16.xpose.msra.mxu0 0
    %1934 = vmatprep.subr.bf16.mxu0 0
    %1935 = vmatpush1.bf16.xpose.msra.mxu0 0
    %1936 = vmatprep.subr.bf16.mxu0 0
    %1937 = vmatpush1.bf16.xpose.msra.mxu0 0
    %1938 = vmatprep.subr.bf16.mxu0 0
    %1939 = vmatpush1.bf16.xpose.msra.mxu0 0
    %1940 = vmatprep.subr.bf16.mxu0 0
    %1941 = vmatpush1.bf16.xpose.msra.mxu0 0
    %1942 = vmatprep.mubr.bf16.mxu0 0
    %1943 = vmatmul.mubr.bf16.gmra.mrb[0].mxu0 %v1905
    %v1944 = vpop.f32.mrb[0].mxu0
    %v1945 = vadd.f32 0.0, %v1944
    %v1946 = vpop.f32.mrb[0].mxu0
    %v1947 = vpop.f32.mrb[0].mxu0
    %v1948 = vpop.f32.mrb[0].mxu0
    %1949 = vdwg.mxu0
    %1950 = vrot.lane.b32.xlu0 %v1649, 104
    %v1951 = vpop.permute.xlu0 %1950
    %1952 = vrot.lane.b32.xlu0 %v1649, 72
    %v1953 = vpop.permute.xlu0 %1952
    %v1955 = vsel %vm1654, %v1951, 0
    %v1958 = vsel %vm1654, %v1953, 0
    %1960 = vmatprep.subr.bf16.mxu0 0
    %1961 = vmatpush1.bf16.xpose.msra.mxu0 %v1958
    %1962 = vmatprep.subr.bf16.mxu0 0
    %1963 = vmatpush1.bf16.xpose.msra.mxu0 0
    %1964 = vmatprep.subr.bf16.mxu0 0
    %1965 = vmatpush1.bf16.xpose.msra.mxu0 0
    %1966 = vmatprep.subr.bf16.mxu0 0
    %1967 = vmatpush1.bf16.xpose.msra.mxu0 0
    %1968 = vmatprep.subr.bf16.mxu0 0
    %1969 = vmatpush1.bf16.xpose.msra.mxu0 0
    %1970 = vmatprep.subr.bf16.mxu0 0
    %1971 = vmatpush1.bf16.xpose.msra.mxu0 0
    %1972 = vmatprep.subr.bf16.mxu0 0
    %1973 = vmatpush1.bf16.xpose.msra.mxu0 0
    %1974 = vmatprep.subr.bf16.mxu0 0
    %1975 = vmatpush1.bf16.xpose.msra.mxu0 0
    %1976 = vmatprep.subr.bf16.mxu0 0
    %1977 = vmatpush1.bf16.xpose.msra.mxu0 0
    %1978 = vmatprep.subr.bf16.mxu0 0
    %1979 = vmatpush1.bf16.xpose.msra.mxu0 0
    %1980 = vmatprep.subr.bf16.mxu0 0
    %1981 = vmatpush1.bf16.xpose.msra.mxu0 0
    %1982 = vmatprep.subr.bf16.mxu0 0
    %1983 = vmatpush1.bf16.xpose.msra.mxu0 0
    %1984 = vmatprep.subr.bf16.mxu0 0
    %1985 = vmatpush1.bf16.xpose.msra.mxu0 0
    %1986 = vmatprep.subr.bf16.mxu0 0
    %1987 = vmatpush1.bf16.xpose.msra.mxu0 0
    %1988 = vmatprep.subr.bf16.mxu0 0
    %1989 = vmatpush1.bf16.xpose.msra.mxu0 0
    %1990 = vmatprep.subr.bf16.mxu0 0
    %1991 = vmatpush1.bf16.xpose.msra.mxu0 0
    %1992 = vmatprep.mubr.bf16.mxu0 0
    %1993 = vmatmul.mubr.bf16.gmra.mrb[0].mxu0 %v1955
    %v1994 = vpop.f32.mrb[0].mxu0
    %v1995 = vadd.f32 0.0, %v1994
    %v1996 = vpop.f32.mrb[0].mxu0
    %v1997 = vpop.f32.mrb[0].mxu0
    %v1998 = vpop.f32.mrb[0].mxu0
    %1999 = vdwg.mxu0
    %2000 = vrot.lane.b32.xlu0 %v1650, 104
    %v2001 = vpop.permute.xlu0 %2000
    %2002 = vrot.lane.b32.xlu0 %v1650, 72
    %v2003 = vpop.permute.xlu0 %2002
    %v2005 = vsel %vm1654, %v2001, 0
    %v2008 = vsel %vm1654, %v2003, 0
    %2010 = vmatprep.subr.bf16.mxu0 0
    %2011 = vmatpush1.bf16.xpose.msra.mxu0 %v2008
    %2012 = vmatprep.subr.bf16.mxu0 0
    %2013 = vmatpush1.bf16.xpose.msra.mxu0 0
    %2014 = vmatprep.subr.bf16.mxu0 0
    %2015 = vmatpush1.bf16.xpose.msra.mxu0 0
    %2016 = vmatprep.subr.bf16.mxu0 0
    %2017 = vmatpush1.bf16.xpose.msra.mxu0 0
    %2018 = vmatprep.subr.bf16.mxu0 0
    %2019 = vmatpush1.bf16.xpose.msra.mxu0 0
    %2020 = vmatprep.subr.bf16.mxu0 0
    %2021 = vmatpush1.bf16.xpose.msra.mxu0 0
    %2022 = vmatprep.subr.bf16.mxu0 0
    %2023 = vmatpush1.bf16.xpose.msra.mxu0 0
    %2024 = vmatprep.subr.bf16.mxu0 0
    %2025 = vmatpush1.bf16.xpose.msra.mxu0 0
    %2026 = vmatprep.subr.bf16.mxu0 0
    %2027 = vmatpush1.bf16.xpose.msra.mxu0 0
    %2028 = vmatprep.subr.bf16.mxu0 0
    %2029 = vmatpush1.bf16.xpose.msra.mxu0 0
    %2030 = vmatprep.subr.bf16.mxu0 0
    %2031 = vmatpush1.bf16.xpose.msra.mxu0 0
    %2032 = vmatprep.subr.bf16.mxu0 0
    %2033 = vmatpush1.bf16.xpose.msra.mxu0 0
    %2034 = vmatprep.subr.bf16.mxu0 0
    %2035 = vmatpush1.bf16.xpose.msra.mxu0 0
    %2036 = vmatprep.subr.bf16.mxu0 0
    %2037 = vmatpush1.bf16.xpose.msra.mxu0 0
    %2038 = vmatprep.subr.bf16.mxu0 0
    %2039 = vmatpush1.bf16.xpose.msra.mxu0 0
    %2040 = vmatprep.subr.bf16.mxu0 0
    %2041 = vmatpush1.bf16.xpose.msra.mxu0 0
    %2042 = vmatprep.mubr.bf16.mxu0 0
    %2043 = vmatmul.mubr.bf16.gmra.mrb[0].mxu0 %v2005
    %v2044 = vpop.f32.mrb[0].mxu0
    %v2045 = vadd.f32 0.0, %v2044
    %v2046 = vpop.f32.mrb[0].mxu0
    %v2047 = vpop.f32.mrb[0].mxu0
    %v2048 = vpop.f32.mrb[0].mxu0
    %2049 = vdwg.mxu0
    %v2050 = vmul.f32 %v1696, 0.35355338
    %v2051 = vmul.f32 %v1745, 0.35355338
    %v2052 = vmul.f32 %v1795, 0.35355338
    %v2053 = vmul.f32 %v1845, 0.35355338
    %v2054 = vmul.f32 %v1895, 0.35355338
    %v2055 = vmul.f32 %v1945, 0.35355338
    %v2056 = vmul.f32 %v1995, 0.35355338
    %v2057 = vmul.f32 %v2045, 0.35355338
    %vm2058 = vcmask 27648
    %v2059 = vsel %vm2058, %v2050, -inf
    %2060 = vmax.xlane.f32.xlu0 %v2059
    %v2061 = vpop.xlane.xlu0 %2060
    %v2062 = vsel %vm2058, %v2051, -inf
    %2063 = vmax.xlane.f32.xlu0 %v2062
    %v2064 = vpop.xlane.xlu0 %2063
    %v2065 = vsel %vm2058, %v2052, -inf
    %2066 = vmax.xlane.f32.xlu0 %v2065
    %v2067 = vpop.xlane.xlu0 %2066
    %v2068 = vsel %vm2058, %v2053, -inf
    %2069 = vmax.xlane.f32.xlu0 %v2068
    %v2070 = vpop.xlane.xlu0 %2069
    %v2071 = vsel %vm2058, %v2054, -inf
    %2072 = vmax.xlane.f32.xlu0 %v2071
    %v2073 = vpop.xlane.xlu0 %2072
    %v2074 = vsel %vm2058, %v2055, -inf
    %2075 = vmax.xlane.f32.xlu0 %v2074
    %v2076 = vpop.xlane.xlu0 %2075
    %v2077 = vsel %vm2058, %v2056, -inf
    %2078 = vmax.xlane.f32.xlu0 %v2077
    %v2079 = vpop.xlane.xlu0 %2078
    %v2080 = vsel %vm2058, %v2057, -inf
    %2081 = vmax.xlane.f32.xlu0 %v2080
    %v2082 = vpop.xlane.xlu0 %2081
    %v2083 = vsub.f32 %v2050, %v2061
    %v2084 = vsub.f32 %v2051, %v2064
    %v2085 = vsub.f32 %v2052, %v2067
    %v2086 = vsub.f32 %v2053, %v2070
    %v2087 = vsub.f32 %v2054, %v2073
    %v2088 = vsub.f32 %v2055, %v2076
    %v2089 = vsub.f32 %v2056, %v2079
    %v2090 = vsub.f32 %v2057, %v2082
    %v2091 = vmul.f32 %v2083, 1.442695
    %v2092 = vpow.pop %v2091
    %v2093 = vmul.f32 %v2084, 1.442695
    %v2094 = vpow.pop %v2093
    %v2095 = vmul.f32 %v2085, 1.442695
    %v2096 = vpow.pop %v2095
    %v2097 = vmul.f32 %v2086, 1.442695
    %v2098 = vpow.pop %v2097
    %v2099 = vmul.f32 %v2087, 1.442695
    %v2100 = vpow.pop %v2099
    %v2101 = vmul.f32 %v2088, 1.442695
    %v2102 = vpow.pop %v2101
    %v2103 = vmul.f32 %v2089, 1.442695
    %v2104 = vpow.pop %v2103
    %v2105 = vmul.f32 %v2090, 1.442695
    %v2106 = vpow.pop %v2105
    %v2107 = vsel %vm2058, %v2092, 0.0
    %2108 = vadd.xlane.f32.xlu0 %v2107
    %v2109 = vpop.xlane.xlu0 %2108
    %v2110 = vsel %vm2058, %v2094, 0.0
    %2111 = vadd.xlane.f32.xlu0 %v2110
    %v2112 = vpop.xlane.xlu0 %2111
    %v2113 = vsel %vm2058, %v2096, 0.0
    %2114 = vadd.xlane.f32.xlu0 %v2113
    %v2115 = vpop.xlane.xlu0 %2114
    %v2116 = vsel %vm2058, %v2098, 0.0
    %2117 = vadd.xlane.f32.xlu0 %v2116
    %v2118 = vpop.xlane.xlu0 %2117
    %v2119 = vsel %vm2058, %v2100, 0.0
    %2120 = vadd.xlane.f32.xlu0 %v2119
    %v2121 = vpop.xlane.xlu0 %2120
    %v2122 = vsel %vm2058, %v2102, 0.0
    %2123 = vadd.xlane.f32.xlu0 %v2122
    %v2124 = vpop.xlane.xlu0 %2123
    %v2125 = vsel %vm2058, %v2104, 0.0
    %2126 = vadd.xlane.f32.xlu0 %v2125
    %v2127 = vpop.xlane.xlu0 %2126
    %v2128 = vsel %vm2058, %v2106, 0.0
    %2129 = vadd.xlane.f32.xlu0 %v2128
    %v2130 = vpop.xlane.xlu0 %2129
    %v2131 = vrcp.pop %v2109
    %v2132 = vrcp.pop %v2112
    %v2133 = vrcp.pop %v2115
    %v2134 = vrcp.pop %v2118
    %v2135 = vrcp.pop %v2121
    %v2136 = vrcp.pop %v2124
    %v2137 = vrcp.pop %v2127
    %v2138 = vrcp.pop %v2130
    %v2139 = vmul.f32 %v2092, %v2131
    %v2140 = vmul.f32 %v2094, %v2132
    %v2141 = vmul.f32 %v2096, %v2133
    %v2142 = vmul.f32 %v2098, %v2134
    %v2143 = vmul.f32 %v2100, %v2135
    %v2144 = vmul.f32 %v2102, %v2136
    %v2145 = vmul.f32 %v2104, %v2137
    %v2146 = vmul.f32 %v2106, %v2138
    %v2147 = vpack.c.bf16 %v2139, %v2139
    %v2148 = vpack.c.bf16 %v2140, %v2140
    %v2149 = vpack.c.bf16 %v2141, %v2141
    %v2150 = vpack.c.bf16 %v2142, %v2142
    %v2151 = vpack.c.bf16 %v2143, %v2143
    %v2152 = vpack.c.bf16 %v2144, %v2144
    %v2153 = vpack.c.bf16 %v2145, %v2145
    %v2154 = vpack.c.bf16 %v2146, %v2146
    %2155 = vrot.lane.b32.xlu0 %v1649, 64
    %v2156 = vpop.permute.xlu0 %2155
    %vm2157 = vcmask 31744
    %v2159 = vsel %vm2157, %v2147, 0
    %v2162 = vsel %vm1566, %v2156, 0
    %2164 = vmatprep.subr.bf16.mxu0 0
    %2165 = vmatpush1.bf16.msra.mxu0 %v2162
    %2166 = vmatprep.subr.bf16.mxu0 0
    %2167 = vmatpush1.bf16.msra.mxu0 0
    %2168 = vmatprep.subr.bf16.mxu0 0
    %2169 = vmatpush1.bf16.msra.mxu0 0
    %2170 = vmatprep.subr.bf16.mxu0 0
    %2171 = vmatpush1.bf16.msra.mxu0 0
    %2172 = vmatprep.subr.bf16.mxu0 0
    %2173 = vmatpush1.bf16.msra.mxu0 0
    %2174 = vmatprep.subr.bf16.mxu0 0
    %2175 = vmatpush1.bf16.msra.mxu0 0
    %2176 = vmatprep.subr.bf16.mxu0 0
    %2177 = vmatpush1.bf16.msra.mxu0 0
    %2178 = vmatprep.subr.bf16.mxu0 0
    %2179 = vmatpush1.bf16.msra.mxu0 0
    %2180 = vmatprep.subr.bf16.mxu0 0
    %2181 = vmatpush1.bf16.msra.mxu0 0
    %2182 = vmatprep.subr.bf16.mxu0 0
    %2183 = vmatpush1.bf16.msra.mxu0 0
    %2184 = vmatprep.subr.bf16.mxu0 0
    %2185 = vmatpush1.bf16.msra.mxu0 0
    %2186 = vmatprep.subr.bf16.mxu0 0
    %2187 = vmatpush1.bf16.msra.mxu0 0
    %2188 = vmatprep.subr.bf16.mxu0 0
    %2189 = vmatpush1.bf16.msra.mxu0 0
    %2190 = vmatprep.subr.bf16.mxu0 0
    %2191 = vmatpush1.bf16.msra.mxu0 0
    %2192 = vmatprep.subr.bf16.mxu0 0
    %2193 = vmatpush1.bf16.msra.mxu0 0
    %2194 = vmatprep.subr.bf16.mxu0 0
    %2195 = vmatpush1.bf16.msra.mxu0 0
    %2196 = vmatprep.mubr.bf16.mxu0 0
    %2197 = vmatmul.mubr.bf16.gmra.mrb[0].mxu0 %v2159
    %v2198 = vpop.f32.mrb[0].mxu0
    %v2199 = vadd.f32 0.0, %v2198
    %v2200 = vpop.f32.mrb[0].mxu0
    %v2201 = vpop.f32.mrb[0].mxu0
    %v2202 = vpop.f32.mrb[0].mxu0
    %2203 = vdwg.mxu0
    %2204 = vrot.lane.b32.xlu0 %v1650, 64
    %v2205 = vpop.permute.xlu0 %2204
    %v2207 = vsel %vm2157, %v2148, 0
    %v2210 = vsel %vm1566, %v2205, 0
    %2212 = vmatprep.subr.bf16.mxu0 0
    %2213 = vmatpush1.bf16.msra.mxu0 %v2210
    %2214 = vmatprep.subr.bf16.mxu0 0
    %2215 = vmatpush1.bf16.msra.mxu0 0
    %2216 = vmatprep.subr.bf16.mxu0 0
    %2217 = vmatpush1.bf16.msra.mxu0 0
    %2218 = vmatprep.subr.bf16.mxu0 0
    %2219 = vmatpush1.bf16.msra.mxu0 0
    %2220 = vmatprep.subr.bf16.mxu0 0
    %2221 = vmatpush1.bf16.msra.mxu0 0
    %2222 = vmatprep.subr.bf16.mxu0 0
    %2223 = vmatpush1.bf16.msra.mxu0 0
    %2224 = vmatprep.subr.bf16.mxu0 0
    %2225 = vmatpush1.bf16.msra.mxu0 0
    %2226 = vmatprep.subr.bf16.mxu0 0
    %2227 = vmatpush1.bf16.msra.mxu0 0
    %2228 = vmatprep.subr.bf16.mxu0 0
    %2229 = vmatpush1.bf16.msra.mxu0 0
    %2230 = vmatprep.subr.bf16.mxu0 0
    %2231 = vmatpush1.bf16.msra.mxu0 0
    %2232 = vmatprep.subr.bf16.mxu0 0
    %2233 = vmatpush1.bf16.msra.mxu0 0
    %2234 = vmatprep.subr.bf16.mxu0 0
    %2235 = vmatpush1.bf16.msra.mxu0 0
    %2236 = vmatprep.subr.bf16.mxu0 0
    %2237 = vmatpush1.bf16.msra.mxu0 0
    %2238 = vmatprep.subr.bf16.mxu0 0
    %2239 = vmatpush1.bf16.msra.mxu0 0
    %2240 = vmatprep.subr.bf16.mxu0 0
    %2241 = vmatpush1.bf16.msra.mxu0 0
    %2242 = vmatprep.subr.bf16.mxu0 0
    %2243 = vmatpush1.bf16.msra.mxu0 0
    %2244 = vmatprep.mubr.bf16.mxu0 0
    %2245 = vmatmul.mubr.bf16.gmra.mrb[0].mxu0 %v2207
    %v2246 = vpop.f32.mrb[0].mxu0
    %v2247 = vadd.f32 0.0, %v2246
    %v2248 = vpop.f32.mrb[0].mxu0
    %v2249 = vpop.f32.mrb[0].mxu0
    %v2250 = vpop.f32.mrb[0].mxu0
    %2251 = vdwg.mxu0
    %2252 = vrot.lane.b32.xlu0 %v1649, 56
    %v2253 = vpop.permute.xlu0 %2252
    %v2255 = vsel %vm2157, %v2149, 0
    %v2258 = vsel %vm1566, %v2253, 0
    %2260 = vmatprep.subr.bf16.mxu0 0
    %2261 = vmatpush1.bf16.msra.mxu0 %v2258
    %2262 = vmatprep.subr.bf16.mxu0 0
    %2263 = vmatpush1.bf16.msra.mxu0 0
    %2264 = vmatprep.subr.bf16.mxu0 0
    %2265 = vmatpush1.bf16.msra.mxu0 0
    %2266 = vmatprep.subr.bf16.mxu0 0
    %2267 = vmatpush1.bf16.msra.mxu0 0
    %2268 = vmatprep.subr.bf16.mxu0 0
    %2269 = vmatpush1.bf16.msra.mxu0 0
    %2270 = vmatprep.subr.bf16.mxu0 0
    %2271 = vmatpush1.bf16.msra.mxu0 0
    %2272 = vmatprep.subr.bf16.mxu0 0
    %2273 = vmatpush1.bf16.msra.mxu0 0
    %2274 = vmatprep.subr.bf16.mxu0 0
    %2275 = vmatpush1.bf16.msra.mxu0 0
    %2276 = vmatprep.subr.bf16.mxu0 0
    %2277 = vmatpush1.bf16.msra.mxu0 0
    %2278 = vmatprep.subr.bf16.mxu0 0
    %2279 = vmatpush1.bf16.msra.mxu0 0
    %2280 = vmatprep.subr.bf16.mxu0 0
    %2281 = vmatpush1.bf16.msra.mxu0 0
    %2282 = vmatprep.subr.bf16.mxu0 0
    %2283 = vmatpush1.bf16.msra.mxu0 0
    %2284 = vmatprep.subr.bf16.mxu0 0
    %2285 = vmatpush1.bf16.msra.mxu0 0
    %2286 = vmatprep.subr.bf16.mxu0 0
    %2287 = vmatpush1.bf16.msra.mxu0 0
    %2288 = vmatprep.subr.bf16.mxu0 0
    %2289 = vmatpush1.bf16.msra.mxu0 0
    %2290 = vmatprep.subr.bf16.mxu0 0
    %2291 = vmatpush1.bf16.msra.mxu0 0
    %2292 = vmatprep.mubr.bf16.mxu0 0
    %2293 = vmatmul.mubr.bf16.gmra.mrb[0].mxu0 %v2255
    %v2294 = vpop.f32.mrb[0].mxu0
    %v2295 = vadd.f32 0.0, %v2294
    %v2296 = vpop.f32.mrb[0].mxu0
    %v2297 = vpop.f32.mrb[0].mxu0
    %v2298 = vpop.f32.mrb[0].mxu0
    %2299 = vdwg.mxu0
    %2300 = vrot.lane.b32.xlu0 %v1650, 56
    %v2301 = vpop.permute.xlu0 %2300
    %v2303 = vsel %vm2157, %v2150, 0
    %v2306 = vsel %vm1566, %v2301, 0
    %2308 = vmatprep.subr.bf16.mxu0 0
    %2309 = vmatpush1.bf16.msra.mxu0 %v2306
    %2310 = vmatprep.subr.bf16.mxu0 0
    %2311 = vmatpush1.bf16.msra.mxu0 0
    %2312 = vmatprep.subr.bf16.mxu0 0
    %2313 = vmatpush1.bf16.msra.mxu0 0
    %2314 = vmatprep.subr.bf16.mxu0 0
    %2315 = vmatpush1.bf16.msra.mxu0 0
    %2316 = vmatprep.subr.bf16.mxu0 0
    %2317 = vmatpush1.bf16.msra.mxu0 0
    %2318 = vmatprep.subr.bf16.mxu0 0
    %2319 = vmatpush1.bf16.msra.mxu0 0
    %2320 = vmatprep.subr.bf16.mxu0 0
    %2321 = vmatpush1.bf16.msra.mxu0 0
    %2322 = vmatprep.subr.bf16.mxu0 0
    %2323 = vmatpush1.bf16.msra.mxu0 0
    %2324 = vmatprep.subr.bf16.mxu0 0
    %2325 = vmatpush1.bf16.msra.mxu0 0
    %2326 = vmatprep.subr.bf16.mxu0 0
    %2327 = vmatpush1.bf16.msra.mxu0 0
    %2328 = vmatprep.subr.bf16.mxu0 0
    %2329 = vmatpush1.bf16.msra.mxu0 0
    %2330 = vmatprep.subr.bf16.mxu0 0
    %2331 = vmatpush1.bf16.msra.mxu0 0
    %2332 = vmatprep.subr.bf16.mxu0 0
    %2333 = vmatpush1.bf16.msra.mxu0 0
    %2334 = vmatprep.subr.bf16.mxu0 0
    %2335 = vmatpush1.bf16.msra.mxu0 0
    %2336 = vmatprep.subr.bf16.mxu0 0
    %2337 = vmatpush1.bf16.msra.mxu0 0
    %2338 = vmatprep.subr.bf16.mxu0 0
    %2339 = vmatpush1.bf16.msra.mxu0 0
    %2340 = vmatprep.mubr.bf16.mxu0 0
    %2341 = vmatmul.mubr.bf16.gmra.mrb[0].mxu0 %v2303
    %v2342 = vpop.f32.mrb[0].mxu0
    %v2343 = vadd.f32 0.0, %v2342
    %v2344 = vpop.f32.mrb[0].mxu0
    %v2345 = vpop.f32.mrb[0].mxu0
    %v2346 = vpop.f32.mrb[0].mxu0
    %2347 = vdwg.mxu0
    %2348 = vrot.lane.b32.xlu0 %v1649, 48
    %v2349 = vpop.permute.xlu0 %2348
    %v2351 = vsel %vm2157, %v2151, 0
    %v2354 = vsel %vm1566, %v2349, 0
    %2356 = vmatprep.subr.bf16.mxu0 0
    %2357 = vmatpush1.bf16.msra.mxu0 %v2354
    %2358 = vmatprep.subr.bf16.mxu0 0
    %2359 = vmatpush1.bf16.msra.mxu0 0
    %2360 = vmatprep.subr.bf16.mxu0 0
    %2361 = vmatpush1.bf16.msra.mxu0 0
    %2362 = vmatprep.subr.bf16.mxu0 0
    %2363 = vmatpush1.bf16.msra.mxu0 0
    %2364 = vmatprep.subr.bf16.mxu0 0
    %2365 = vmatpush1.bf16.msra.mxu0 0
    %2366 = vmatprep.subr.bf16.mxu0 0
    %2367 = vmatpush1.bf16.msra.mxu0 0
    %2368 = vmatprep.subr.bf16.mxu0 0
    %2369 = vmatpush1.bf16.msra.mxu0 0
    %2370 = vmatprep.subr.bf16.mxu0 0
    %2371 = vmatpush1.bf16.msra.mxu0 0
    %2372 = vmatprep.subr.bf16.mxu0 0
    %2373 = vmatpush1.bf16.msra.mxu0 0
    %2374 = vmatprep.subr.bf16.mxu0 0
    %2375 = vmatpush1.bf16.msra.mxu0 0
    %2376 = vmatprep.subr.bf16.mxu0 0
    %2377 = vmatpush1.bf16.msra.mxu0 0
    %2378 = vmatprep.subr.bf16.mxu0 0
    %2379 = vmatpush1.bf16.msra.mxu0 0
    %2380 = vmatprep.subr.bf16.mxu0 0
    %2381 = vmatpush1.bf16.msra.mxu0 0
    %2382 = vmatprep.subr.bf16.mxu0 0
    %2383 = vmatpush1.bf16.msra.mxu0 0
    %2384 = vmatprep.subr.bf16.mxu0 0
    %2385 = vmatpush1.bf16.msra.mxu0 0
    %2386 = vmatprep.subr.bf16.mxu0 0
    %2387 = vmatpush1.bf16.msra.mxu0 0
    %2388 = vmatprep.mubr.bf16.mxu0 0
    %2389 = vmatmul.mubr.bf16.gmra.mrb[0].mxu0 %v2351
    %v2390 = vpop.f32.mrb[0].mxu0
    %v2391 = vadd.f32 0.0, %v2390
    %v2392 = vpop.f32.mrb[0].mxu0
    %v2393 = vpop.f32.mrb[0].mxu0
    %v2394 = vpop.f32.mrb[0].mxu0
    %2395 = vdwg.mxu0
    %2396 = vrot.lane.b32.xlu0 %v1650, 48
    %v2397 = vpop.permute.xlu0 %2396
    %v2399 = vsel %vm2157, %v2152, 0
    %v2402 = vsel %vm1566, %v2397, 0
    %2404 = vmatprep.subr.bf16.mxu0 0
    %2405 = vmatpush1.bf16.msra.mxu0 %v2402
    %2406 = vmatprep.subr.bf16.mxu0 0
    %2407 = vmatpush1.bf16.msra.mxu0 0
    %2408 = vmatprep.subr.bf16.mxu0 0
    %2409 = vmatpush1.bf16.msra.mxu0 0
    %2410 = vmatprep.subr.bf16.mxu0 0
    %2411 = vmatpush1.bf16.msra.mxu0 0
    %2412 = vmatprep.subr.bf16.mxu0 0
    %2413 = vmatpush1.bf16.msra.mxu0 0
    %2414 = vmatprep.subr.bf16.mxu0 0
    %2415 = vmatpush1.bf16.msra.mxu0 0
    %2416 = vmatprep.subr.bf16.mxu0 0
    %2417 = vmatpush1.bf16.msra.mxu0 0
    %2418 = vmatprep.subr.bf16.mxu0 0
    %2419 = vmatpush1.bf16.msra.mxu0 0
    %2420 = vmatprep.subr.bf16.mxu0 0
    %2421 = vmatpush1.bf16.msra.mxu0 0
    %2422 = vmatprep.subr.bf16.mxu0 0
    %2423 = vmatpush1.bf16.msra.mxu0 0
    %2424 = vmatprep.subr.bf16.mxu0 0
    %2425 = vmatpush1.bf16.msra.mxu0 0
    %2426 = vmatprep.subr.bf16.mxu0 0
    %2427 = vmatpush1.bf16.msra.mxu0 0
    %2428 = vmatprep.subr.bf16.mxu0 0
    %2429 = vmatpush1.bf16.msra.mxu0 0
    %2430 = vmatprep.subr.bf16.mxu0 0
    %2431 = vmatpush1.bf16.msra.mxu0 0
    %2432 = vmatprep.subr.bf16.mxu0 0
    %2433 = vmatpush1.bf16.msra.mxu0 0
    %2434 = vmatprep.subr.bf16.mxu0 0
    %2435 = vmatpush1.bf16.msra.mxu0 0
    %2436 = vmatprep.mubr.bf16.mxu0 0
    %2437 = vmatmul.mubr.bf16.gmra.mrb[0].mxu0 %v2399
    %v2438 = vpop.f32.mrb[0].mxu0
    %v2439 = vadd.f32 0.0, %v2438
    %v2440 = vpop.f32.mrb[0].mxu0
    %v2441 = vpop.f32.mrb[0].mxu0
    %v2442 = vpop.f32.mrb[0].mxu0
    %2443 = vdwg.mxu0
    %2444 = vrot.lane.b32.xlu0 %v1649, 40
    %v2445 = vpop.permute.xlu0 %2444
    %v2447 = vsel %vm2157, %v2153, 0
    %v2450 = vsel %vm1566, %v2445, 0
    %2452 = vmatprep.subr.bf16.mxu0 0
    %2453 = vmatpush1.bf16.msra.mxu0 %v2450
    %2454 = vmatprep.subr.bf16.mxu0 0
    %2455 = vmatpush1.bf16.msra.mxu0 0
    %2456 = vmatprep.subr.bf16.mxu0 0
    %2457 = vmatpush1.bf16.msra.mxu0 0
    %2458 = vmatprep.subr.bf16.mxu0 0
    %2459 = vmatpush1.bf16.msra.mxu0 0
    %2460 = vmatprep.subr.bf16.mxu0 0
    %2461 = vmatpush1.bf16.msra.mxu0 0
    %2462 = vmatprep.subr.bf16.mxu0 0
    %2463 = vmatpush1.bf16.msra.mxu0 0
    %2464 = vmatprep.subr.bf16.mxu0 0
    %2465 = vmatpush1.bf16.msra.mxu0 0
    %2466 = vmatprep.subr.bf16.mxu0 0
    %2467 = vmatpush1.bf16.msra.mxu0 0
    %2468 = vmatprep.subr.bf16.mxu0 0
    %2469 = vmatpush1.bf16.msra.mxu0 0
    %2470 = vmatprep.subr.bf16.mxu0 0
    %2471 = vmatpush1.bf16.msra.mxu0 0
    %2472 = vmatprep.subr.bf16.mxu0 0
    %2473 = vmatpush1.bf16.msra.mxu0 0
    %2474 = vmatprep.subr.bf16.mxu0 0
    %2475 = vmatpush1.bf16.msra.mxu0 0
    %2476 = vmatprep.subr.bf16.mxu0 0
    %2477 = vmatpush1.bf16.msra.mxu0 0
    %2478 = vmatprep.subr.bf16.mxu0 0
    %2479 = vmatpush1.bf16.msra.mxu0 0
    %2480 = vmatprep.subr.bf16.mxu0 0
    %2481 = vmatpush1.bf16.msra.mxu0 0
    %2482 = vmatprep.subr.bf16.mxu0 0
    %2483 = vmatpush1.bf16.msra.mxu0 0
    %2484 = vmatprep.mubr.bf16.mxu0 0
    %2485 = vmatmul.mubr.bf16.gmra.mrb[0].mxu0 %v2447
    %v2486 = vpop.f32.mrb[0].mxu0
    %v2487 = vadd.f32 0.0, %v2486
    %v2488 = vpop.f32.mrb[0].mxu0
    %v2489 = vpop.f32.mrb[0].mxu0
    %v2490 = vpop.f32.mrb[0].mxu0
    %2491 = vdwg.mxu0
    %2492 = vrot.lane.b32.xlu0 %v1650, 40
    %v2493 = vpop.permute.xlu0 %2492
    %v2495 = vsel %vm2157, %v2154, 0
    %v2498 = vsel %vm1566, %v2493, 0
    %2500 = vmatprep.subr.bf16.mxu0 0
    %2501 = vmatpush1.bf16.msra.mxu0 %v2498
    %2502 = vmatprep.subr.bf16.mxu0 0
    %2503 = vmatpush1.bf16.msra.mxu0 0
    %2504 = vmatprep.subr.bf16.mxu0 0
    %2505 = vmatpush1.bf16.msra.mxu0 0
    %2506 = vmatprep.subr.bf16.mxu0 0
    %2507 = vmatpush1.bf16.msra.mxu0 0
    %2508 = vmatprep.subr.bf16.mxu0 0
    %2509 = vmatpush1.bf16.msra.mxu0 0
    %2510 = vmatprep.subr.bf16.mxu0 0
    %2511 = vmatpush1.bf16.msra.mxu0 0
    %2512 = vmatprep.subr.bf16.mxu0 0
    %2513 = vmatpush1.bf16.msra.mxu0 0
    %2514 = vmatprep.subr.bf16.mxu0 0
    %2515 = vmatpush1.bf16.msra.mxu0 0
    %2516 = vmatprep.subr.bf16.mxu0 0
    %2517 = vmatpush1.bf16.msra.mxu0 0
    %2518 = vmatprep.subr.bf16.mxu0 0
    %2519 = vmatpush1.bf16.msra.mxu0 0
    %2520 = vmatprep.subr.bf16.mxu0 0
    %2521 = vmatpush1.bf16.msra.mxu0 0
    %2522 = vmatprep.subr.bf16.mxu0 0
    %2523 = vmatpush1.bf16.msra.mxu0 0
    %2524 = vmatprep.subr.bf16.mxu0 0
    %2525 = vmatpush1.bf16.msra.mxu0 0
    %2526 = vmatprep.subr.bf16.mxu0 0
    %2527 = vmatpush1.bf16.msra.mxu0 0
    %2528 = vmatprep.subr.bf16.mxu0 0
    %2529 = vmatpush1.bf16.msra.mxu0 0
    %2530 = vmatprep.subr.bf16.mxu0 0
    %2531 = vmatpush1.bf16.msra.mxu0 0
    %2532 = vmatprep.mubr.bf16.mxu0 0
    %2533 = vmatmul.mubr.bf16.gmra.mrb[0].mxu0 %v2495
    %v2534 = vpop.f32.mrb[0].mxu0
    %v2535 = vadd.f32 0.0, %v2534
    %v2536 = vpop.f32.mrb[0].mxu0
    %v2537 = vpop.f32.mrb[0].mxu0
    %v2538 = vpop.f32.mrb[0].mxu0
    %2539 = vdwg.mxu0
    %2542 = vrot.lane.b32.xlu0 %v2295, 8
    %v2543 = vpop.permute.xlu0 %2542
    %2544 = vrot.lane.b32.xlu0 %v2343, 8
    %v2545 = vpop.permute.xlu0 %2544
    %2550 = vrot.lane.b32.xlu0 %v2391, 16
    %v2551 = vpop.permute.xlu0 %2550
    %2552 = vrot.lane.b32.xlu0 %v2439, 16
    %v2553 = vpop.permute.xlu0 %2552
    %2558 = vrot.lane.b32.xlu0 %v2487, 24
    %v2559 = vpop.permute.xlu0 %2558
    %2560 = vrot.lane.b32.xlu0 %v2535, 24
    %v2561 = vpop.permute.xlu0 %2560
    %v2564 = vsel %vm1654, %v2199, %v2543
    %v2565 = vsel %vm1654, %v2247, %v2545
    %v2566 = vsel %vm289, %v2564, %v2551
    %v2567 = vsel %vm289, %v2565, %v2553
    %vm2568 = vcmask 195584
    %v2569 = vsel %vm2568, %v2566, %v2559
    %v2570 = vsel %vm2568, %v2567, %v2561
    %v2573 = vcombine.low %v2569, %v2570
    %v2575 = vpack.c.bf16 %v2573, %v2573
    %v2576 = vld [vmem:[#allocation14] sm:$0xf]
    %v2577 = vld [vmem:[#allocation14 + $0x4] sm:$0xf]
    %v2578 = vld [vmem:[#allocation14 + $0x8] sm:$0xf]
    %v2579 = vld [vmem:[#allocation14 + $0xc] sm:$0xf]
    %v2580 = vld [vmem:[#allocation16] sm:$0x1]
    %v2582 = vlaneseq
    %v2583 = vshrl.u32 %v2582, 7
    %v2584 = vsub.s32 0, %v2583
    %v2585 = vrot.slane %v2580, %v2584
    %v2591 = vunpack.c.l.b16 %v2576
    %v2592 = vunpack.c.l.b16 %v2577
    %v2593 = vunpack.c.l.b16 %v2578
    %v2594 = vunpack.c.l.b16 %v2579
    %v2595 = vpack.c.b16 %v2592, %v2591
    %v2596 = vpack.c.b16 %v2594, %v2593
    %v2600 = vsel %vm292, %v2575, 0
    %2602 = vmatprep.subr.bf16.mxu0 0
    %2603 = vmatpush1.bf16.msra.mxu0 %v2595
    %2604 = vmatprep.subr.bf16.mxu0 0
    %2605 = vmatpush1.bf16.msra.mxu0 %v2596
    %2606 = vmatprep.subr.bf16.mxu0 0
    %2607 = vmatpush1.bf16.msra.mxu0 0
    %2608 = vmatprep.subr.bf16.mxu0 0
    %2609 = vmatpush1.bf16.msra.mxu0 0
    %2610 = vmatprep.subr.bf16.mxu0 0
    %2611 = vmatpush1.bf16.msra.mxu0 0
    %2612 = vmatprep.subr.bf16.mxu0 0
    %2613 = vmatpush1.bf16.msra.mxu0 0
    %2614 = vmatprep.subr.bf16.mxu0 0
    %2615 = vmatpush1.bf16.msra.mxu0 0
    %2616 = vmatprep.subr.bf16.mxu0 0
    %2617 = vmatpush1.bf16.msra.mxu0 0
    %2618 = vmatprep.subr.bf16.mxu0 0
    %2619 = vmatpush1.bf16.msra.mxu0 0
    %2620 = vmatprep.subr.bf16.mxu0 0
    %2621 = vmatpush1.bf16.msra.mxu0 0
    %2622 = vmatprep.subr.bf16.mxu0 0
    %2623 = vmatpush1.bf16.msra.mxu0 0
    %2624 = vmatprep.subr.bf16.mxu0 0
    %2625 = vmatpush1.bf16.msra.mxu0 0
    %2626 = vmatprep.subr.bf16.mxu0 0
    %2627 = vmatpush1.bf16.msra.mxu0 0
    %2628 = vmatprep.subr.bf16.mxu0 0
    %2629 = vmatpush1.bf16.msra.mxu0 0
    %2630 = vmatprep.subr.bf16.mxu0 0
    %2631 = vmatpush1.bf16.msra.mxu0 0
    %2632 = vmatprep.subr.bf16.mxu0 0
    %2633 = vmatpush1.bf16.msra.mxu0 0
    %2634 = vmatprep.mubr.bf16.mxu0 0
    %2635 = vmatmul.mubr.bf16.gmra.mrb[0].mxu0 %v2600
    %v2636 = vpop.f32.mrb[0].mxu0
    %v2637 = vadd.f32 %v2585, %v2636
    %v2638 = vpop.f32.mrb[0].mxu0
    %v2639 = vpop.f32.mrb[0].mxu0
    %v2640 = vpop.f32.mrb[0].mxu0
    %2641 = vdwg.mxu0
    %v2642 = vpack.c.bf16 %v2637, %v2637
    %v2643 = vld [vmem:[%s12] sm:$0xf]
    %v2644 = vld [vmem:[%s12 + $0x4] sm:$0xf]
    %v2645 = vld [vmem:[%s12 + $0x8] sm:$0xf]
    %v2646 = vld [vmem:[%s12 + $0xc] sm:$0xf]
    %v2647 = vld [vmem:[#allocation17] sm:$0x1]
    %v2649 = vlaneseq
    %v2650 = vshrl.u32 %v2649, 7
    %v2651 = vsub.s32 0, %v2650
    %v2652 = vrot.slane %v2647, %v2651
    %v2658 = vunpack.c.l.b16 %v2643
    %v2659 = vunpack.c.l.b16 %v2644
    %v2660 = vunpack.c.l.b16 %v2645
    %v2661 = vunpack.c.l.b16 %v2646
    %v2662 = vpack.c.b16 %v2659, %v2658
    %v2663 = vpack.c.b16 %v2661, %v2660
    %v2667 = vsel %vm292, %v2642, 0
    %2669 = vmatprep.subr.bf16.mxu0 0
    %2670 = vmatpush1.bf16.msra.mxu0 %v2662
    %2671 = vmatprep.subr.bf16.mxu0 0
    %2672 = vmatpush1.bf16.msra.mxu0 %v2663
    %2673 = vmatprep.subr.bf16.mxu0 0
    %2674 = vmatpush1.bf16.msra.mxu0 0
    %2675 = vmatprep.subr.bf16.mxu0 0
    %2676 = vmatpush1.bf16.msra.mxu0 0
    %2677 = vmatprep.subr.bf16.mxu0 0
    %2678 = vmatpush1.bf16.msra.mxu0 0
    %2679 = vmatprep.subr.bf16.mxu0 0
    %2680 = vmatpush1.bf16.msra.mxu0 0
    %2681 = vmatprep.subr.bf16.mxu0 0
    %2682 = vmatpush1.bf16.msra.mxu0 0
    %2683 = vmatprep.subr.bf16.mxu0 0
    %2684 = vmatpush1.bf16.msra.mxu0 0
    %2685 = vmatprep.subr.bf16.mxu0 0
    %2686 = vmatpush1.bf16.msra.mxu0 0
    %2687 = vmatprep.subr.bf16.mxu0 0
    %2688 = vmatpush1.bf16.msra.mxu0 0
    %2689 = vmatprep.subr.bf16.mxu0 0
    %2690 = vmatpush1.bf16.msra.mxu0 0
    %2691 = vmatprep.subr.bf16.mxu0 0
    %2692 = vmatpush1.bf16.msra.mxu0 0
    %2693 = vmatprep.subr.bf16.mxu0 0
    %2694 = vmatpush1.bf16.msra.mxu0 0
    %2695 = vmatprep.subr.bf16.mxu0 0
    %2696 = vmatpush1.bf16.msra.mxu0 0
    %2697 = vmatprep.subr.bf16.mxu0 0
    %2698 = vmatpush1.bf16.msra.mxu0 0
    %2699 = vmatprep.subr.bf16.mxu0 0
    %2700 = vmatpush1.bf16.msra.mxu0 0
    %2701 = vmatprep.mubr.bf16.mxu0 0
    %2702 = vmatmul.mubr.bf16.gmra.mrb[0].mxu0 %v2667
    %v2703 = vpop.f32.mrb[0].mxu0
    %v2704 = vadd.f32 %v2652, %v2703
    %v2705 = vpop.f32.mrb[0].mxu0
    %v2706 = vpop.f32.mrb[0].mxu0
    %v2707 = vpop.f32.mrb[0].mxu0
    %2708 = vdwg.mxu0
    %v2709 = vpack.c.bf16 %v2704, %v2704
    %v2710 = vld [vmem:[#allocation19] sm:$0xf]
    %v2711 = vld [vmem:[#allocation19 + $0x4] sm:$0xf]
    %v2712 = vld [vmem:[#allocation22] sm:$0x1]
    %v2714 = vlaneseq
    %v2715 = vshrl.u32 %v2714, 7
    %v2716 = vsub.s32 0, %v2715
    %v2717 = vrot.slane %v2712, %v2716
    %v2721 = vunpack.c.l.b16 %v2710
    %v2722 = vunpack.c.l.b16 %v2711
    %v2723 = vpack.c.b16 %v2722, %v2721
    %v2726 = vsel %vm289, %v2709, 0
    %2728 = vmatprep.subr.bf16.mxu0 0
    %2729 = vmatpush1.bf16.msra.mxu0 %v2723
    %2730 = vmatprep.subr.bf16.mxu0 0
    %2731 = vmatpush1.bf16.msra.mxu0 0
    %2732 = vmatprep.subr.bf16.mxu0 0
    %2733 = vmatpush1.bf16.msra.mxu0 0
    %2734 = vmatprep.subr.bf16.mxu0 0
    %2735 = vmatpush1.bf16.msra.mxu0 0
    %2736 = vmatprep.subr.bf16.mxu0 0
    %2737 = vmatpush1.bf16.msra.mxu0 0
    %2738 = vmatprep.subr.bf16.mxu0 0
    %2739 = vmatpush1.bf16.msra.mxu0 0
    %2740 = vmatprep.subr.bf16.mxu0 0
    %2741 = vmatpush1.bf16.msra.mxu0 0
    %2742 = vmatprep.subr.bf16.mxu0 0
    %2743 = vmatpush1.bf16.msra.mxu0 0
    %2744 = vmatprep.subr.bf16.mxu0 0
    %2745 = vmatpush1.bf16.msra.mxu0 0
    %2746 = vmatprep.subr.bf16.mxu0 0
    %2747 = vmatpush1.bf16.msra.mxu0 0
    %2748 = vmatprep.subr.bf16.mxu0 0
    %2749 = vmatpush1.bf16.msra.mxu0 0
    %2750 = vmatprep.subr.bf16.mxu0 0
    %2751 = vmatpush1.bf16.msra.mxu0 0
    %2752 = vmatprep.subr.bf16.mxu0 0
    %2753 = vmatpush1.bf16.msra.mxu0 0
    %2754 = vmatprep.subr.bf16.mxu0 0
    %2755 = vmatpush1.bf16.msra.mxu0 0
    %2756 = vmatprep.subr.bf16.mxu0 0
    %2757 = vmatpush1.bf16.msra.mxu0 0
    %2758 = vmatprep.subr.bf16.mxu0 0
    %2759 = vmatpush1.bf16.msra.mxu0 0
    %2760 = vmatprep.mubr.bf16.mxu0 0
    %2761 = vmatmul.mubr.bf16.gmra.mrb[0].mxu0 %v2726
    %v2762 = vpop.f32.mrb[0].mxu0
    %v2763 = vadd.f32 %v2717, %v2762
    %v2764 = vpop.f32.mrb[0].mxu0
    %v2765 = vpop.f32.mrb[0].mxu0
    %v2766 = vpop.f32.mrb[0].mxu0
    %2767 = vdwg.mxu0
    %v2769 = vcombine.high %v2763, %v2763
    %v2771 = vld [vmem:[#allocation20] sm:$0xf]
    %v2772 = vld [vmem:[#allocation20 + $0x4] sm:$0xf]
    %v2773 = vld [vmem:[#allocation20 + $0x8] sm:$0xf]
    %v2774 = vld [vmem:[#allocation20 + $0xc] sm:$0xf]
    %v2775 = vld [vmem:[%s17] sm:$0xf]
    %v2776 = vld [vmem:[%s17 + $0x4] sm:$0xf]
    %v2777 = vld [vmem:[%s17 + $0x8] sm:$0xf]
    %v2778 = vld [vmem:[%s17 + $0xc] sm:$0xf]
    %v2779 = vld [vmem:[%s17 + $0x10] sm:$0xf]
    %v2780 = vld [vmem:[%s17 + $0x14] sm:$0xf]
    %v2781 = vld [vmem:[%s17 + $0x18] sm:$0xf]
    %v2782 = vld [vmem:[%s17 + $0x1c] sm:$0xf]
    %v2783 = vld [vmem:[#allocation23] sm:$0x1]
    %v2788 = vunpack.c.l.b16 %v2771
    %v2789 = vunpack.c.l.b16 %v2772
    %v2790 = vunpack.c.l.b16 %v2773
    %v2791 = vunpack.c.l.b16 %v2774
    %v2792 = vpack.c.b16 %v2789, %v2788
    %v2793 = vpack.c.b16 %v2791, %v2790
    %2796 = vmatprep.subr.bf16.mxu0 0
    %2797 = vmatpush1.bf16.msra.mxu0 %v2792
    %2798 = vmatprep.subr.bf16.mxu0 0
    %2799 = vmatpush1.bf16.msra.mxu0 %v2793
    %2800 = vmatprep.subr.bf16.mxu0 0
    %2801 = vmatpush1.bf16.msra.mxu0 0
    %2802 = vmatprep.subr.bf16.mxu0 0
    %2803 = vmatpush1.bf16.msra.mxu0 0
    %2804 = vmatprep.subr.bf16.mxu0 0
    %2805 = vmatpush1.bf16.msra.mxu0 0
    %2806 = vmatprep.subr.bf16.mxu0 0
    %2807 = vmatpush1.bf16.msra.mxu0 0
    %2808 = vmatprep.subr.bf16.mxu0 0
    %2809 = vmatpush1.bf16.msra.mxu0 0
    %2810 = vmatprep.subr.bf16.mxu0 0
    %2811 = vmatpush1.bf16.msra.mxu0 0
    %2812 = vmatprep.subr.bf16.mxu0 0
    %2813 = vmatpush1.bf16.msra.mxu0 0
    %2814 = vmatprep.subr.bf16.mxu0 0
    %2815 = vmatpush1.bf16.msra.mxu0 0
    %2816 = vmatprep.subr.bf16.mxu0 0
    %2817 = vmatpush1.bf16.msra.mxu0 0
    %2818 = vmatprep.subr.bf16.mxu0 0
    %2819 = vmatpush1.bf16.msra.mxu0 0
    %2820 = vmatprep.subr.bf16.mxu0 0
    %2821 = vmatpush1.bf16.msra.mxu0 0
    %2822 = vmatprep.subr.bf16.mxu0 0
    %2823 = vmatpush1.bf16.msra.mxu0 0
    %2824 = vmatprep.subr.bf16.mxu0 0
    %2825 = vmatpush1.bf16.msra.mxu0 0
    %2826 = vmatprep.subr.bf16.mxu0 0
    %2827 = vmatpush1.bf16.msra.mxu0 0
    %2828 = vmatprep.mubr.bf16.mxu0 0
    %2829 = vmatmul.mubr.bf16.gmra.mrb[0].mxu0 %v608
    %v2830 = vpop.f32.mrb[0].mxu0
    %v2831 = vadd.f32 0.0, %v2830
    %v2832 = vpop.f32.mrb[0].mxu0
    %v2833 = vpop.f32.mrb[0].mxu0
    %v2834 = vpop.f32.mrb[0].mxu0
    %2835 = vdwg.mxu0
    %v2837 = vrot.slane %v2831, 1
    %v2840 = vadd.f32 %v2763, %v2831
    %v2841 = vadd.f32 %v2769, %v2837
    %v2842 = vxor.u32 %v2840, 2147483648
    %v2843 = vxor.u32 %v2841, 2147483648
    %v2844 = vmul.f32 %v2842, 1.442695
    %v2845 = vpow.pop %v2844
    %v2846 = vmul.f32 %v2843, 1.442695
    %v2847 = vpow.pop %v2846
    %v2848 = vadd.f32 %v2845, 1.0
    %v2849 = vadd.f32 %v2847, 1.0
    %v2850 = vrcp.pop %v2848
    %v2851 = vmul.f32 1.0, %v2850
    %v2852 = vrcp.pop %v2849
    %v2853 = vmul.f32 1.0, %v2852
    %v2854 = vtanh.pop %v2840
    %v2855 = vtanh.pop %v2841
    %v2856 = vmul.f32 %v2851, 0.0
    %v2857 = vmul.f32 %v2853, 0.0
    %2860 = vrot.lane.b32.xlu0 %v2854, 64
    %v2861 = vpop.permute.xlu0 %2860
    %2862 = vrot.lane.b32.xlu0 %v2855, 64
    %v2863 = vpop.permute.xlu0 %2862
    %v2866 = vmul.f32 %v2851, %v2861
    %v2867 = vmul.f32 %v2853, %v2863
    %2870 = vrot.lane.b32.xlu0 %v2866, 32
    %v2871 = vpop.permute.xlu0 %2870
    %2872 = vrot.lane.b32.xlu0 %v2867, 32
    %v2873 = vpop.permute.xlu0 %2872
    %v2876 = vadd.f32 %v2856, %v2871
    %v2877 = vadd.f32 %v2857, %v2873
    %v2878 = vtanh.pop %v2876
    %v2879 = vtanh.pop %v2877
    %2882 = vrot.lane.b32.xlu0 %v2878, 64
    %v2883 = vpop.permute.xlu0 %2882
    %2884 = vrot.lane.b32.xlu0 %v2879, 64
    %v2885 = vpop.permute.xlu0 %2884
    %v2888 = vmul.f32 %v2851, %v2883
    %v2889 = vmul.f32 %v2853, %v2885
    %v2892 = vlaneseq
    %v2893 = vshrl.u32 %v2892, 7
    %v2894 = vsub.s32 0, %v2893
    %v2895 = vrot.slane %v2888, %v2894
    %v2896 = vlaneseq
    %v2897 = vshrl.u32 %v2896, 7
    %v2898 = vsub.s32 0, %v2897
    %v2899 = vrot.slane %v2889, %v2898
    %v2900 = vsel %vm490, %v2899, %v2895
    %2901 = vrot.lane.b32.xlu0 %v2900, 32
    %v2902 = vpop.permute.xlu0 %2901
    %v2904 = vsel %vm292, %v2902, 0.0
    %v2905 = vpack.c.bf16 %v2904, %v2904
    %v2907 = vlaneseq
    %v2908 = vshrl.u32 %v2907, 7
    %v2909 = vsub.s32 0, %v2908
    %v2910 = vrot.slane %v2783, %v2909
    %v2920 = vunpack.c.l.b16 %v2775
    %v2921 = vunpack.c.l.b16 %v2776
    %v2922 = vunpack.c.l.b16 %v2777
    %v2923 = vunpack.c.l.b16 %v2778
    %v2924 = vunpack.c.l.b16 %v2779
    %v2925 = vunpack.c.l.b16 %v2780
    %v2926 = vunpack.c.l.b16 %v2781
    %v2927 = vunpack.c.l.b16 %v2782
    %v2928 = vpack.c.b16 %v2921, %v2920
    %v2929 = vpack.c.b16 %v2923, %v2922
    %v2930 = vpack.c.b16 %v2925, %v2924
    %v2931 = vpack.c.b16 %v2927, %v2926
    %v2937 = vsel %vm535, %v2905, 0
    %2939 = vmatprep.subr.bf16.mxu0 0
    %2940 = vmatpush1.bf16.msra.mxu0 %v2928
    %2941 = vmatprep.subr.bf16.mxu0 0
    %2942 = vmatpush1.bf16.msra.mxu0 %v2929
    %2943 = vmatprep.subr.bf16.mxu0 0
    %2944 = vmatpush1.bf16.msra.mxu0 %v2930
    %2945 = vmatprep.subr.bf16.mxu0 0
    %2946 = vmatpush1.bf16.msra.mxu0 %v2931
    %2947 = vmatprep.subr.bf16.mxu0 0
    %2948 = vmatpush1.bf16.msra.mxu0 0
    %2949 = vmatprep.subr.bf16.mxu0 0
    %2950 = vmatpush1.bf16.msra.mxu0 0
    %2951 = vmatprep.subr.bf16.mxu0 0
    %2952 = vmatpush1.bf16.msra.mxu0 0
    %2953 = vmatprep.subr.bf16.mxu0 0
    %2954 = vmatpush1.bf16.msra.mxu0 0
    %2955 = vmatprep.subr.bf16.mxu0 0
    %2956 = vmatpush1.bf16.msra.mxu0 0
    %2957 = vmatprep.subr.bf16.mxu0 0
    %2958 = vmatpush1.bf16.msra.mxu0 0
    %2959 = vmatprep.subr.bf16.mxu0 0
    %2960 = vmatpush1.bf16.msra.mxu0 0
    %2961 = vmatprep.subr.bf16.mxu0 0
    %2962 = vmatpush1.bf16.msra.mxu0 0
    %2963 = vmatprep.subr.bf16.mxu0 0
    %2964 = vmatpush1.bf16.msra.mxu0 0
    %2965 = vmatprep.subr.bf16.mxu0 0
    %2966 = vmatpush1.bf16.msra.mxu0 0
    %2967 = vmatprep.subr.bf16.mxu0 0
    %2968 = vmatpush1.bf16.msra.mxu0 0
    %2969 = vmatprep.subr.bf16.mxu0 0
    %2970 = vmatpush1.bf16.msra.mxu0 0
    %2971 = vmatprep.mubr.bf16.mxu0 0
    %2972 = vmatmul.mubr.bf16.gmra.mrb[0].mxu0 %v2937
    %v2973 = vpop.f32.mrb[0].mxu0
    %v2974 = vadd.f32 %v2910, %v2973
    %v2975 = vpop.f32.mrb[0].mxu0
    %v2976 = vpop.f32.mrb[0].mxu0
    %v2977 = vpop.f32.mrb[0].mxu0
    %2978 = vdwg.mxu0
    %v2979 = vxor.u32 %v2974, 2147483648
    %v2980 = vmul.f32 %v2979, 1.442695
    %v2981 = vpow.pop %v2980
    %v2982 = vadd.f32 %v2981, 1.0
    %v2983 = vrcp.pop %v2982
    %v2984 = vmul.f32 1.0, %v2983
    %v2985 = vtanh.pop %v2974
    %v2986 = vmul.f32 %v2984, 0.0
    %2988 = vrot.lane.b32.xlu0 %v2985, 64
    %v2989 = vpop.permute.xlu0 %2988
    %v2991 = vmul.f32 %v2984, %v2989
    %2993 = vrot.lane.b32.xlu0 %v2991, 32
    %v2994 = vpop.permute.xlu0 %2993
    %v2996 = vadd.f32 %v2986, %v2994
    %v2997 = vtanh.pop %v2996
    %2999 = vrot.lane.b32.xlu0 %v2997, 64
    %v3000 = vpop.permute.xlu0 %2999
    %v3002 = vmul.f32 %v2984, %v3000
    %v3003 = vpack.c.bf16 %v2888, %v2888
    %v3004 = vpack.c.bf16 %v2889, %v2889
    %v3007 = vunpack.c.l.b16 %v3003
    %v3008 = vunpack.c.l.b16 %v3004
    %v3009 = vrot.slane %v3008, 7
    %v3010 = vsel %vm490, %v3009, %v3007
    %v3011 = vpack.c.b16 %v3010, %v3010
    %3012 = vrot.lane.b32.xlu0 %v3011, 32
    %v3013 = vpop.permute.xlu0 %3012
    %v3015 = vsel %vm292, %v3013, 0
    %3017 = vmatprep.subr.bf16.mxu0 0
    %3018 = vmatpush1.bf16.msra.mxu0 %v2792
    %3019 = vmatprep.subr.bf16.mxu0 0
    %3020 = vmatpush1.bf16.msra.mxu0 %v2793
    %3021 = vmatprep.subr.bf16.mxu0 0
    %3022 = vmatpush1.bf16.msra.mxu0 0
    %3023 = vmatprep.subr.bf16.mxu0 0
    %3024 = vmatpush1.bf16.msra.mxu0 0
    %3025 = vmatprep.subr.bf16.mxu0 0
    %3026 = vmatpush1.bf16.msra.mxu0 0
    %3027 = vmatprep.subr.bf16.mxu0 0
    %3028 = vmatpush1.bf16.msra.mxu0 0
    %3029 = vmatprep.subr.bf16.mxu0 0
    %3030 = vmatpush1.bf16.msra.mxu0 0
    %3031 = vmatprep.subr.bf16.mxu0 0
    %3032 = vmatpush1.bf16.msra.mxu0 0
    %3033 = vmatprep.subr.bf16.mxu0 0
    %3034 = vmatpush1.bf16.msra.mxu0 0
    %3035 = vmatprep.subr.bf16.mxu0 0
    %3036 = vmatpush1.bf16.msra.mxu0 0
    %3037 = vmatprep.subr.bf16.mxu0 0
    %3038 = vmatpush1.bf16.msra.mxu0 0
    %3039 = vmatprep.subr.bf16.mxu0 0
    %3040 = vmatpush1.bf16.msra.mxu0 0
    %3041 = vmatprep.subr.bf16.mxu0 0
    %3042 = vmatpush1.bf16.msra.mxu0 0
    %3043 = vmatprep.subr.bf16.mxu0 0
    %3044 = vmatpush1.bf16.msra.mxu0 0
    %3045 = vmatprep.subr.bf16.mxu0 0
    %3046 = vmatpush1.bf16.msra.mxu0 0
    %3047 = vmatprep.subr.bf16.mxu0 0
    %3048 = vmatpush1.bf16.msra.mxu0 0
    %3049 = vmatprep.mubr.bf16.mxu0 0
    %3050 = vmatmul.mubr.bf16.gmra.mrb[0].mxu0 %v3015
    %v3051 = vpop.f32.mrb[0].mxu0
    %v3052 = vadd.f32 0.0, %v3051
    %v3053 = vpop.f32.mrb[0].mxu0
    %v3054 = vpop.f32.mrb[0].mxu0
    %v3055 = vpop.f32.mrb[0].mxu0
    %3056 = vdwg.mxu0
    %v3058 = vrot.slane %v3052, 7
    %v3061 = vadd.f32 %v2763, %v3058
    %v3062 = vadd.f32 %v2769, %v3052
    %v3063 = vxor.u32 %v3061, 2147483648
    %v3064 = vxor.u32 %v3062, 2147483648
    %v3065 = vmul.f32 %v3063, 1.442695
    %v3066 = vpow.pop %v3065
    %v3067 = vmul.f32 %v3064, 1.442695
    %v3068 = vpow.pop %v3067
    %v3069 = vadd.f32 %v3066, 1.0
    %v3070 = vadd.f32 %v3068, 1.0
    %v3071 = vrcp.pop %v3069
    %v3072 = vmul.f32 1.0, %v3071
    %v3073 = vrcp.pop %v3070
    %v3074 = vmul.f32 1.0, %v3073
    %v3075 = vtanh.pop %v3061
    %v3076 = vtanh.pop %v3062
    %v3079 = vrot.slane %v2876, 7
    %v3080 = vrot.slane %v2877, 7
    %v3083 = vmul.f32 %v3072, %v3079
    %v3084 = vmul.f32 %v3074, %v3080
    %3087 = vrot.lane.b32.xlu0 %v3075, 64
    %v3088 = vpop.permute.xlu0 %3087
    %3089 = vrot.lane.b32.xlu0 %v3076, 64
    %v3090 = vpop.permute.xlu0 %3089
    %v3093 = vmul.f32 %v3072, %v3088
    %v3094 = vmul.f32 %v3074, %v3090
    %3097 = vrot.lane.b32.xlu0 %v3093, 32
    %v3098 = vpop.permute.xlu0 %3097
    %3099 = vrot.lane.b32.xlu0 %v3094, 32
    %v3100 = vpop.permute.xlu0 %3099
    %v3103 = vadd.f32 %v3083, %v3098
    %v3104 = vadd.f32 %v3084, %v3100
    %v3105 = vtanh.pop %v3103
    %v3106 = vtanh.pop %v3104
    %3109 = vrot.lane.b32.xlu0 %v3105, 64
    %v3110 = vpop.permute.xlu0 %3109
    %3111 = vrot.lane.b32.xlu0 %v3106, 64
    %v3112 = vpop.permute.xlu0 %3111
    %v3115 = vmul.f32 %v3072, %v3110
    %v3116 = vmul.f32 %v3074, %v3112
    %v3119 = vlaneseq
    %v3120 = vshrl.u32 %v3119, 7
    %v3121 = vsub.s32 1, %v3120
    %v3122 = vrot.slane %v3115, %v3121
    %v3123 = vlaneseq
    %v3124 = vshrl.u32 %v3123, 7
    %v3125 = vsub.s32 1, %v3124
    %v3126 = vrot.slane %v3116, %v3125
    %v3127 = vsel %vm493, %v3126, %v3122
    %3128 = vrot.lane.b32.xlu0 %v3127, 32
    %v3129 = vpop.permute.xlu0 %3128
    %v3132 = vrot.slane %v3002, 7
    %3133 = vrot.lane.b32.xlu0 %v3132, 64
    %v3134 = vpop.permute.xlu0 %3133
    %v3136 = vsel %vm292, %v3129, %v3134
    %v3137 = vpack.c.bf16 %v3136, %v3136
    %v3139 = vshrl.u32 %v3137, 16
    %v3141 = vshll.u32 %v3137, 16
    %v3143 = vrot.slane %v3141, 1
    %v3144 = vor.u32 %v3139, %v3143
    %v3146 = vsel %vm535, %v3144, 0
    %3148 = vmatprep.subr.bf16.mxu0 0
    %3149 = vmatpush1.bf16.msra.mxu0 %v2928
    %3150 = vmatprep.subr.bf16.mxu0 0
    %3151 = vmatpush1.bf16.msra.mxu0 %v2929
    %3152 = vmatprep.subr.bf16.mxu0 0
    %3153 = vmatpush1.bf16.msra.mxu0 %v2930
    %3154 = vmatprep.subr.bf16.mxu0 0
    %3155 = vmatpush1.bf16.msra.mxu0 %v2931
    %3156 = vmatprep.subr.bf16.mxu0 0
    %3157 = vmatpush1.bf16.msra.mxu0 0
    %3158 = vmatprep.subr.bf16.mxu0 0
    %3159 = vmatpush1.bf16.msra.mxu0 0
    %3160 = vmatprep.subr.bf16.mxu0 0
    %3161 = vmatpush1.bf16.msra.mxu0 0
    %3162 = vmatprep.subr.bf16.mxu0 0
    %3163 = vmatpush1.bf16.msra.mxu0 0
    %3164 = vmatprep.subr.bf16.mxu0 0
    %3165 = vmatpush1.bf16.msra.mxu0 0
    %3166 = vmatprep.subr.bf16.mxu0 0
    %3167 = vmatpush1.bf16.msra.mxu0 0
    %3168 = vmatprep.subr.bf16.mxu0 0
    %3169 = vmatpush1.bf16.msra.mxu0 0
    %3170 = vmatprep.subr.bf16.mxu0 0
    %3171 = vmatpush1.bf16.msra.mxu0 0
    %3172 = vmatprep.subr.bf16.mxu0 0
    %3173 = vmatpush1.bf16.msra.mxu0 0
    %3174 = vmatprep.subr.bf16.mxu0 0
    %3175 = vmatpush1.bf16.msra.mxu0 0
    %3176 = vmatprep.subr.bf16.mxu0 0
    %3177 = vmatpush1.bf16.msra.mxu0 0
    %3178 = vmatprep.subr.bf16.mxu0 0
    %3179 = vmatpush1.bf16.msra.mxu0 0
    %3180 = vmatprep.mubr.bf16.mxu0 0
    %3181 = vmatmul.mubr.bf16.gmra.mrb[0].mxu0 %v3146
    %v3182 = vpop.f32.mrb[0].mxu0
    %v3183 = vadd.f32 %v2910, %v3182
    %v3184 = vpop.f32.mrb[0].mxu0
    %v3185 = vpop.f32.mrb[0].mxu0
    %v3186 = vpop.f32.mrb[0].mxu0
    %3187 = vdwg.mxu0
    %v3188 = vxor.u32 %v3183, 2147483648
    %v3189 = vmul.f32 %v3188, 1.442695
    %v3190 = vpow.pop %v3189
    %v3191 = vadd.f32 %v3190, 1.0
    %v3192 = vrcp.pop %v3191
    %v3193 = vmul.f32 1.0, %v3192
    %v3194 = vtanh.pop %v3183
    %v3195 = vmul.f32 %v3193, %v2996
    %3197 = vrot.lane.b32.xlu0 %v3194, 64
    %v3198 = vpop.permute.xlu0 %3197
    %v3200 = vmul.f32 %v3193, %v3198
    %3202 = vrot.lane.b32.xlu0 %v3200, 32
    %v3203 = vpop.permute.xlu0 %3202
    %v3205 = vadd.f32 %v3195, %v3203
    %v3206 = vtanh.pop %v3205
    %3208 = vrot.lane.b32.xlu0 %v3206, 64
    %v3209 = vpop.permute.xlu0 %3208
    %v3211 = vmul.f32 %v3193, %v3209
    %v3212 = vpack.c.bf16 %v3115, %v3115
    %v3213 = vpack.c.bf16 %v3116, %v3116
    %v3216 = vunpack.c.l.b16 %v3212
    %v3217 = vunpack.c.l.b16 %v3213
    %v3218 = vrot.slane %v3216, 1
    %v3219 = vsel %vm490, %v3217, %v3218
    %v3220 = vpack.c.b16 %v3219, %v3219
    %3221 = vrot.lane.b32.xlu0 %v3220, 32
    %v3222 = vpop.permute.xlu0 %3221
    %v3224 = vsel %vm292, %v3222, 0
    %3226 = vmatprep.subr.bf16.mxu0 0
    %3227 = vmatpush1.bf16.msra.mxu0 %v2792
    %3228 = vmatprep.subr.bf16.mxu0 0
    %3229 = vmatpush1.bf16.msra.mxu0 %v2793
    %3230 = vmatprep.subr.bf16.mxu0 0
    %3231 = vmatpush1.bf16.msra.mxu0 0
    %3232 = vmatprep.subr.bf16.mxu0 0
    %3233 = vmatpush1.bf16.msra.mxu0 0
    %3234 = vmatprep.subr.bf16.mxu0 0
    %3235 = vmatpush1.bf16.msra.mxu0 0
    %3236 = vmatprep.subr.bf16.mxu0 0
    %3237 = vmatpush1.bf16.msra.mxu0 0
    %3238 = vmatprep.subr.bf16.mxu0 0
    %3239 = vmatpush1.bf16.msra.mxu0 0
    %3240 = vmatprep.subr.bf16.mxu0 0
    %3241 = vmatpush1.bf16.msra.mxu0 0
    %3242 = vmatprep.subr.bf16.mxu0 0
    %3243 = vmatpush1.bf16.msra.mxu0 0
    %3244 = vmatprep.subr.bf16.mxu0 0
    %3245 = vmatpush1.bf16.msra.mxu0 0
    %3246 = vmatprep.subr.bf16.mxu0 0
    %3247 = vmatpush1.bf16.msra.mxu0 0
    %3248 = vmatprep.subr.bf16.mxu0 0
    %3249 = vmatpush1.bf16.msra.mxu0 0
    %3250 = vmatprep.subr.bf16.mxu0 0
    %3251 = vmatpush1.bf16.msra.mxu0 0
    %3252 = vmatprep.subr.bf16.mxu0 0
    %3253 = vmatpush1.bf16.msra.mxu0 0
    %3254 = vmatprep.subr.bf16.mxu0 0
    %3255 = vmatpush1.bf16.msra.mxu0 0
    %3256 = vmatprep.subr.bf16.mxu0 0
    %3257 = vmatpush1.bf16.msra.mxu0 0
    %3258 = vmatprep.mubr.bf16.mxu0 0
    %3259 = vmatmul.mubr.bf16.gmra.mrb[0].mxu0 %v3224
    %v3260 = vpop.f32.mrb[0].mxu0
    %v3261 = vadd.f32 0.0, %v3260
    %v3262 = vpop.f32.mrb[0].mxu0
    %v3263 = vpop.f32.mrb[0].mxu0
    %v3264 = vpop.f32.mrb[0].mxu0
    %3265 = vdwg.mxu0
    %v3267 = vrot.slane %v3261, 6
    %v3268 = vrot.slane %v3261, 7
    %v3271 = vadd.f32 %v2763, %v3267
    %v3272 = vadd.f32 %v2769, %v3268
    %v3273 = vxor.u32 %v3271, 2147483648
    %v3274 = vxor.u32 %v3272, 2147483648
    %v3275 = vmul.f32 %v3273, 1.442695
    %v3276 = vpow.pop %v3275
    %v3277 = vmul.f32 %v3274, 1.442695
    %v3278 = vpow.pop %v3277
    %v3279 = vadd.f32 %v3276, 1.0
    %v3280 = vadd.f32 %v3278, 1.0
    %v3281 = vrcp.pop %v3279
    %v3282 = vmul.f32 1.0, %v3281
    %v3283 = vrcp.pop %v3280
    %v3284 = vmul.f32 1.0, %v3283
    %v3285 = vtanh.pop %v3271
    %v3286 = vtanh.pop %v3272
    %v3289 = vrot.slane %v3103, 7
    %v3290 = vrot.slane %v3104, 7
    %v3293 = vmul.f32 %v3282, %v3289
    %v3294 = vmul.f32 %v3284, %v3290
    %3297 = vrot.lane.b32.xlu0 %v3285, 64
    %v3298 = vpop.permute.xlu0 %3297
    %3299 = vrot.lane.b32.xlu0 %v3286, 64
    %v3300 = vpop.permute.xlu0 %3299
    %v3303 = vmul.f32 %v3282, %v3298
    %v3304 = vmul.f32 %v3284, %v3300
    %3307 = vrot.lane.b32.xlu0 %v3303, 32
    %v3308 = vpop.permute.xlu0 %3307
    %3309 = vrot.lane.b32.xlu0 %v3304, 32
    %v3310 = vpop.permute.xlu0 %3309
    %v3313 = vadd.f32 %v3293, %v3308
    %v3314 = vadd.f32 %v3294, %v3310
    %v3315 = vtanh.pop %v3313
    %v3316 = vtanh.pop %v3314
    %3319 = vrot.lane.b32.xlu0 %v3315, 64
    %v3320 = vpop.permute.xlu0 %3319
    %3321 = vrot.lane.b32.xlu0 %v3316, 64
    %v3322 = vpop.permute.xlu0 %3321
    %v3325 = vmul.f32 %v3282, %v3320
    %v3326 = vmul.f32 %v3284, %v3322
    %v3329 = vlaneseq
    %v3330 = vshrl.u32 %v3329, 7
    %v3331 = vsub.s32 2, %v3330
    %v3332 = vrot.slane %v3325, %v3331
    %v3333 = vlaneseq
    %v3334 = vshrl.u32 %v3333, 7
    %v3335 = vsub.s32 2, %v3334
    %v3336 = vrot.slane %v3326, %v3335
    %v3337 = vsel %vm496, %v3336, %v3332
    %3338 = vrot.lane.b32.xlu0 %v3337, 32
    %v3339 = vpop.permute.xlu0 %3338
    %v3342 = vrot.slane %v3211, 6
    %3343 = vrot.lane.b32.xlu0 %v3342, 64
    %v3344 = vpop.permute.xlu0 %3343
    %v3346 = vsel %vm292, %v3339, %v3344
    %v3347 = vpack.c.bf16 %v3346, %v3346
    %v3349 = vrot.slane %v3347, 1
    %v3351 = vsel %vm535, %v3349, 0
    %3353 = vmatprep.subr.bf16.mxu0 0
    %3354 = vmatpush1.bf16.msra.mxu0 %v2928
    %3355 = vmatprep.subr.bf16.mxu0 0
    %3356 = vmatpush1.bf16.msra.mxu0 %v2929
    %3357 = vmatprep.subr.bf16.mxu0 0
    %3358 = vmatpush1.bf16.msra.mxu0 %v2930
    %3359 = vmatprep.subr.bf16.mxu0 0
    %3360 = vmatpush1.bf16.msra.mxu0 %v2931
    %3361 = vmatprep.subr.bf16.mxu0 0
    %3362 = vmatpush1.bf16.msra.mxu0 0
    %3363 = vmatprep.subr.bf16.mxu0 0
    %3364 = vmatpush1.bf16.msra.mxu0 0
    %3365 = vmatprep.subr.bf16.mxu0 0
    %3366 = vmatpush1.bf16.msra.mxu0 0
    %3367 = vmatprep.subr.bf16.mxu0 0
    %3368 = vmatpush1.bf16.msra.mxu0 0
    %3369 = vmatprep.subr.bf16.mxu0 0
    %3370 = vmatpush1.bf16.msra.mxu0 0
    %3371 = vmatprep.subr.bf16.mxu0 0
    %3372 = vmatpush1.bf16.msra.mxu0 0
    %3373 = vmatprep.subr.bf16.mxu0 0
    %3374 = vmatpush1.bf16.msra.mxu0 0
    %3375 = vmatprep.subr.bf16.mxu0 0
    %3376 = vmatpush1.bf16.msra.mxu0 0
    %3377 = vmatprep.subr.bf16.mxu0 0
    %3378 = vmatpush1.bf16.msra.mxu0 0
    %3379 = vmatprep.subr.bf16.mxu0 0
    %3380 = vmatpush1.bf16.msra.mxu0 0
    %3381 = vmatprep.subr.bf16.mxu0 0
    %3382 = vmatpush1.bf16.msra.mxu0 0
    %3383 = vmatprep.subr.bf16.mxu0 0
    %3384 = vmatpush1.bf16.msra.mxu0 0
    %3385 = vmatprep.mubr.bf16.mxu0 0
    %3386 = vmatmul.mubr.bf16.gmra.mrb[0].mxu0 %v3351
    %v3387 = vpop.f32.mrb[0].mxu0
    %v3388 = vadd.f32 %v2910, %v3387
    %v3389 = vpop.f32.mrb[0].mxu0
    %v3390 = vpop.f32.mrb[0].mxu0
    %v3391 = vpop.f32.mrb[0].mxu0
    %3392 = vdwg.mxu0
    %v3393 = vxor.u32 %v3388, 2147483648
    %v3394 = vmul.f32 %v3393, 1.442695
    %v3395 = vpow.pop %v3394
    %v3396 = vadd.f32 %v3395, 1.0
    %v3397 = vrcp.pop %v3396
    %v3398 = vmul.f32 1.0, %v3397
    %v3399 = vtanh.pop %v3388
    %v3400 = vmul.f32 %v3398, %v3205
    %3402 = vrot.lane.b32.xlu0 %v3399, 64
    %v3403 = vpop.permute.xlu0 %3402
    %v3405 = vmul.f32 %v3398, %v3403
    %3407 = vrot.lane.b32.xlu0 %v3405, 32
    %v3408 = vpop.permute.xlu0 %3407
    %v3410 = vadd.f32 %v3400, %v3408
    %v3411 = vtanh.pop %v3410
    %3413 = vrot.lane.b32.xlu0 %v3411, 64
    %v3414 = vpop.permute.xlu0 %3413
    %v3416 = vmul.f32 %v3398, %v3414
    %v3417 = vpack.c.bf16 %v3325, %v3325
    %v3418 = vpack.c.bf16 %v3326, %v3326
    %v3421 = vunpack.c.l.b16 %v3417
    %v3422 = vunpack.c.l.b16 %v3418
    %v3423 = vrot.slane %v3421, 2
    %v3424 = vrot.slane %v3422, 1
    %v3425 = vsel %vm490, %v3424, %v3423
    %v3426 = vpack.c.b16 %v3425, %v3425
    %3427 = vrot.lane.b32.xlu0 %v3426, 32
    %v3428 = vpop.permute.xlu0 %3427
    %v3430 = vsel %vm292, %v3428, 0
    %3432 = vmatprep.subr.bf16.mxu0 0
    %3433 = vmatpush1.bf16.msra.mxu0 %v2792
    %3434 = vmatprep.subr.bf16.mxu0 0
    %3435 = vmatpush1.bf16.msra.mxu0 %v2793
    %3436 = vmatprep.subr.bf16.mxu0 0
    %3437 = vmatpush1.bf16.msra.mxu0 0
    %3438 = vmatprep.subr.bf16.mxu0 0
    %3439 = vmatpush1.bf16.msra.mxu0 0
    %3440 = vmatprep.subr.bf16.mxu0 0
    %3441 = vmatpush1.bf16.msra.mxu0 0
    %3442 = vmatprep.subr.bf16.mxu0 0
    %3443 = vmatpush1.bf16.msra.mxu0 0
    %3444 = vmatprep.subr.bf16.mxu0 0
    %3445 = vmatpush1.bf16.msra.mxu0 0
    %3446 = vmatprep.subr.bf16.mxu0 0
    %3447 = vmatpush1.bf16.msra.mxu0 0
    %3448 = vmatprep.subr.bf16.mxu0 0
    %3449 = vmatpush1.bf16.msra.mxu0 0
    %3450 = vmatprep.subr.bf16.mxu0 0
    %3451 = vmatpush1.bf16.msra.mxu0 0
    %3452 = vmatprep.subr.bf16.mxu0 0
    %3453 = vmatpush1.bf16.msra.mxu0 0
    %3454 = vmatprep.subr.bf16.mxu0 0
    %3455 = vmatpush1.bf16.msra.mxu0 0
    %3456 = vmatprep.subr.bf16.mxu0 0
    %3457 = vmatpush1.bf16.msra.mxu0 0
    %3458 = vmatprep.subr.bf16.mxu0 0
    %3459 = vmatpush1.bf16.msra.mxu0 0
    %3460 = vmatprep.subr.bf16.mxu0 0
    %3461 = vmatpush1.bf16.msra.mxu0 0
    %3462 = vmatprep.subr.bf16.mxu0 0
    %3463 = vmatpush1.bf16.msra.mxu0 0
    %3464 = vmatprep.mubr.bf16.mxu0 0
    %3465 = vmatmul.mubr.bf16.gmra.mrb[0].mxu0 %v3430
    %v3466 = vpop.f32.mrb[0].mxu0
    %v3467 = vadd.f32 0.0, %v3466
    %v3468 = vpop.f32.mrb[0].mxu0
    %v3469 = vpop.f32.mrb[0].mxu0
    %v3470 = vpop.f32.mrb[0].mxu0
    %3471 = vdwg.mxu0
    %v3473 = vrot.slane %v3467, 5
    %v3474 = vrot.slane %v3467, 6
    %v3477 = vadd.f32 %v2763, %v3473
    %v3478 = vadd.f32 %v2769, %v3474
    %v3479 = vxor.u32 %v3477, 2147483648
    %v3480 = vxor.u32 %v3478, 2147483648
    %v3481 = vmul.f32 %v3479, 1.442695
    %v3482 = vpow.pop %v3481
    %v3483 = vmul.f32 %v3480, 1.442695
    %v3484 = vpow.pop %v3483
    %v3485 = vadd.f32 %v3482, 1.0
    %v3486 = vadd.f32 %v3484, 1.0
    %v3487 = vrcp.pop %v3485
    %v3488 = vmul.f32 1.0, %v3487
    %v3489 = vrcp.pop %v3486
    %v3490 = vmul.f32 1.0, %v3489
    %v3491 = vtanh.pop %v3477
    %v3492 = vtanh.pop %v3478
    %v3495 = vrot.slane %v3313, 7
    %v3496 = vrot.slane %v3314, 7
    %v3499 = vmul.f32 %v3488, %v3495
    %v3500 = vmul.f32 %v3490, %v3496
    %3503 = vrot.lane.b32.xlu0 %v3491, 64
    %v3504 = vpop.permute.xlu0 %3503
    %3505 = vrot.lane.b32.xlu0 %v3492, 64
    %v3506 = vpop.permute.xlu0 %3505
    %v3509 = vmul.f32 %v3488, %v3504
    %v3510 = vmul.f32 %v3490, %v3506
    %3513 = vrot.lane.b32.xlu0 %v3509, 32
    %v3514 = vpop.permute.xlu0 %3513
    %3515 = vrot.lane.b32.xlu0 %v3510, 32
    %v3516 = vpop.permute.xlu0 %3515
    %v3519 = vadd.f32 %v3499, %v3514
    %v3520 = vadd.f32 %v3500, %v3516
    %v3521 = vtanh.pop %v3519
    %v3522 = vtanh.pop %v3520
    %3525 = vrot.lane.b32.xlu0 %v3521, 64
    %v3526 = vpop.permute.xlu0 %3525
    %3527 = vrot.lane.b32.xlu0 %v3522, 64
    %v3528 = vpop.permute.xlu0 %3527
    %v3531 = vmul.f32 %v3488, %v3526
    %v3532 = vmul.f32 %v3490, %v3528
    %v3535 = vlaneseq
    %v3536 = vshrl.u32 %v3535, 7
    %v3537 = vsub.s32 3, %v3536
    %v3538 = vrot.slane %v3531, %v3537
    %v3539 = vlaneseq
    %v3540 = vshrl.u32 %v3539, 7
    %v3541 = vsub.s32 3, %v3540
    %v3542 = vrot.slane %v3532, %v3541
    %v3543 = vsel %vm499, %v3542, %v3538
    %3544 = vrot.lane.b32.xlu0 %v3543, 32
    %v3545 = vpop.permute.xlu0 %3544
    %v3548 = vrot.slane %v3416, 5
    %3549 = vrot.lane.b32.xlu0 %v3548, 64
    %v3550 = vpop.permute.xlu0 %3549
    %v3552 = vsel %vm292, %v3545, %v3550
    %v3553 = vpack.c.bf16 %v3552, %v3552
    %v3555 = vshrl.u32 %v3553, 16
    %v3557 = vrot.slane %v3555, 1
    %v3558 = vshll.u32 %v3553, 16
    %v3560 = vrot.slane %v3558, 2
    %v3561 = vor.u32 %v3557, %v3560
    %v3563 = vsel %vm535, %v3561, 0
    %3565 = vmatprep.subr.bf16.mxu0 0
    %3566 = vmatpush1.bf16.msra.mxu0 %v2928
    %3567 = vmatprep.subr.bf16.mxu0 0
    %3568 = vmatpush1.bf16.msra.mxu0 %v2929
    %3569 = vmatprep.subr.bf16.mxu0 0
    %3570 = vmatpush1.bf16.msra.mxu0 %v2930
    %3571 = vmatprep.subr.bf16.mxu0 0
    %3572 = vmatpush1.bf16.msra.mxu0 %v2931
    %3573 = vmatprep.subr.bf16.mxu0 0
    %3574 = vmatpush1.bf16.msra.mxu0 0
    %3575 = vmatprep.subr.bf16.mxu0 0
    %3576 = vmatpush1.bf16.msra.mxu0 0
    %3577 = vmatprep.subr.bf16.mxu0 0
    %3578 = vmatpush1.bf16.msra.mxu0 0
    %3579 = vmatprep.subr.bf16.mxu0 0
    %3580 = vmatpush1.bf16.msra.mxu0 0
    %3581 = vmatprep.subr.bf16.mxu0 0
    %3582 = vmatpush1.bf16.msra.mxu0 0
    %3583 = vmatprep.subr.bf16.mxu0 0
    %3584 = vmatpush1.bf16.msra.mxu0 0
    %3585 = vmatprep.subr.bf16.mxu0 0
    %3586 = vmatpush1.bf16.msra.mxu0 0
    %3587 = vmatprep.subr.bf16.mxu0 0
    %3588 = vmatpush1.bf16.msra.mxu0 0
    %3589 = vmatprep.subr.bf16.mxu0 0
    %3590 = vmatpush1.bf16.msra.mxu0 0
    %3591 = vmatprep.subr.bf16.mxu0 0
    %3592 = vmatpush1.bf16.msra.mxu0 0
    %3593 = vmatprep.subr.bf16.mxu0 0
    %3594 = vmatpush1.bf16.msra.mxu0 0
    %3595 = vmatprep.subr.bf16.mxu0 0
    %3596 = vmatpush1.bf16.msra.mxu0 0
    %3597 = vmatprep.mubr.bf16.mxu0 0
    %3598 = vmatmul.mubr.bf16.gmra.mrb[0].mxu0 %v3563
    %v3599 = vpop.f32.mrb[0].mxu0
    %v3600 = vadd.f32 %v2910, %v3599
    %v3601 = vpop.f32.mrb[0].mxu0
    %v3602 = vpop.f32.mrb[0].mxu0
    %v3603 = vpop.f32.mrb[0].mxu0
    %3604 = vdwg.mxu0
    %v3605 = vxor.u32 %v3600, 2147483648
    %v3606 = vmul.f32 %v3605, 1.442695
    %v3607 = vpow.pop %v3606
    %v3608 = vadd.f32 %v3607, 1.0
    %v3609 = vrcp.pop %v3608
    %v3610 = vmul.f32 1.0, %v3609
    %v3611 = vtanh.pop %v3600
    %v3612 = vmul.f32 %v3610, %v3410
    %3614 = vrot.lane.b32.xlu0 %v3611, 64
    %v3615 = vpop.permute.xlu0 %3614
    %v3617 = vmul.f32 %v3610, %v3615
    %3619 = vrot.lane.b32.xlu0 %v3617, 32
    %v3620 = vpop.permute.xlu0 %3619
    %v3622 = vadd.f32 %v3612, %v3620
    %v3623 = vtanh.pop %v3622
    %3625 = vrot.lane.b32.xlu0 %v3623, 64
    %v3626 = vpop.permute.xlu0 %3625
    %v3628 = vmul.f32 %v3610, %v3626
    %v3629 = vpack.c.bf16 %v3628, %v3628
    %v3630 = vld [vmem:[%s19] sm:$0xf]
    %v3631 = vld [vmem:[%s19 + $0x4] sm:$0xf]
    %v3632 = vld [vmem:[%s19 + $0x8] sm:$0xf]
    %v3633 = vld [vmem:[%s19 + $0xc] sm:$0xf]
    %v3634 = vld [vmem:[%s20] sm:$0x1]
    %v3636 = vlaneseq
    %v3637 = vshrl.u32 %v3636, 7
    %v3638 = vsub.s32 0, %v3637
    %v3639 = vrot.slane %v3634, %v3638
    %3642 = vrot.lane.b32.xlu0 %v3629, 32
    %v3643 = vpop.permute.xlu0 %3642
    %v3648 = vunpack.c.l.b16 %v3630
    %v3649 = vunpack.c.l.b16 %v3631
    %v3650 = vunpack.c.l.b16 %v3632
    %v3651 = vunpack.c.l.b16 %v3633
    %v3652 = vpack.c.b16 %v3649, %v3648
    %v3653 = vpack.c.b16 %v3651, %v3650
    %v3657 = vsel %vm292, %v3643, 0
    %3659 = vmatprep.subr.bf16.mxu0 0
    %3660 = vmatpush1.bf16.msra.mxu0 %v3652
    %3661 = vmatprep.subr.bf16.mxu0 0
    %3662 = vmatpush1.bf16.msra.mxu0 %v3653
    %3663 = vmatprep.subr.bf16.mxu0 0
    %3664 = vmatpush1.bf16.msra.mxu0 0
    %3665 = vmatprep.subr.bf16.mxu0 0
    %3666 = vmatpush1.bf16.msra.mxu0 0
    %3667 = vmatprep.subr.bf16.mxu0 0
    %3668 = vmatpush1.bf16.msra.mxu0 0
    %3669 = vmatprep.subr.bf16.mxu0 0
    %3670 = vmatpush1.bf16.msra.mxu0 0
    %3671 = vmatprep.subr.bf16.mxu0 0
    %3672 = vmatpush1.bf16.msra.mxu0 0
    %3673 = vmatprep.subr.bf16.mxu0 0
    %3674 = vmatpush1.bf16.msra.mxu0 0
    %3675 = vmatprep.subr.bf16.mxu0 0
    %3676 = vmatpush1.bf16.msra.mxu0 0
    %3677 = vmatprep.subr.bf16.mxu0 0
    %3678 = vmatpush1.bf16.msra.mxu0 0
    %3679 = vmatprep.subr.bf16.mxu0 0
    %3680 = vmatpush1.bf16.msra.mxu0 0
    %3681 = vmatprep.subr.bf16.mxu0 0
    %3682 = vmatpush1.bf16.msra.mxu0 0
    %3683 = vmatprep.subr.bf16.mxu0 0
    %3684 = vmatpush1.bf16.msra.mxu0 0
    %3685 = vmatprep.subr.bf16.mxu0 0
    %3686 = vmatpush1.bf16.msra.mxu0 0
    %3687 = vmatprep.subr.bf16.mxu0 0
    %3688 = vmatpush1.bf16.msra.mxu0 0
    %3689 = vmatprep.subr.bf16.mxu0 0
    %3690 = vmatpush1.bf16.msra.mxu0 0
    %3691 = vmatprep.mubr.bf16.mxu0 0
    %3692 = vmatmul.mubr.bf16.gmra.mrb[0].mxu0 %v3657
    %v3693 = vpop.f32.mrb[0].mxu0
    %v3694 = vadd.f32 %v3639, %v3693
    %v3695 = vpop.f32.mrb[0].mxu0
    %v3696 = vpop.f32.mrb[0].mxu0
    %v3697 = vpop.f32.mrb[0].mxu0
    %3698 = vdwg.mxu0
    %vm3699 = vcmask 123904
    %3700 = vst.msk [vmem:[#allocation25] sm:$0x3] %vm3699, %v3694
    // Predicated region
    $region142: #{_lambda_.1} parent=1 // pred_check
      _
    $region143: #{_lambda_.1} parent=1 // pred_check_branch
      %3702 = sbr.rel (0) target = $region145
    $region144: #{_lambda_.1} parent=1 // pred_region
      %s3704 = ssub.s32 32, 32
      %3705 = vsyncadd [#allocation4], %s3704
      %s3707 = sshll.u32 [#allocation25], 4
      %s3708 = int_to_ptr.vmem [resolvable:$true] %s3707
      %3710 = dma.vmem_to_hbm [thread:$0]  %s3708, 32, %s21, [#allocation4]
    $region145: #{_lambda_.1} parent=1 // pred_fallthru
      _
    // Predicated region
    $region146: #{_lambda_.1} parent=1 // pred_check
      _
    $region147: #{_lambda_.1} parent=1 // pred_check_branch
      %3712 = sbr.rel (0) target = $region149
    $region148: #{_lambda_.1} parent=1 // pred_region
      %3713 = dma.done [#allocation4], 32
    $region149: #{_lambda_.1} parent=1 // pred_fallthru
      _
    %3714 = vsyncpa [#allocation3], 1
    %3715 = vsyncpa [#allocation6], 1
    %3716 = vsyncpa [#allocation9], 1
    %3717 = vsyncpa [#allocation12], 1
    %3718 = vsyncpa [#allocation15], 1
    %3719 = vsyncpa [#allocation18], 1
    %3720 = vsyncpa [#allocation21], 1
    %3721 = vsyncpa [#allocation24], 1
    %3722 = vsyncpa [#allocation4], 1

</llo_original>
